<compile_context>
chip_gen: v7x
topology: tpu7x:2x2x1
jax: 0.10.0
libtpu: 0.0.40
codegen_flags: <defaults>
</compile_context>

<pallas_src>
import numpy as np
import jax
import jax.numpy as jnp
from jax.experimental import pallas as pl
from jax.experimental.pallas import tpu as pltpu

EPS = 1e-5


def _down_kernel(x_ref, w1_ref, s1_ref, b1_ref, w2_ref, s2_ref, b2_ref,
                 o_ref, p1_ref, p2_ref):
    # x_ref : (1, H, W, Cin)         bf16 (one image per grid step)
    # w*_ref: (9*Cin, Cout)          bf16 (im2col-flattened weights)
    # s/b   : (1, Cout)              f32  (folded BN scale / bias)
    # o_ref : (1, Hh*Wh, Cout)       f32
    # p1/p2 : zero-padded activation scratch, (Hh+2, Wh+2, C) bf16
    _, H, W, Ci = x_ref.shape
    Hh, Wh = H // 2, W // 2

    x = x_ref[0]                                       # (H, W, Ci)

    # ---- MaxPool2d(kernel=2, stride=2) ----
    xr = x.reshape(Hh, 2, W, Ci)
    rows = jnp.maximum(xr[:, 0], xr[:, 1])             # (Hh, W, Ci)
    cr = rows.reshape(Hh, Wh, 2, Ci)
    pooled = jnp.maximum(cr[:, :, 0], cr[:, :, 1])     # (Hh, Wh, Ci)

    def conv3x3_bn_relu(pad_ref, act, w_flat_ref, s_ref, b_ref):
        # act: (hh, ww, c) bf16 ; returns (hh*ww, cout) f32
        hh, ww, c = act.shape
        # zero-padded copy of the activation in VMEM scratch
        pad_ref[...] = jnp.zeros_like(pad_ref)
        pad_ref[1:hh + 1, 1:ww + 1, :] = act
        p = pad_ref[...]                               # (hh+2, ww+2, c)
        # im2col: one (hh*ww, 9*c) patch matrix -> single wide-K matmul
        cols = [p[dh:dh + hh, dw:dw + ww, :].reshape(hh * ww, c)
                for dh in range(3) for dw in range(3)]
        patches = jnp.concatenate(cols, axis=-1)       # (hh*ww, 9*c) bf16
        acc = jnp.dot(patches, w_flat_ref[...],
                      preferred_element_type=jnp.float32)
        # folded BN (eval) + conv bias, then ReLU, in f32
        return jnp.maximum(acc * s_ref[...] + b_ref[...], 0.0)

    # ---- conv1 -> BN1 -> ReLU ----
    h1 = conv3x3_bn_relu(p1_ref, pooled, w1_ref, s1_ref, b1_ref)
    Cm = w1_ref.shape[-1]
    h1 = h1.astype(p2_ref.dtype).reshape(Hh, Wh, Cm)

    # ---- conv2 -> BN2 -> ReLU ----
    h2 = conv3x3_bn_relu(p2_ref, h1, w2_ref, s2_ref, b2_ref)
    o_ref[0] = h2.astype(o_ref.dtype)                  # (Hh*Wh, Co)


def down_pallas(x_nchw, params, mxu_dtype=jnp.bfloat16):
    """x_nchw: (N, Cin, H, W) float32. Returns (N, Cout, H//2, W//2) float32."""
    w1, b1, g1, be1, m1, v1, w2, b2, g2, be2, m2, v2 = params
    N, Ci, H, W = x_nchw.shape
    Cm, Co = w1.shape[0], w2.shape[0]
    assert H % 2 == 0 and W % 2 == 0, "MaxPool2d(2) path assumes even H, W"
    Hh, Wh = H // 2, W // 2

    # Fold conv bias + eval-mode BN into per-channel scale / bias (f32).
    s1 = g1 / jnp.sqrt(v1 + EPS)
    eb1 = be1 + (b1 - m1) * s1
    s2 = g2 / jnp.sqrt(v2 + EPS)
    eb2 = be2 + (b2 - m2) * s2

    # Weights: torch (Cout, Cin, 3, 3) -> (kh, kw, Cin, Cout) -> (9*Cin, Cout)
    # flattening order matches the in-kernel im2col concat (kh, kw, ci).
    w1k = jnp.transpose(w1, (2, 3, 1, 0)).reshape(9 * Ci, Cm).astype(mxu_dtype)
    w2k = jnp.transpose(w2, (2, 3, 1, 0)).reshape(9 * Cm, Co).astype(mxu_dtype)

    x_nhwc = jnp.transpose(x_nchw, (0, 2, 3, 1)).astype(mxu_dtype)

    grid_spec = pltpu.PrefetchScalarGridSpec(
        num_scalar_prefetch=0,
        grid=(N,),
        in_specs=[
            pl.BlockSpec((1, H, W, Ci), lambda n: (n, 0, 0, 0)),   # x (per image)
            pl.BlockSpec((9 * Ci, Cm), lambda n: (0, 0)),          # w1 (resident)
            pl.BlockSpec((1, Cm), lambda n: (0, 0)),               # s1
            pl.BlockSpec((1, Cm), lambda n: (0, 0)),               # b1
            pl.BlockSpec((9 * Cm, Co), lambda n: (0, 0)),          # w2
            pl.BlockSpec((1, Co), lambda n: (0, 0)),               # s2
            pl.BlockSpec((1, Co), lambda n: (0, 0)),               # b2
        ],
        out_specs=pl.BlockSpec((1, Hh * Wh, Co), lambda n: (n, 0, 0)),
        scratch_shapes=[
            pltpu.VMEM((Hh + 2, Wh + 2, Ci), mxu_dtype),   # padded pooled input
            pltpu.VMEM((Hh + 2, Wh + 2, Cm), mxu_dtype),   # padded conv1 output
        ],
    )

    out = pl.pallas_call(
        _down_kernel,
        out_shape=jax.ShapeDtypeStruct((N, Hh * Wh, Co), jnp.float32),
        grid_spec=grid_spec,
        compiler_params=pltpu.CompilerParams(
            dimension_semantics=("parallel",),        # batch sharded over TCs (v7x)
            vmem_limit_bytes=32 * 1024 * 1024),       # safe on v5e/v6e/v7x
    )(x_nhwc, w1k,
      s1.reshape(1, Cm).astype(jnp.float32), eb1.reshape(1, Cm).astype(jnp.float32),
      w2k,
      s2.reshape(1, Co).astype(jnp.float32), eb2.reshape(1, Co).astype(jnp.float32))

    # (N, Hh*Wh, Co) -> (N, Co, Hh, Wh)
    return jnp.transpose(out.reshape(N, Hh, Wh, Co), (0, 3, 1, 2))


def down_reference(x_nchw, params, mxu_dtype=jnp.float32):
    """Pure-JAX reference (XLA conv / reduce_window).

    mxu_dtype=bfloat16 mirrors the kernel's bf16 MXU operands (with f32
    accumulation and f32 BN/ReLU) so the comparison is apples-to-apples.
    """
    w1, b1, g1, be1, m1, v1, w2, b2, g2, be2, m2, v2 = params
    xp = jax.lax.reduce_window(x_nchw, -jnp.inf, jax.lax.max,
                               (1, 1, 2, 2), (1, 1, 2, 2), 'VALID')

    def conv_bn_relu(x, w, b, g, be, m, v):
        y = jax.lax.conv_general_dilated(
            x.astype(mxu_dtype), w.astype(mxu_dtype), (1, 1), ((1, 1), (1, 1)),
            dimension_numbers=('NCHW', 'OIHW', 'NCHW'),
            preferred_element_type=jnp.float32)
        y = y + b[None, :, None, None]
        y = g[None, :, None, None] * (y - m[None, :, None, None]) \
            / jnp.sqrt(v[None, :, None, None] + EPS) + be[None, :, None, None]
        return jnp.maximum(y, 0.0)

    h = conv_bn_relu(xp, w1, b1, g1, be1, m1, v1)
    return conv_bn_relu(h, w2, b2, g2, be2, m2, v2)


def init_params(key, in_channels, out_channels):
    mid = out_channels
    k1, k2, k3, k4 = jax.random.split(key, 4)
    w1 = jax.random.normal(k1, (mid, in_channels, 3, 3), jnp.float32) * 0.2
    b1 = jax.random.normal(k2, (mid,), jnp.float32) * 0.05
    w2 = jax.random.normal(k3, (out_channels, mid, 3, 3), jnp.float32) * 0.2
    b2 = jax.random.normal(k4, (out_channels,), jnp.float32) * 0.05
    # fresh BatchNorm parameters / running stats (eval mode)
    g1, be1 = jnp.ones((mid,)), jnp.zeros((mid,))
    m1, v1 = jnp.zeros((mid,)), jnp.ones((mid,))
    g2, be2 = jnp.ones((out_channels,)), jnp.zeros((out_channels,))
    m2, v2 = jnp.zeros((out_channels,)), jnp.ones((out_channels,))
    return (w1, b1, g1, be1, m1, v1, w2, b2, g2, be2, m2, v2)


if __name__ == "__main__":
    key = jax.random.PRNGKey(0)
    kx, kp = jax.random.split(key)

    N, Cin, H, W = 2, 4, 16, 16
    Cout = 8
    x = jax.random.normal(kx, (N, Cin, H, W), jnp.float32)
    params = init_params(kp, Cin, Cout)

    y = jax.block_until_ready(down_pallas(x, params))
    assert y.shape == (N, Cout, H // 2, W // 2), y.shape

    y_ref = jax.block_until_ready(
        down_reference(x, params, mxu_dtype=jnp.bfloat16))
    np.testing.assert_allclose(np.asarray(y), np.asarray(y_ref),
                               rtol=1e-3, atol=1e-3)

    print("KERNEL_OK")
</pallas_src>

<mosaic_0001>
module attributes {stable_mosaic.version = 11 : i64} {
  func.func @_down_kernel(%arg0: i32, %arg1: memref<1x16x16x4xbf16, #tpu.memory_space<vmem>>, %arg2: memref<36x8xbf16, #tpu.memory_space<vmem>>, %arg3: memref<1x8xf32, #tpu.memory_space<vmem>>, %arg4: memref<1x8xf32, #tpu.memory_space<vmem>>, %arg5: memref<72x8xbf16, #tpu.memory_space<vmem>>, %arg6: memref<1x8xf32, #tpu.memory_space<vmem>>, %arg7: memref<1x8xf32, #tpu.memory_space<vmem>>, %arg8: memref<1x64x8xf32, #tpu.memory_space<vmem>>, %arg9: memref<10x10x4xbf16, #tpu.memory_space<vmem>>, %arg10: memref<10x10x8xbf16, #tpu.memory_space<vmem>>) attributes {dimension_semantics = [#tpu.dimension_semantics<parallel>], iteration_bounds = array<i64: 2>, scalar_prefetch = 0 : i64, scratch_operands = 2 : i64, tpu.core_type = #tpu.core_type<tc>, window_params = [{transform_indices = @transform_0, window_bounds = array<i64: 1, 16, 16, 4>}, {pipeline_mode = #tpu.pipeline_mode<synchronous>, transform_indices = @transform_1, window_bounds = array<i64: 36, 8>}, {pipeline_mode = #tpu.pipeline_mode<synchronous>, transform_indices = @transform_2, window_bounds = array<i64: 1, 8>}, {pipeline_mode = #tpu.pipeline_mode<synchronous>, transform_indices = @transform_3, window_bounds = array<i64: 1, 8>}, {pipeline_mode = #tpu.pipeline_mode<synchronous>, transform_indices = @transform_4, window_bounds = array<i64: 72, 8>}, {pipeline_mode = #tpu.pipeline_mode<synchronous>, transform_indices = @transform_5, window_bounds = array<i64: 1, 8>}, {pipeline_mode = #tpu.pipeline_mode<synchronous>, transform_indices = @transform_6, window_bounds = array<i64: 1, 8>}, {transform_indices = @transform_7, window_bounds = array<i64: 1, 64, 8>}]} {
    %c0 = arith.constant 0 : index
    %c0_0 = arith.constant 0 : index
    %c0_1 = arith.constant 0 : index
    %c0_2 = arith.constant 0 : index
    %0 = vector.load %arg1[%c0, %c0_0, %c0_1, %c0_2] : memref<1x16x16x4xbf16, #tpu.memory_space<vmem>>, vector<1x16x16x4xbf16>
    %1 = vector.shape_cast %0 : vector<1x16x16x4xbf16> to vector<16x16x4xbf16>
    %2 = vector.shape_cast %1 : vector<16x16x4xbf16> to vector<8x2x16x4xbf16>
    %3 = vector.extract_strided_slice %2 {offsets = [0, 0, 0, 0], sizes = [8, 1, 16, 4], strides = [1, 1, 1, 1]} : vector<8x2x16x4xbf16> to vector<8x1x16x4xbf16>
    %4 = vector.shape_cast %3 : vector<8x1x16x4xbf16> to vector<8x16x4xbf16>
    %5 = vector.extract_strided_slice %2 {offsets = [0, 1, 0, 0], sizes = [8, 1, 16, 4], strides = [1, 1, 1, 1]} : vector<8x2x16x4xbf16> to vector<8x1x16x4xbf16>
    %6 = vector.shape_cast %5 : vector<8x1x16x4xbf16> to vector<8x16x4xbf16>
    %7 = arith.maximumf %4, %6 : vector<8x16x4xbf16>
    %8 = vector.shape_cast %7 : vector<8x16x4xbf16> to vector<8x8x2x4xbf16>
    %9 = vector.extract_strided_slice %8 {offsets = [0, 0, 0, 0], sizes = [8, 8, 1, 4], strides = [1, 1, 1, 1]} : vector<8x8x2x4xbf16> to vector<8x8x1x4xbf16>
    %10 = vector.shape_cast %9 : vector<8x8x1x4xbf16> to vector<8x8x4xbf16>
    %11 = vector.extract_strided_slice %8 {offsets = [0, 0, 1, 0], sizes = [8, 8, 1, 4], strides = [1, 1, 1, 1]} : vector<8x8x2x4xbf16> to vector<8x8x1x4xbf16>
    %12 = vector.shape_cast %11 : vector<8x8x1x4xbf16> to vector<8x8x4xbf16>
    %13 = arith.maximumf %10, %12 : vector<8x8x4xbf16>
    %cst = arith.constant 0.000000e+00 : bf16
    %14 = vector.broadcast %cst : bf16 to vector<10x10x4xbf16>
    %c0_3 = arith.constant 0 : index
    %c0_4 = arith.constant 0 : index
    %c0_5 = arith.constant 0 : index
    %15 = vector.load %arg9[%c0_3, %c0_4, %c0_5] : memref<10x10x4xbf16, #tpu.memory_space<vmem>>, vector<10x10x4xbf16>
    tpu.vector_store %arg9[%c0_3, %c0_4, %c0_5], %14 {strides = array<i32>} : memref<10x10x4xbf16, #tpu.memory_space<vmem>>, vector<10x10x4xbf16>,
    %c1 = arith.constant 1 : index
    %c1_6 = arith.constant 1 : index
    %c0_7 = arith.constant 0 : index
    %16 = vector.load %arg9[%c1, %c1_6, %c0_7] : memref<10x10x4xbf16, #tpu.memory_space<vmem>>, vector<8x8x4xbf16>
    tpu.vector_store %arg9[%c1, %c1_6, %c0_7], %13 {strides = array<i32>} : memref<10x10x4xbf16, #tpu.memory_space<vmem>>, vector<8x8x4xbf16>,
    %c0_8 = arith.constant 0 : index
    %c0_9 = arith.constant 0 : index
    %c0_10 = arith.constant 0 : index
    %17 = vector.load %arg9[%c0_8, %c0_9, %c0_10] : memref<10x10x4xbf16, #tpu.memory_space<vmem>>, vector<10x10x4xbf16>
    %18 = vector.extract_strided_slice %17 {offsets = [0, 0, 0], sizes = [8, 8, 4], strides = [1, 1, 1]} : vector<10x10x4xbf16> to vector<8x8x4xbf16>
    %19 = vector.shape_cast %18 : vector<8x8x4xbf16> to vector<64x4xbf16>
    %20 = vector.extract_strided_slice %17 {offsets = [0, 1, 0], sizes = [8, 8, 4], strides = [1, 1, 1]} : vector<10x10x4xbf16> to vector<8x8x4xbf16>
    %21 = vector.shape_cast %20 : vector<8x8x4xbf16> to vector<64x4xbf16>
    %22 = vector.extract_strided_slice %17 {offsets = [0, 2, 0], sizes = [8, 8, 4], strides = [1, 1, 1]} : vector<10x10x4xbf16> to vector<8x8x4xbf16>
    %23 = vector.shape_cast %22 : vector<8x8x4xbf16> to vector<64x4xbf16>
    %24 = vector.extract_strided_slice %17 {offsets = [1, 0, 0], sizes = [8, 8, 4], strides = [1, 1, 1]} : vector<10x10x4xbf16> to vector<8x8x4xbf16>
    %25 = vector.shape_cast %24 : vector<8x8x4xbf16> to vector<64x4xbf16>
    %26 = vector.extract_strided_slice %17 {offsets = [1, 1, 0], sizes = [8, 8, 4], strides = [1, 1, 1]} : vector<10x10x4xbf16> to vector<8x8x4xbf16>
    %27 = vector.shape_cast %26 : vector<8x8x4xbf16> to vector<64x4xbf16>
    %28 = vector.extract_strided_slice %17 {offsets = [1, 2, 0], sizes = [8, 8, 4], strides = [1, 1, 1]} : vector<10x10x4xbf16> to vector<8x8x4xbf16>
    %29 = vector.shape_cast %28 : vector<8x8x4xbf16> to vector<64x4xbf16>
    %30 = vector.extract_strided_slice %17 {offsets = [2, 0, 0], sizes = [8, 8, 4], strides = [1, 1, 1]} : vector<10x10x4xbf16> to vector<8x8x4xbf16>
    %31 = vector.shape_cast %30 : vector<8x8x4xbf16> to vector<64x4xbf16>
    %32 = vector.extract_strided_slice %17 {offsets = [2, 1, 0], sizes = [8, 8, 4], strides = [1, 1, 1]} : vector<10x10x4xbf16> to vector<8x8x4xbf16>
    %33 = vector.shape_cast %32 : vector<8x8x4xbf16> to vector<64x4xbf16>
    %34 = vector.extract_strided_slice %17 {offsets = [2, 2, 0], sizes = [8, 8, 4], strides = [1, 1, 1]} : vector<10x10x4xbf16> to vector<8x8x4xbf16>
    %35 = vector.shape_cast %34 : vector<8x8x4xbf16> to vector<64x4xbf16>
    %36 = tpu.concatenate %19, %21, %23, %25, %27, %29, %31, %33, %35 in 1 : vector<64x4xbf16>, vector<64x4xbf16>, vector<64x4xbf16>, vector<64x4xbf16>, vector<64x4xbf16>, vector<64x4xbf16>, vector<64x4xbf16>, vector<64x4xbf16>, vector<64x4xbf16> -> vector<64x36xbf16>
    %c0_11 = arith.constant 0 : index
    %c0_12 = arith.constant 0 : index
    %37 = vector.load %arg2[%c0_11, %c0_12] : memref<36x8xbf16, #tpu.memory_space<vmem>>, vector<36x8xbf16>
    %cst_13 = arith.constant dense<0.000000e+00> : vector<64x8xf32>
    %38 = tpu.matmul %36, %37, %cst_13 {dimension_numbers = #tpu.dot_dimension_numbers<[1], [0], [0], [1], [0, 0, 1, 1], [], []>} : vector<64x36xbf16>, vector<36x8xbf16>, vector<64x8xf32> -> vector<64x8xf32>
    %c0_14 = arith.constant 0 : index
    %c0_15 = arith.constant 0 : index
    %39 = vector.load %arg3[%c0_14, %c0_15] : memref<1x8xf32, #tpu.memory_space<vmem>>, vector<1x8xf32>
    %40 = vector.broadcast %39 : vector<1x8xf32> to vector<64x8xf32>
    %41 = arith.mulf %38, %40 : vector<64x8xf32>
    %c0_16 = arith.constant 0 : index
    %c0_17 = arith.constant 0 : index
    %42 = vector.load %arg4[%c0_16, %c0_17] : memref<1x8xf32, #tpu.memory_space<vmem>>, vector<1x8xf32>
    %43 = vector.broadcast %42 : vector<1x8xf32> to vector<64x8xf32>
    %44 = arith.addf %41, %43 : vector<64x8xf32>
    %cst_18 = arith.constant 0.000000e+00 : f32
    %45 = vector.broadcast %cst_18 : f32 to vector<64x8xf32>
    %46 = arith.maximumf %44, %45 : vector<64x8xf32>
    %47 = arith.truncf %46 : vector<64x8xf32> to vector<64x8xbf16>
    %48 = vector.shape_cast %47 : vector<64x8xbf16> to vector<8x8x8xbf16>
    %cst_19 = arith.constant 0.000000e+00 : bf16
    %49 = vector.broadcast %cst_19 : bf16 to vector<10x10x8xbf16>
    %c0_20 = arith.constant 0 : index
    %c0_21 = arith.constant 0 : index
    %c0_22 = arith.constant 0 : index
    %50 = vector.load %arg10[%c0_20, %c0_21, %c0_22] : memref<10x10x8xbf16, #tpu.memory_space<vmem>>, vector<10x10x8xbf16>
    tpu.vector_store %arg10[%c0_20, %c0_21, %c0_22], %49 {strides = array<i32>} : memref<10x10x8xbf16, #tpu.memory_space<vmem>>, vector<10x10x8xbf16>,
    %c1_23 = arith.constant 1 : index
    %c1_24 = arith.constant 1 : index
    %c0_25 = arith.constant 0 : index
    %51 = vector.load %arg10[%c1_23, %c1_24, %c0_25] : memref<10x10x8xbf16, #tpu.memory_space<vmem>>, vector<8x8x8xbf16>
    tpu.vector_store %arg10[%c1_23, %c1_24, %c0_25], %48 {strides = array<i32>} : memref<10x10x8xbf16, #tpu.memory_space<vmem>>, vector<8x8x8xbf16>,
    %c0_26 = arith.constant 0 : index
    %c0_27 = arith.constant 0 : index
    %c0_28 = arith.constant 0 : index
    %52 = vector.load %arg10[%c0_26, %c0_27, %c0_28] : memref<10x10x8xbf16, #tpu.memory_space<vmem>>, vector<10x10x8xbf16>
    %53 = vector.extract_strided_slice %52 {offsets = [0, 0, 0], sizes = [8, 8, 8], strides = [1, 1, 1]} : vector<10x10x8xbf16> to vector<8x8x8xbf16>
    %54 = vector.shape_cast %53 : vector<8x8x8xbf16> to vector<64x8xbf16>
    %55 = vector.extract_strided_slice %52 {offsets = [0, 1, 0], sizes = [8, 8, 8], strides = [1, 1, 1]} : vector<10x10x8xbf16> to vector<8x8x8xbf16>
    %56 = vector.shape_cast %55 : vector<8x8x8xbf16> to vector<64x8xbf16>
    %57 = vector.extract_strided_slice %52 {offsets = [0, 2, 0], sizes = [8, 8, 8], strides = [1, 1, 1]} : vector<10x10x8xbf16> to vector<8x8x8xbf16>
    %58 = vector.shape_cast %57 : vector<8x8x8xbf16> to vector<64x8xbf16>
    %59 = vector.extract_strided_slice %52 {offsets = [1, 0, 0], sizes = [8, 8, 8], strides = [1, 1, 1]} : vector<10x10x8xbf16> to vector<8x8x8xbf16>
    %60 = vector.shape_cast %59 : vector<8x8x8xbf16> to vector<64x8xbf16>
    %61 = vector.extract_strided_slice %52 {offsets = [1, 1, 0], sizes = [8, 8, 8], strides = [1, 1, 1]} : vector<10x10x8xbf16> to vector<8x8x8xbf16>
    %62 = vector.shape_cast %61 : vector<8x8x8xbf16> to vector<64x8xbf16>
    %63 = vector.extract_strided_slice %52 {offsets = [1, 2, 0], sizes = [8, 8, 8], strides = [1, 1, 1]} : vector<10x10x8xbf16> to vector<8x8x8xbf16>
    %64 = vector.shape_cast %63 : vector<8x8x8xbf16> to vector<64x8xbf16>
    %65 = vector.extract_strided_slice %52 {offsets = [2, 0, 0], sizes = [8, 8, 8], strides = [1, 1, 1]} : vector<10x10x8xbf16> to vector<8x8x8xbf16>
    %66 = vector.shape_cast %65 : vector<8x8x8xbf16> to vector<64x8xbf16>
    %67 = vector.extract_strided_slice %52 {offsets = [2, 1, 0], sizes = [8, 8, 8], strides = [1, 1, 1]} : vector<10x10x8xbf16> to vector<8x8x8xbf16>
    %68 = vector.shape_cast %67 : vector<8x8x8xbf16> to vector<64x8xbf16>
    %69 = vector.extract_strided_slice %52 {offsets = [2, 2, 0], sizes = [8, 8, 8], strides = [1, 1, 1]} : vector<10x10x8xbf16> to vector<8x8x8xbf16>
    %70 = vector.shape_cast %69 : vector<8x8x8xbf16> to vector<64x8xbf16>
    %71 = tpu.concatenate %54, %56, %58, %60, %62, %64, %66, %68, %70 in 1 : vector<64x8xbf16>, vector<64x8xbf16>, vector<64x8xbf16>, vector<64x8xbf16>, vector<64x8xbf16>, vector<64x8xbf16>, vector<64x8xbf16>, vector<64x8xbf16>, vector<64x8xbf16> -> vector<64x72xbf16>
    %c0_29 = arith.constant 0 : index
    %c0_30 = arith.constant 0 : index
    %72 = vector.load %arg5[%c0_29, %c0_30] : memref<72x8xbf16, #tpu.memory_space<vmem>>, vector<72x8xbf16>
    %cst_31 = arith.constant dense<0.000000e+00> : vector<64x8xf32>
    %73 = tpu.matmul %71, %72, %cst_31 {dimension_numbers = #tpu.dot_dimension_numbers<[1], [0], [0], [1], [0, 0, 1, 1], [], []>} : vector<64x72xbf16>, vector<72x8xbf16>, vector<64x8xf32> -> vector<64x8xf32>
    %c0_32 = arith.constant 0 : index
    %c0_33 = arith.constant 0 : index
    %74 = vector.load %arg6[%c0_32, %c0_33] : memref<1x8xf32, #tpu.memory_space<vmem>>, vector<1x8xf32>
    %75 = vector.broadcast %74 : vector<1x8xf32> to vector<64x8xf32>
    %76 = arith.mulf %73, %75 : vector<64x8xf32>
    %c0_34 = arith.constant 0 : index
    %c0_35 = arith.constant 0 : index
    %77 = vector.load %arg7[%c0_34, %c0_35] : memref<1x8xf32, #tpu.memory_space<vmem>>, vector<1x8xf32>
    %78 = vector.broadcast %77 : vector<1x8xf32> to vector<64x8xf32>
    %79 = arith.addf %76, %78 : vector<64x8xf32>
    %cst_36 = arith.constant 0.000000e+00 : f32
    %80 = vector.broadcast %cst_36 : f32 to vector<64x8xf32>
    %81 = arith.maximumf %79, %80 : vector<64x8xf32>
    %c0_37 = arith.constant 0 : index
    %c0_38 = arith.constant 0 : index
    %c0_39 = arith.constant 0 : index
    %82 = vector.load %arg8[%c0_37, %c0_38, %c0_39] : memref<1x64x8xf32, #tpu.memory_space<vmem>>, vector<1x64x8xf32>
    %83 = vector.shape_cast %82 : vector<1x64x8xf32> to vector<64x8xf32>
    %84 = vector.shape_cast %81 : vector<64x8xf32> to vector<1x64x8xf32>
    tpu.vector_store %arg8[%c0_37, %c0_38, %c0_39], %84 {strides = array<i32>} : memref<1x64x8xf32, #tpu.memory_space<vmem>>, vector<1x64x8xf32>,
    return
  }
  func.func @transform_0(%arg0: i32) -> (i32, i32, i32, i32) {
    %c0_i32 = arith.constant 0 : i32
    %c0_i32_0 = arith.constant 0 : i32
    %c0_i32_1 = arith.constant 0 : i32
    %c0_i32_2 = arith.constant 0 : i32
    return %arg0, %c0_i32, %c0_i32_0, %c0_i32_1 : i32, i32, i32, i32
  }
  func.func @transform_1(%arg0: i32) -> (i32, i32) {
    %c0_i32 = arith.constant 0 : i32
    %c0_i32_0 = arith.constant 0 : i32
    %c0_i32_1 = arith.constant 0 : i32
    return %c0_i32, %c0_i32_0 : i32, i32
  }
  func.func @transform_2(%arg0: i32) -> (i32, i32) {
    %c0_i32 = arith.constant 0 : i32
    %c0_i32_0 = arith.constant 0 : i32
    %c0_i32_1 = arith.constant 0 : i32
    return %c0_i32, %c0_i32_0 : i32, i32
  }
  func.func @transform_3(%arg0: i32) -> (i32, i32) {
    %c0_i32 = arith.constant 0 : i32
    %c0_i32_0 = arith.constant 0 : i32
    %c0_i32_1 = arith.constant 0 : i32
    return %c0_i32, %c0_i32_0 : i32, i32
  }
  func.func @transform_4(%arg0: i32) -> (i32, i32) {
    %c0_i32 = arith.constant 0 : i32
    %c0_i32_0 = arith.constant 0 : i32
    %c0_i32_1 = arith.constant 0 : i32
    return %c0_i32, %c0_i32_0 : i32, i32
  }
  func.func @transform_5(%arg0: i32) -> (i32, i32) {
    %c0_i32 = arith.constant 0 : i32
    %c0_i32_0 = arith.constant 0 : i32
    %c0_i32_1 = arith.constant 0 : i32
    return %c0_i32, %c0_i32_0 : i32, i32
  }
  func.func @transform_6(%arg0: i32) -> (i32, i32) {
    %c0_i32 = arith.constant 0 : i32
    %c0_i32_0 = arith.constant 0 : i32
    %c0_i32_1 = arith.constant 0 : i32
    return %c0_i32, %c0_i32_0 : i32, i32
  }
  func.func @transform_7(%arg0: i32) -> (i32, i32, i32) {
    %c0_i32 = arith.constant 0 : i32
    %c0_i32_0 = arith.constant 0 : i32
    %c0_i32_1 = arith.constant 0 : i32
    return %arg0, %c0_i32, %c0_i32_0 : i32, i32, i32
  }
}

</mosaic_0001>

<llo_original>
// kernel: tpu_custom_call.1
$region0: #{tpu_custom_call.1}
  #allocation0 [shape = 'u32[]', space=smem, size = 0x4, offset = 0x4, fixed_abs, tag = 'smem constant byte address 0x4 - core index']
  #allocation1 [shape = 'u32[144,128]{1,0:T(1,128)}', space=vmem, size = 0x12000, scoped, tag = 'internal scratch']
  #allocation2 [shape = 'bf16[10,10,4]{2,1,0:T(8,128)(2,1)}', space=vmem, size = 0xa000, scoped, tag = 'scratch operand']
  #allocation3 [shape = 'bf16[10,10,8]{2,1,0:T(8,128)(2,1)}', space=vmem, size = 0xa000, scoped, tag = 'scratch operand']
  %s0 = inlined_call_operand.vmem [shape: bf16[2,16,16,4], index: 0, kind: input, shape index: {}]
  %s1 = inlined_call_operand.vmem [shape: bf16[36,8], index: 1, kind: input, shape index: {}]
  %s2 = inlined_call_operand.vmem [shape: f32[1,8], index: 2, kind: input, shape index: {}]
  %s3 = inlined_call_operand.vmem [shape: f32[1,8], index: 3, kind: input, shape index: {}]
  %s4 = inlined_call_operand.vmem [shape: bf16[72,8], index: 4, kind: input, shape index: {}]
  %s5 = inlined_call_operand.vmem [shape: f32[1,8], index: 5, kind: input, shape index: {}]
  %s6 = inlined_call_operand.vmem [shape: f32[1,8], index: 6, kind: input, shape index: {}]
  %s7 = inlined_call_operand.vmem [shape: f32[2,64,8], index: 7, kind: output, shape index: {}]
  %s8 = sld [smem:[#allocation0]]
  $region61: #{tpu_custom_call.1} parent=0
    _
  %s10 = ssub.s32 1, %s8
  %s11 = scalar_select 0, %s10, %s8
  loop: start=0, step=1, limit=4
  $region2: #{tpu_custom_call.1} parent=0 // loop_pre_header
    _
  $region3: #{tpu_custom_call.1} parent=0 // loop_header
    %s13 = sphi 0, %s17
    %p14 = scmp.ge.s32.totalorder %s13, 4
    %s23 = sphi 0, %s25
    %s26 = sphi 0, %s23
    %s27 = sphi 0, %s26
    %s43 = sphi 0, %s27
    %s47 = sphi 0, %s47
    %s49 = sphi 0, %s47
    %s50 = sphi 0, %s49
    %s64 = sphi 0, %s50
    %s68 = sphi 0, %s68
    %s70 = sphi 0, %s68
    %s71 = sphi 0, %s70
    %s85 = sphi 0, %s71
    %s89 = sphi 0, %s89
    %s91 = sphi 0, %s89
    %s92 = sphi 0, %s91
    %s106 = sphi 0, %s92
    %s110 = sphi 0, %s110
    %s112 = sphi 0, %s110
    %s113 = sphi 0, %s112
    %s127 = sphi 0, %s113
    %s131 = sphi 0, %s131
    %s133 = sphi 0, %s131
    %s134 = sphi 0, %s133
    %s148 = sphi 0, %s134
    %s152 = sphi 0, %s152
    %s154 = sphi 0, %s152
    %s155 = sphi 0, %s154
    %s169 = sphi 0, %s155
    %s175 = sphi 0, %s177
    %s178 = sphi 0, %s175
    %s179 = sphi 0, %s178
    %s195 = sphi 0, %s179
  $region4: #{tpu_custom_call.1} parent=0 // loop_header_branch
    %16 = sbr.rel (%p14) target = $region8
  $region5: #{tpu_custom_call.1} parent=0 // loop_body
    %s18 = ssub.s32 %s13, 1
    %s19 = ssub.s32 %s13, 2
    %s20 = sadd.s32 %s13, 1
    %s21 = ssub.s32 %s13, %s20
    %p22 = scmp.eq.s32.totalorder %s21, 0
    %s24 = sadd.s32 %s23, 1
    %s25 = scalar_select %p22, %s23, %s24
    %p28 = pneg %p22
    %p29 = scmp.eq.s32.totalorder %s13, 1
    %p30 = por %p28, %p29
    %p31 = scmp.ne.s32.totalorder %s23, %s26
    %p32 = scmp.eq.s32.totalorder %s13, 0
    %p33 = por %p31, %p32
    %p34 = scmp.ne.s32.totalorder %s23, %s26
    %p35 = scmp.eq.s32.totalorder %s18, 1
    %p36 = por %p34, %p35
    %p37 = scmp.ne.s32.totalorder %s26, %s27
    %p38 = scmp.eq.s32.totalorder %s18, 0
    %p39 = por %p37, %p38
    %p40 = scmp.ne.s32.totalorder %s26, %s27
    %p41 = scmp.eq.s32.totalorder %s19, 1
    %p42 = por %p40, %p41
    %p44 = scmp.ne.s32.totalorder %s27, %s43
    %p45 = scmp.eq.s32.totalorder %s19, 0
    %p46 = por %p44, %p45
    %s48 = sadd.s32 %s47, 1
    %p51 = scmp.eq.s32.totalorder %s13, 1
    %p52 = scmp.ne.s32.totalorder %s47, %s49
    %p53 = scmp.eq.s32.totalorder %s13, 0
    %p54 = por %p52, %p53
    %p55 = scmp.ne.s32.totalorder %s47, %s49
    %p56 = scmp.eq.s32.totalorder %s18, 1
    %p57 = por %p55, %p56
    %p58 = scmp.ne.s32.totalorder %s49, %s50
    %p59 = scmp.eq.s32.totalorder %s18, 0
    %p60 = por %p58, %p59
    %p61 = scmp.ne.s32.totalorder %s49, %s50
    %p62 = scmp.eq.s32.totalorder %s19, 1
    %p63 = por %p61, %p62
    %p65 = scmp.ne.s32.totalorder %s50, %s64
    %p66 = scmp.eq.s32.totalorder %s19, 0
    %p67 = por %p65, %p66
    %s69 = sadd.s32 %s68, 1
    %p72 = scmp.eq.s32.totalorder %s13, 1
    %p73 = scmp.ne.s32.totalorder %s68, %s70
    %p74 = scmp.eq.s32.totalorder %s13, 0
    %p75 = por %p73, %p74
    %p76 = scmp.ne.s32.totalorder %s68, %s70
    %p77 = scmp.eq.s32.totalorder %s18, 1
    %p78 = por %p76, %p77
    %p79 = scmp.ne.s32.totalorder %s70, %s71
    %p80 = scmp.eq.s32.totalorder %s18, 0
    %p81 = por %p79, %p80
    %p82 = scmp.ne.s32.totalorder %s70, %s71
    %p83 = scmp.eq.s32.totalorder %s19, 1
    %p84 = por %p82, %p83
    %p86 = scmp.ne.s32.totalorder %s71, %s85
    %p87 = scmp.eq.s32.totalorder %s19, 0
    %p88 = por %p86, %p87
    %s90 = sadd.s32 %s89, 1
    %p93 = scmp.eq.s32.totalorder %s13, 1
    %p94 = scmp.ne.s32.totalorder %s89, %s91
    %p95 = scmp.eq.s32.totalorder %s13, 0
    %p96 = por %p94, %p95
    %p97 = scmp.ne.s32.totalorder %s89, %s91
    %p98 = scmp.eq.s32.totalorder %s18, 1
    %p99 = por %p97, %p98
    %p100 = scmp.ne.s32.totalorder %s91, %s92
    %p101 = scmp.eq.s32.totalorder %s18, 0
    %p102 = por %p100, %p101
    %p103 = scmp.ne.s32.totalorder %s91, %s92
    %p104 = scmp.eq.s32.totalorder %s19, 1
    %p105 = por %p103, %p104
    %p107 = scmp.ne.s32.totalorder %s92, %s106
    %p108 = scmp.eq.s32.totalorder %s19, 0
    %p109 = por %p107, %p108
    %s111 = sadd.s32 %s110, 1
    %p114 = scmp.eq.s32.totalorder %s13, 1
    %p115 = scmp.ne.s32.totalorder %s110, %s112
    %p116 = scmp.eq.s32.totalorder %s13, 0
    %p117 = por %p115, %p116
    %p118 = scmp.ne.s32.totalorder %s110, %s112
    %p119 = scmp.eq.s32.totalorder %s18, 1
    %p120 = por %p118, %p119
    %p121 = scmp.ne.s32.totalorder %s112, %s113
    %p122 = scmp.eq.s32.totalorder %s18, 0
    %p123 = por %p121, %p122
    %p124 = scmp.ne.s32.totalorder %s112, %s113
    %p125 = scmp.eq.s32.totalorder %s19, 1
    %p126 = por %p124, %p125
    %p128 = scmp.ne.s32.totalorder %s113, %s127
    %p129 = scmp.eq.s32.totalorder %s19, 0
    %p130 = por %p128, %p129
    %s132 = sadd.s32 %s131, 1
    %p135 = scmp.eq.s32.totalorder %s13, 1
    %p136 = scmp.ne.s32.totalorder %s131, %s133
    %p137 = scmp.eq.s32.totalorder %s13, 0
    %p138 = por %p136, %p137
    %p139 = scmp.ne.s32.totalorder %s131, %s133
    %p140 = scmp.eq.s32.totalorder %s18, 1
    %p141 = por %p139, %p140
    %p142 = scmp.ne.s32.totalorder %s133, %s134
    %p143 = scmp.eq.s32.totalorder %s18, 0
    %p144 = por %p142, %p143
    %p145 = scmp.ne.s32.totalorder %s133, %s134
    %p146 = scmp.eq.s32.totalorder %s19, 1
    %p147 = por %p145, %p146
    %p149 = scmp.ne.s32.totalorder %s134, %s148
    %p150 = scmp.eq.s32.totalorder %s19, 0
    %p151 = por %p149, %p150
    %s153 = sadd.s32 %s152, 1
    %p156 = scmp.eq.s32.totalorder %s13, 1
    %p157 = scmp.ne.s32.totalorder %s152, %s154
    %p158 = scmp.eq.s32.totalorder %s13, 0
    %p159 = por %p157, %p158
    %p160 = scmp.ne.s32.totalorder %s152, %s154
    %p161 = scmp.eq.s32.totalorder %s18, 1
    %p162 = por %p160, %p161
    %p163 = scmp.ne.s32.totalorder %s154, %s155
    %p164 = scmp.eq.s32.totalorder %s18, 0
    %p165 = por %p163, %p164
    %p166 = scmp.ne.s32.totalorder %s154, %s155
    %p167 = scmp.eq.s32.totalorder %s19, 1
    %p168 = por %p166, %p167
    %p170 = scmp.ne.s32.totalorder %s155, %s169
    %p171 = scmp.eq.s32.totalorder %s19, 0
    %p172 = por %p170, %p171
    %s173 = ssub.s32 %s13, %s20
    %p174 = scmp.eq.s32.totalorder %s173, 0
    %s176 = sadd.s32 %s175, 1
    %s177 = scalar_select %p174, %s175, %s176
    %p180 = pneg %p174
    %p181 = scmp.eq.s32.totalorder %s13, 1
    %p182 = por %p180, %p181
    %p183 = scmp.ne.s32.totalorder %s175, %s178
    %p184 = scmp.eq.s32.totalorder %s13, 0
    %p185 = por %p183, %p184
    %p186 = scmp.ne.s32.totalorder %s175, %s178
    %p187 = scmp.eq.s32.totalorder %s18, 1
    %p188 = por %p186, %p187
    %p189 = scmp.ne.s32.totalorder %s178, %s179
    %p190 = scmp.eq.s32.totalorder %s18, 0
    %p191 = por %p189, %p190
    %p192 = scmp.ne.s32.totalorder %s178, %s179
    %p193 = scmp.eq.s32.totalorder %s19, 1
    %p194 = por %p192, %p193
    %p196 = scmp.ne.s32.totalorder %s179, %s195
    %p197 = scmp.eq.s32.totalorder %s19, 0
    %p198 = por %p196, %p197
    %p199 = scmp.le.s32.totalorder 1, %s13
    %p200 = scmp.lt.s32.totalorder %s13, 3
    %p201 = pnand %p199, %p200
    %p202 = pneg %p201
    // Predicated region
    $region9: #{tpu_custom_call.1} parent=5 // pred_check
      _
    $region10: #{tpu_custom_call.1} parent=5 // pred_check_branch
      %204 = sbr.rel (%p201) target = $region12
    $region11: #{tpu_custom_call.1} parent=5 // pred_region
      %s205 = ssub.s32 %s13, 1
      // Predicated region
      $region13: #{tpu_custom_call.1} parent=11 // pred_check
        %p206 = pneg %p60
      $region14: #{tpu_custom_call.1} parent=11 // pred_check_branch
        %208 = sbr.rel (%p206) target = $region16
      $region15: #{tpu_custom_call.1} parent=11 // pred_region
        _
      $region16: #{tpu_custom_call.1} parent=11 // pred_fallthru
        _
      // Predicated region
      $region17: #{tpu_custom_call.1} parent=11 // pred_check
        %p209 = pneg %p81
      $region18: #{tpu_custom_call.1} parent=11 // pred_check_branch
        %211 = sbr.rel (%p209) target = $region20
      $region19: #{tpu_custom_call.1} parent=11 // pred_region
        _
      $region20: #{tpu_custom_call.1} parent=11 // pred_fallthru
        _
      // Predicated region
      $region21: #{tpu_custom_call.1} parent=11 // pred_check
        %p212 = pneg %p102
      $region22: #{tpu_custom_call.1} parent=11 // pred_check_branch
        %214 = sbr.rel (%p212) target = $region24
      $region23: #{tpu_custom_call.1} parent=11 // pred_region
        _
      $region24: #{tpu_custom_call.1} parent=11 // pred_fallthru
        _
      // Predicated region
      $region25: #{tpu_custom_call.1} parent=11 // pred_check
        %p215 = pneg %p123
      $region26: #{tpu_custom_call.1} parent=11 // pred_check_branch
        %217 = sbr.rel (%p215) target = $region28
      $region27: #{tpu_custom_call.1} parent=11 // pred_region
        _
      $region28: #{tpu_custom_call.1} parent=11 // pred_fallthru
        _
      // Predicated region
      $region29: #{tpu_custom_call.1} parent=11 // pred_check
        %p218 = pneg %p144
      $region30: #{tpu_custom_call.1} parent=11 // pred_check_branch
        %220 = sbr.rel (%p218) target = $region32
      $region31: #{tpu_custom_call.1} parent=11 // pred_region
        _
      $region32: #{tpu_custom_call.1} parent=11 // pred_fallthru
        _
      // Predicated region
      $region33: #{tpu_custom_call.1} parent=11 // pred_check
        %p221 = pneg %p165
      $region34: #{tpu_custom_call.1} parent=11 // pred_check_branch
        %223 = sbr.rel (%p221) target = $region36
      $region35: #{tpu_custom_call.1} parent=11 // pred_region
        _
      $region36: #{tpu_custom_call.1} parent=11 // pred_fallthru
        _
    $region12: #{tpu_custom_call.1} parent=5 // pred_fallthru
      _
    %p224 = scmp.lt.s32.totalorder %s13, 2
    // Predicated region
    $region37: #{tpu_custom_call.1} parent=5 // pred_check
      %p225 = pneg %p224
    $region38: #{tpu_custom_call.1} parent=5 // pred_check_branch
      %227 = sbr.rel (%p225) target = $region40
    $region39: #{tpu_custom_call.1} parent=5 // pred_region
      // Predicated region
      $region41: #{tpu_custom_call.1} parent=39 // pred_check
        %p228 = pneg %p33
      $region42: #{tpu_custom_call.1} parent=39 // pred_check_branch
        %230 = sbr.rel (%p228) target = $region44
      $region43: #{tpu_custom_call.1} parent=39 // pred_region
        %p231 = scmp.lt.s32.totalorder %s13, 1
        %s232 = scalar_select %p231, %s13, 1
        %s233 = smul.addr %s232, 32
        %s234 = smul.addr %s233, 4
        %s235 = scalar_lea.vmem %s0, %s234
      $region44: #{tpu_custom_call.1} parent=39 // pred_fallthru
        _
    $region40: #{tpu_custom_call.1} parent=5 // pred_fallthru
      _
    %p236 = scmp.le.s32.totalorder 1, %s13
    %p237 = scmp.lt.s32.totalorder %s13, 3
    %p238 = pnand %p236, %p237
    %p239 = pneg %p238
    // Predicated region
    $region45: #{tpu_custom_call.1} parent=5 // pred_check
      _
    $region46: #{tpu_custom_call.1} parent=5 // pred_check_branch
      %241 = sbr.rel (%p238) target = $region48
    $region47: #{tpu_custom_call.1} parent=5 // pred_region
      %s242 = ssub.s32 %s13, 1
      %p243 = scmp.lt.s32.totalorder %s18, 1
      %s244 = scalar_select %p243, %s18, 1
      %s245 = smul.addr %s244, 32
      %s246 = smul.addr %s245, 4
      %s247 = scalar_lea.vmem %s0, %s246
      %p248 = pneg %p39
      %p249 = pneg %p36
      %p250 = pneg %p60
      %p251 = pneg %p57
      %p252 = pneg %p81
      %p253 = pneg %p78
      %p254 = pneg %p102
      %p255 = pneg %p99
      %p256 = pneg %p123
      %p257 = pneg %p120
      %p258 = pneg %p144
      %p259 = pneg %p141
      %p260 = pneg %p165
      %p261 = pneg %p162
      %p262 = pneg %p191
      %p263 = pneg %p188
      %p264 = scmp.lt.s32.totalorder %s18, 1
      %s265 = scalar_select %p264, %s18, 1
      %s266 = smul.addr %s265, 8
      %s267 = smul.addr %s266, 8
      %s268 = scalar_lea.vmem %s7, %s267
      %p269 = scmp.lt.s32.totalorder %s18, 1
      %s270 = scalar_select %p269, %s18, 1
      %s271 = smul.addr %s270, 32
      %s272 = smul.addr %s271, 4
      %s273 = scalar_lea.vmem %s0, %s272
      %p274 = scmp.lt.s32.totalorder %s18, 1
      %s275 = scalar_select %p274, %s18, 1
      %s276 = smul.addr %s275, 8
      %s277 = smul.addr %s276, 8
      %s278 = scalar_lea.vmem %s7, %s277
      %v280 = vld [vmem:[%s273] sm:$0xf]
      %v281 = vld [vmem:[%s273 + $0x4] sm:$0xf]
      %v282 = vld [vmem:[%s273 + $0x8] sm:$0xf]
      %v283 = vld [vmem:[%s273 + $0xc] sm:$0xf]
      %v284 = vld [vmem:[%s273 + $0x10] sm:$0xf]
      %v285 = vld [vmem:[%s273 + $0x14] sm:$0xf]
      %v286 = vld [vmem:[%s273 + $0x18] sm:$0xf]
      %v287 = vld [vmem:[%s273 + $0x1c] sm:$0xf]
      %v288 = vld [vmem:[%s273 + $0x20] sm:$0xf]
      %v289 = vld [vmem:[%s273 + $0x24] sm:$0xf]
      %v290 = vld [vmem:[%s273 + $0x28] sm:$0xf]
      %v291 = vld [vmem:[%s273 + $0x2c] sm:$0xf]
      %v292 = vld [vmem:[%s273 + $0x30] sm:$0xf]
      %v293 = vld [vmem:[%s273 + $0x34] sm:$0xf]
      %v294 = vld [vmem:[%s273 + $0x38] sm:$0xf]
      %v295 = vld [vmem:[%s273 + $0x3c] sm:$0xf]
      %v296 = vld [vmem:[%s273 + $0x40] sm:$0xf]
      %v297 = vld [vmem:[%s273 + $0x44] sm:$0xf]
      %v298 = vld [vmem:[%s273 + $0x48] sm:$0xf]
      %v299 = vld [vmem:[%s273 + $0x4c] sm:$0xf]
      %v300 = vld [vmem:[%s273 + $0x50] sm:$0xf]
      %v301 = vld [vmem:[%s273 + $0x54] sm:$0xf]
      %v302 = vld [vmem:[%s273 + $0x58] sm:$0xf]
      %v303 = vld [vmem:[%s273 + $0x5c] sm:$0xf]
      %v304 = vld [vmem:[%s273 + $0x60] sm:$0xf]
      %v305 = vld [vmem:[%s273 + $0x64] sm:$0xf]
      %v306 = vld [vmem:[%s273 + $0x68] sm:$0xf]
      %v307 = vld [vmem:[%s273 + $0x6c] sm:$0xf]
      %v308 = vld [vmem:[%s273 + $0x70] sm:$0xf]
      %v309 = vld [vmem:[%s273 + $0x74] sm:$0xf]
      %v310 = vld [vmem:[%s273 + $0x78] sm:$0xf]
      %v311 = vld [vmem:[%s273 + $0x7c] sm:$0xf]
      %v312 = vmax.bf16 %v280, %v282
      %v313 = vmax.bf16 %v281, %v283
      %v314 = vmax.bf16 %v284, %v286
      %v315 = vmax.bf16 %v285, %v287
      %v316 = vmax.bf16 %v288, %v290
      %v317 = vmax.bf16 %v289, %v291
      %v318 = vmax.bf16 %v292, %v294
      %v319 = vmax.bf16 %v293, %v295
      %v320 = vmax.bf16 %v296, %v298
      %v321 = vmax.bf16 %v297, %v299
      %v322 = vmax.bf16 %v300, %v302
      %v323 = vmax.bf16 %v301, %v303
      %v324 = vmax.bf16 %v304, %v306
      %v325 = vmax.bf16 %v305, %v307
      %v326 = vmax.bf16 %v308, %v310
      %v327 = vmax.bf16 %v309, %v311
      %v345 = vunpack.c.l.s4 1966171168
      %v346 = vunpack.c.0.s8 %v345
      %v347 = vlaneseq
      %v348 = vshrl.u32 %v347, 7
      %v349 = vsub.s32 %v346, %v348
      %v350 = vrot.slane %v312, %v349
      %v351 = vcombine.high %v350, %v350
      %v353 = vunpack.c.l.s4 1966171168
      %v354 = vunpack.c.0.s8 %v353
      %v355 = vlaneseq
      %v356 = vshrl.u32 %v355, 7
      %v357 = vsub.s32 %v354, %v356
      %v358 = vrot.slane %v350, %v357
      %v360 = vunpack.c.l.s4 1966171168
      %v361 = vunpack.c.0.s8 %v360
      %v362 = vlaneseq
      %v363 = vshrl.u32 %v362, 7
      %v364 = vsub.s32 %v361, %v363
      %v365 = vrot.slane %v351, %v364
      %v366 = vcombine.high %v358, %v358
      %v367 = vcombine.high %v365, %v365
      %v369 = vunpack.c.l.s4 1966171168
      %v370 = vunpack.c.0.s8 %v369
      %v371 = vlaneseq
      %v372 = vshrl.u32 %v371, 7
      %v373 = vsub.s32 %v370, %v372
      %v374 = vrot.slane %v313, %v373
      %v375 = vcombine.high %v374, %v374
      %v377 = vunpack.c.l.s4 1966171168
      %v378 = vunpack.c.0.s8 %v377
      %v379 = vlaneseq
      %v380 = vshrl.u32 %v379, 7
      %v381 = vsub.s32 %v378, %v380
      %v382 = vrot.slane %v374, %v381
      %v384 = vunpack.c.l.s4 1966171168
      %v385 = vunpack.c.0.s8 %v384
      %v386 = vlaneseq
      %v387 = vshrl.u32 %v386, 7
      %v388 = vsub.s32 %v385, %v387
      %v389 = vrot.slane %v375, %v388
      %v390 = vcombine.high %v382, %v382
      %v391 = vcombine.high %v389, %v389
      %v393 = vunpack.c.l.s4 1966171168
      %v394 = vunpack.c.0.s8 %v393
      %v395 = vlaneseq
      %v396 = vshrl.u32 %v395, 7
      %v397 = vsub.s32 %v394, %v396
      %v398 = vrot.slane %v314, %v397
      %v399 = vcombine.high %v398, %v398
      %v401 = vunpack.c.l.s4 1966171168
      %v402 = vunpack.c.0.s8 %v401
      %v403 = vlaneseq
      %v404 = vshrl.u32 %v403, 7
      %v405 = vsub.s32 %v402, %v404
      %v406 = vrot.slane %v398, %v405
      %v408 = vunpack.c.l.s4 1966171168
      %v409 = vunpack.c.0.s8 %v408
      %v410 = vlaneseq
      %v411 = vshrl.u32 %v410, 7
      %v412 = vsub.s32 %v409, %v411
      %v413 = vrot.slane %v399, %v412
      %v414 = vcombine.high %v406, %v406
      %v415 = vcombine.high %v413, %v413
      %v417 = vunpack.c.l.s4 1966171168
      %v418 = vunpack.c.0.s8 %v417
      %v419 = vlaneseq
      %v420 = vshrl.u32 %v419, 7
      %v421 = vsub.s32 %v418, %v420
      %v422 = vrot.slane %v315, %v421
      %v423 = vcombine.high %v422, %v422
      %v425 = vunpack.c.l.s4 1966171168
      %v426 = vunpack.c.0.s8 %v425
      %v427 = vlaneseq
      %v428 = vshrl.u32 %v427, 7
      %v429 = vsub.s32 %v426, %v428
      %v430 = vrot.slane %v422, %v429
      %v432 = vunpack.c.l.s4 1966171168
      %v433 = vunpack.c.0.s8 %v432
      %v434 = vlaneseq
      %v435 = vshrl.u32 %v434, 7
      %v436 = vsub.s32 %v433, %v435
      %v437 = vrot.slane %v423, %v436
      %v438 = vcombine.high %v430, %v430
      %v439 = vcombine.high %v437, %v437
      %v441 = vunpack.c.l.s4 1966171168
      %v442 = vunpack.c.0.s8 %v441
      %v443 = vlaneseq
      %v444 = vshrl.u32 %v443, 7
      %v445 = vsub.s32 %v442, %v444
      %v446 = vrot.slane %v316, %v445
      %v447 = vcombine.high %v446, %v446
      %v449 = vunpack.c.l.s4 1966171168
      %v450 = vunpack.c.0.s8 %v449
      %v451 = vlaneseq
      %v452 = vshrl.u32 %v451, 7
      %v453 = vsub.s32 %v450, %v452
      %v454 = vrot.slane %v446, %v453
      %v456 = vunpack.c.l.s4 1966171168
      %v457 = vunpack.c.0.s8 %v456
      %v458 = vlaneseq
      %v459 = vshrl.u32 %v458, 7
      %v460 = vsub.s32 %v457, %v459
      %v461 = vrot.slane %v447, %v460
      %v462 = vcombine.high %v454, %v454
      %v463 = vcombine.high %v461, %v461
      %v465 = vunpack.c.l.s4 1966171168
      %v466 = vunpack.c.0.s8 %v465
      %v467 = vlaneseq
      %v468 = vshrl.u32 %v467, 7
      %v469 = vsub.s32 %v466, %v468
      %v470 = vrot.slane %v317, %v469
      %v471 = vcombine.high %v470, %v470
      %v473 = vunpack.c.l.s4 1966171168
      %v474 = vunpack.c.0.s8 %v473
      %v475 = vlaneseq
      %v476 = vshrl.u32 %v475, 7
      %v477 = vsub.s32 %v474, %v476
      %v478 = vrot.slane %v470, %v477
      %v480 = vunpack.c.l.s4 1966171168
      %v481 = vunpack.c.0.s8 %v480
      %v482 = vlaneseq
      %v483 = vshrl.u32 %v482, 7
      %v484 = vsub.s32 %v481, %v483
      %v485 = vrot.slane %v471, %v484
      %v486 = vcombine.high %v478, %v478
      %v487 = vcombine.high %v485, %v485
      %v489 = vunpack.c.l.s4 1966171168
      %v490 = vunpack.c.0.s8 %v489
      %v491 = vlaneseq
      %v492 = vshrl.u32 %v491, 7
      %v493 = vsub.s32 %v490, %v492
      %v494 = vrot.slane %v318, %v493
      %v495 = vcombine.high %v494, %v494
      %v497 = vunpack.c.l.s4 1966171168
      %v498 = vunpack.c.0.s8 %v497
      %v499 = vlaneseq
      %v500 = vshrl.u32 %v499, 7
      %v501 = vsub.s32 %v498, %v500
      %v502 = vrot.slane %v494, %v501
      %v504 = vunpack.c.l.s4 1966171168
      %v505 = vunpack.c.0.s8 %v504
      %v506 = vlaneseq
      %v507 = vshrl.u32 %v506, 7
      %v508 = vsub.s32 %v505, %v507
      %v509 = vrot.slane %v495, %v508
      %v510 = vcombine.high %v502, %v502
      %v511 = vcombine.high %v509, %v509
      %v513 = vunpack.c.l.s4 1966171168
      %v514 = vunpack.c.0.s8 %v513
      %v515 = vlaneseq
      %v516 = vshrl.u32 %v515, 7
      %v517 = vsub.s32 %v514, %v516
      %v518 = vrot.slane %v319, %v517
      %v519 = vcombine.high %v518, %v518
      %v521 = vunpack.c.l.s4 1966171168
      %v522 = vunpack.c.0.s8 %v521
      %v523 = vlaneseq
      %v524 = vshrl.u32 %v523, 7
      %v525 = vsub.s32 %v522, %v524
      %v526 = vrot.slane %v518, %v525
      %v528 = vunpack.c.l.s4 1966171168
      %v529 = vunpack.c.0.s8 %v528
      %v530 = vlaneseq
      %v531 = vshrl.u32 %v530, 7
      %v532 = vsub.s32 %v529, %v531
      %v533 = vrot.slane %v519, %v532
      %v534 = vcombine.high %v526, %v526
      %v535 = vcombine.high %v533, %v533
      %v537 = vunpack.c.l.s4 1966171168
      %v538 = vunpack.c.0.s8 %v537
      %v539 = vlaneseq
      %v540 = vshrl.u32 %v539, 7
      %v541 = vsub.s32 %v538, %v540
      %v542 = vrot.slane %v320, %v541
      %v543 = vcombine.high %v542, %v542
      %v545 = vunpack.c.l.s4 1966171168
      %v546 = vunpack.c.0.s8 %v545
      %v547 = vlaneseq
      %v548 = vshrl.u32 %v547, 7
      %v549 = vsub.s32 %v546, %v548
      %v550 = vrot.slane %v542, %v549
      %v552 = vunpack.c.l.s4 1966171168
      %v553 = vunpack.c.0.s8 %v552
      %v554 = vlaneseq
      %v555 = vshrl.u32 %v554, 7
      %v556 = vsub.s32 %v553, %v555
      %v557 = vrot.slane %v543, %v556
      %v558 = vcombine.high %v550, %v550
      %v559 = vcombine.high %v557, %v557
      %v561 = vunpack.c.l.s4 1966171168
      %v562 = vunpack.c.0.s8 %v561
      %v563 = vlaneseq
      %v564 = vshrl.u32 %v563, 7
      %v565 = vsub.s32 %v562, %v564
      %v566 = vrot.slane %v321, %v565
      %v567 = vcombine.high %v566, %v566
      %v569 = vunpack.c.l.s4 1966171168
      %v570 = vunpack.c.0.s8 %v569
      %v571 = vlaneseq
      %v572 = vshrl.u32 %v571, 7
      %v573 = vsub.s32 %v570, %v572
      %v574 = vrot.slane %v566, %v573
      %v576 = vunpack.c.l.s4 1966171168
      %v577 = vunpack.c.0.s8 %v576
      %v578 = vlaneseq
      %v579 = vshrl.u32 %v578, 7
      %v580 = vsub.s32 %v577, %v579
      %v581 = vrot.slane %v567, %v580
      %v582 = vcombine.high %v574, %v574
      %v583 = vcombine.high %v581, %v581
      %v585 = vunpack.c.l.s4 1966171168
      %v586 = vunpack.c.0.s8 %v585
      %v587 = vlaneseq
      %v588 = vshrl.u32 %v587, 7
      %v589 = vsub.s32 %v586, %v588
      %v590 = vrot.slane %v322, %v589
      %v591 = vcombine.high %v590, %v590
      %v593 = vunpack.c.l.s4 1966171168
      %v594 = vunpack.c.0.s8 %v593
      %v595 = vlaneseq
      %v596 = vshrl.u32 %v595, 7
      %v597 = vsub.s32 %v594, %v596
      %v598 = vrot.slane %v590, %v597
      %v600 = vunpack.c.l.s4 1966171168
      %v601 = vunpack.c.0.s8 %v600
      %v602 = vlaneseq
      %v603 = vshrl.u32 %v602, 7
      %v604 = vsub.s32 %v601, %v603
      %v605 = vrot.slane %v591, %v604
      %v606 = vcombine.high %v598, %v598
      %v607 = vcombine.high %v605, %v605
      %v609 = vunpack.c.l.s4 1966171168
      %v610 = vunpack.c.0.s8 %v609
      %v611 = vlaneseq
      %v612 = vshrl.u32 %v611, 7
      %v613 = vsub.s32 %v610, %v612
      %v614 = vrot.slane %v323, %v613
      %v615 = vcombine.high %v614, %v614
      %v617 = vunpack.c.l.s4 1966171168
      %v618 = vunpack.c.0.s8 %v617
      %v619 = vlaneseq
      %v620 = vshrl.u32 %v619, 7
      %v621 = vsub.s32 %v618, %v620
      %v622 = vrot.slane %v614, %v621
      %v624 = vunpack.c.l.s4 1966171168
      %v625 = vunpack.c.0.s8 %v624
      %v626 = vlaneseq
      %v627 = vshrl.u32 %v626, 7
      %v628 = vsub.s32 %v625, %v627
      %v629 = vrot.slane %v615, %v628
      %v630 = vcombine.high %v622, %v622
      %v631 = vcombine.high %v629, %v629
      %v633 = vunpack.c.l.s4 1966171168
      %v634 = vunpack.c.0.s8 %v633
      %v635 = vlaneseq
      %v636 = vshrl.u32 %v635, 7
      %v637 = vsub.s32 %v634, %v636
      %v638 = vrot.slane %v324, %v637
      %v639 = vcombine.high %v638, %v638
      %v641 = vunpack.c.l.s4 1966171168
      %v642 = vunpack.c.0.s8 %v641
      %v643 = vlaneseq
      %v644 = vshrl.u32 %v643, 7
      %v645 = vsub.s32 %v642, %v644
      %v646 = vrot.slane %v638, %v645
      %v648 = vunpack.c.l.s4 1966171168
      %v649 = vunpack.c.0.s8 %v648
      %v650 = vlaneseq
      %v651 = vshrl.u32 %v650, 7
      %v652 = vsub.s32 %v649, %v651
      %v653 = vrot.slane %v639, %v652
      %v654 = vcombine.high %v646, %v646
      %v655 = vcombine.high %v653, %v653
      %v657 = vunpack.c.l.s4 1966171168
      %v658 = vunpack.c.0.s8 %v657
      %v659 = vlaneseq
      %v660 = vshrl.u32 %v659, 7
      %v661 = vsub.s32 %v658, %v660
      %v662 = vrot.slane %v325, %v661
      %v663 = vcombine.high %v662, %v662
      %v665 = vunpack.c.l.s4 1966171168
      %v666 = vunpack.c.0.s8 %v665
      %v667 = vlaneseq
      %v668 = vshrl.u32 %v667, 7
      %v669 = vsub.s32 %v666, %v668
      %v670 = vrot.slane %v662, %v669
      %v672 = vunpack.c.l.s4 1966171168
      %v673 = vunpack.c.0.s8 %v672
      %v674 = vlaneseq
      %v675 = vshrl.u32 %v674, 7
      %v676 = vsub.s32 %v673, %v675
      %v677 = vrot.slane %v663, %v676
      %v678 = vcombine.high %v670, %v670
      %v679 = vcombine.high %v677, %v677
      %v681 = vunpack.c.l.s4 1966171168
      %v682 = vunpack.c.0.s8 %v681
      %v683 = vlaneseq
      %v684 = vshrl.u32 %v683, 7
      %v685 = vsub.s32 %v682, %v684
      %v686 = vrot.slane %v326, %v685
      %v687 = vcombine.high %v686, %v686
      %v689 = vunpack.c.l.s4 1966171168
      %v690 = vunpack.c.0.s8 %v689
      %v691 = vlaneseq
      %v692 = vshrl.u32 %v691, 7
      %v693 = vsub.s32 %v690, %v692
      %v694 = vrot.slane %v686, %v693
      %v696 = vunpack.c.l.s4 1966171168
      %v697 = vunpack.c.0.s8 %v696
      %v698 = vlaneseq
      %v699 = vshrl.u32 %v698, 7
      %v700 = vsub.s32 %v697, %v699
      %v701 = vrot.slane %v687, %v700
      %v702 = vcombine.high %v694, %v694
      %v703 = vcombine.high %v701, %v701
      %v705 = vunpack.c.l.s4 1966171168
      %v706 = vunpack.c.0.s8 %v705
      %v707 = vlaneseq
      %v708 = vshrl.u32 %v707, 7
      %v709 = vsub.s32 %v706, %v708
      %v710 = vrot.slane %v327, %v709
      %v711 = vcombine.high %v710, %v710
      %v713 = vunpack.c.l.s4 1966171168
      %v714 = vunpack.c.0.s8 %v713
      %v715 = vlaneseq
      %v716 = vshrl.u32 %v715, 7
      %v717 = vsub.s32 %v714, %v716
      %v718 = vrot.slane %v710, %v717
      %v720 = vunpack.c.l.s4 1966171168
      %v721 = vunpack.c.0.s8 %v720
      %v722 = vlaneseq
      %v723 = vshrl.u32 %v722, 7
      %v724 = vsub.s32 %v721, %v723
      %v725 = vrot.slane %v711, %v724
      %v726 = vcombine.high %v718, %v718
      %v727 = vcombine.high %v725, %v725
      %v793 = vshrl.u32 %v358, 16
      %v795 = vrot.slane %v793, 7
      %v796 = vrot.slane %v795, 1
      %v798 = vshrl.u32 %v365, 16
      %v800 = vrot.slane %v798, 7
      %v801 = vrot.slane %v800, 1
      %v803 = vshrl.u32 %v366, 16
      %v805 = vrot.slane %v803, 7
      %v806 = vrot.slane %v805, 1
      %v808 = vshrl.u32 %v367, 16
      %v810 = vrot.slane %v808, 7
      %v811 = vrot.slane %v810, 1
      %v813 = vshrl.u32 %v382, 16
      %v815 = vrot.slane %v813, 7
      %v816 = vrot.slane %v815, 1
      %v818 = vshrl.u32 %v389, 16
      %v820 = vrot.slane %v818, 7
      %v821 = vrot.slane %v820, 1
      %v823 = vshrl.u32 %v390, 16
      %v825 = vrot.slane %v823, 7
      %v826 = vrot.slane %v825, 1
      %v828 = vshrl.u32 %v391, 16
      %v830 = vrot.slane %v828, 7
      %v831 = vrot.slane %v830, 1
      %v833 = vshrl.u32 %v406, 16
      %v835 = vrot.slane %v833, 7
      %v836 = vrot.slane %v835, 1
      %v838 = vshrl.u32 %v413, 16
      %v840 = vrot.slane %v838, 7
      %v841 = vrot.slane %v840, 1
      %v843 = vshrl.u32 %v414, 16
      %v845 = vrot.slane %v843, 7
      %v846 = vrot.slane %v845, 1
      %v848 = vshrl.u32 %v415, 16
      %v850 = vrot.slane %v848, 7
      %v851 = vrot.slane %v850, 1
      %v853 = vshrl.u32 %v430, 16
      %v855 = vrot.slane %v853, 7
      %v856 = vrot.slane %v855, 1
      %v858 = vshrl.u32 %v437, 16
      %v860 = vrot.slane %v858, 7
      %v861 = vrot.slane %v860, 1
      %v863 = vshrl.u32 %v438, 16
      %v865 = vrot.slane %v863, 7
      %v866 = vrot.slane %v865, 1
      %v868 = vshrl.u32 %v439, 16
      %v870 = vrot.slane %v868, 7
      %v871 = vrot.slane %v870, 1
      %v873 = vshrl.u32 %v454, 16
      %v875 = vrot.slane %v873, 7
      %v876 = vrot.slane %v875, 1
      %v878 = vshrl.u32 %v461, 16
      %v880 = vrot.slane %v878, 7
      %v881 = vrot.slane %v880, 1
      %v883 = vshrl.u32 %v462, 16
      %v885 = vrot.slane %v883, 7
      %v886 = vrot.slane %v885, 1
      %v888 = vshrl.u32 %v463, 16
      %v890 = vrot.slane %v888, 7
      %v891 = vrot.slane %v890, 1
      %v893 = vshrl.u32 %v478, 16
      %v895 = vrot.slane %v893, 7
      %v896 = vrot.slane %v895, 1
      %v898 = vshrl.u32 %v485, 16
      %v900 = vrot.slane %v898, 7
      %v901 = vrot.slane %v900, 1
      %v903 = vshrl.u32 %v486, 16
      %v905 = vrot.slane %v903, 7
      %v906 = vrot.slane %v905, 1
      %v908 = vshrl.u32 %v487, 16
      %v910 = vrot.slane %v908, 7
      %v911 = vrot.slane %v910, 1
      %v913 = vshrl.u32 %v502, 16
      %v915 = vrot.slane %v913, 7
      %v916 = vrot.slane %v915, 1
      %v918 = vshrl.u32 %v509, 16
      %v920 = vrot.slane %v918, 7
      %v921 = vrot.slane %v920, 1
      %v923 = vshrl.u32 %v510, 16
      %v925 = vrot.slane %v923, 7
      %v926 = vrot.slane %v925, 1
      %v928 = vshrl.u32 %v511, 16
      %v930 = vrot.slane %v928, 7
      %v931 = vrot.slane %v930, 1
      %v933 = vshrl.u32 %v526, 16
      %v935 = vrot.slane %v933, 7
      %v936 = vrot.slane %v935, 1
      %v938 = vshrl.u32 %v533, 16
      %v940 = vrot.slane %v938, 7
      %v941 = vrot.slane %v940, 1
      %v943 = vshrl.u32 %v534, 16
      %v945 = vrot.slane %v943, 7
      %v946 = vrot.slane %v945, 1
      %v948 = vshrl.u32 %v535, 16
      %v950 = vrot.slane %v948, 7
      %v951 = vrot.slane %v950, 1
      %v953 = vshrl.u32 %v550, 16
      %v955 = vrot.slane %v953, 7
      %v956 = vrot.slane %v955, 1
      %v958 = vshrl.u32 %v557, 16
      %v960 = vrot.slane %v958, 7
      %v961 = vrot.slane %v960, 1
      %v963 = vshrl.u32 %v558, 16
      %v965 = vrot.slane %v963, 7
      %v966 = vrot.slane %v965, 1
      %v968 = vshrl.u32 %v559, 16
      %v970 = vrot.slane %v968, 7
      %v971 = vrot.slane %v970, 1
      %v973 = vshrl.u32 %v574, 16
      %v975 = vrot.slane %v973, 7
      %v976 = vrot.slane %v975, 1
      %v978 = vshrl.u32 %v581, 16
      %v980 = vrot.slane %v978, 7
      %v981 = vrot.slane %v980, 1
      %v983 = vshrl.u32 %v582, 16
      %v985 = vrot.slane %v983, 7
      %v986 = vrot.slane %v985, 1
      %v988 = vshrl.u32 %v583, 16
      %v990 = vrot.slane %v988, 7
      %v991 = vrot.slane %v990, 1
      %v993 = vshrl.u32 %v598, 16
      %v995 = vrot.slane %v993, 7
      %v996 = vrot.slane %v995, 1
      %v998 = vshrl.u32 %v605, 16
      %v1000 = vrot.slane %v998, 7
      %v1001 = vrot.slane %v1000, 1
      %v1003 = vshrl.u32 %v606, 16
      %v1005 = vrot.slane %v1003, 7
      %v1006 = vrot.slane %v1005, 1
      %v1008 = vshrl.u32 %v607, 16
      %v1010 = vrot.slane %v1008, 7
      %v1011 = vrot.slane %v1010, 1
      %v1013 = vshrl.u32 %v622, 16
      %v1015 = vrot.slane %v1013, 7
      %v1016 = vrot.slane %v1015, 1
      %v1018 = vshrl.u32 %v629, 16
      %v1020 = vrot.slane %v1018, 7
      %v1021 = vrot.slane %v1020, 1
      %v1023 = vshrl.u32 %v630, 16
      %v1025 = vrot.slane %v1023, 7
      %v1026 = vrot.slane %v1025, 1
      %v1028 = vshrl.u32 %v631, 16
      %v1030 = vrot.slane %v1028, 7
      %v1031 = vrot.slane %v1030, 1
      %v1033 = vshrl.u32 %v646, 16
      %v1035 = vrot.slane %v1033, 7
      %v1036 = vrot.slane %v1035, 1
      %v1038 = vshrl.u32 %v653, 16
      %v1040 = vrot.slane %v1038, 7
      %v1041 = vrot.slane %v1040, 1
      %v1043 = vshrl.u32 %v654, 16
      %v1045 = vrot.slane %v1043, 7
      %v1046 = vrot.slane %v1045, 1
      %v1048 = vshrl.u32 %v655, 16
      %v1050 = vrot.slane %v1048, 7
      %v1051 = vrot.slane %v1050, 1
      %v1053 = vshrl.u32 %v670, 16
      %v1055 = vrot.slane %v1053, 7
      %v1056 = vrot.slane %v1055, 1
      %v1058 = vshrl.u32 %v677, 16
      %v1060 = vrot.slane %v1058, 7
      %v1061 = vrot.slane %v1060, 1
      %v1063 = vshrl.u32 %v678, 16
      %v1065 = vrot.slane %v1063, 7
      %v1066 = vrot.slane %v1065, 1
      %v1068 = vshrl.u32 %v679, 16
      %v1070 = vrot.slane %v1068, 7
      %v1071 = vrot.slane %v1070, 1
      %v1073 = vshrl.u32 %v694, 16
      %v1075 = vrot.slane %v1073, 7
      %v1076 = vrot.slane %v1075, 1
      %v1078 = vshrl.u32 %v701, 16
      %v1080 = vrot.slane %v1078, 7
      %v1081 = vrot.slane %v1080, 1
      %v1083 = vshrl.u32 %v702, 16
      %v1085 = vrot.slane %v1083, 7
      %v1086 = vrot.slane %v1085, 1
      %v1088 = vshrl.u32 %v703, 16
      %v1090 = vrot.slane %v1088, 7
      %v1091 = vrot.slane %v1090, 1
      %v1093 = vshrl.u32 %v718, 16
      %v1095 = vrot.slane %v1093, 7
      %v1096 = vrot.slane %v1095, 1
      %v1098 = vshrl.u32 %v725, 16
      %v1100 = vrot.slane %v1098, 7
      %v1101 = vrot.slane %v1100, 1
      %v1103 = vshrl.u32 %v726, 16
      %v1105 = vrot.slane %v1103, 7
      %v1106 = vrot.slane %v1105, 1
      %v1108 = vshrl.u32 %v727, 16
      %v1110 = vrot.slane %v1108, 7
      %v1111 = vrot.slane %v1110, 1
      %v1176 = vmax.bf16 %v358, %v796
      %v1177 = vmax.bf16 %v365, %v801
      %v1178 = vmax.bf16 %v366, %v806
      %v1179 = vmax.bf16 %v367, %v811
      %v1180 = vmax.bf16 %v382, %v816
      %v1181 = vmax.bf16 %v389, %v821
      %v1182 = vmax.bf16 %v390, %v826
      %v1183 = vmax.bf16 %v391, %v831
      %v1184 = vmax.bf16 %v406, %v836
      %v1185 = vmax.bf16 %v413, %v841
      %v1186 = vmax.bf16 %v414, %v846
      %v1187 = vmax.bf16 %v415, %v851
      %v1188 = vmax.bf16 %v430, %v856
      %v1189 = vmax.bf16 %v437, %v861
      %v1190 = vmax.bf16 %v438, %v866
      %v1191 = vmax.bf16 %v439, %v871
      %v1192 = vmax.bf16 %v454, %v876
      %v1193 = vmax.bf16 %v461, %v881
      %v1194 = vmax.bf16 %v462, %v886
      %v1195 = vmax.bf16 %v463, %v891
      %v1196 = vmax.bf16 %v478, %v896
      %v1197 = vmax.bf16 %v485, %v901
      %v1198 = vmax.bf16 %v486, %v906
      %v1199 = vmax.bf16 %v487, %v911
      %v1200 = vmax.bf16 %v502, %v916
      %v1201 = vmax.bf16 %v509, %v921
      %v1202 = vmax.bf16 %v510, %v926
      %v1203 = vmax.bf16 %v511, %v931
      %v1204 = vmax.bf16 %v526, %v936
      %v1205 = vmax.bf16 %v533, %v941
      %v1206 = vmax.bf16 %v534, %v946
      %v1207 = vmax.bf16 %v535, %v951
      %v1208 = vmax.bf16 %v550, %v956
      %v1209 = vmax.bf16 %v557, %v961
      %v1210 = vmax.bf16 %v558, %v966
      %v1211 = vmax.bf16 %v559, %v971
      %v1212 = vmax.bf16 %v574, %v976
      %v1213 = vmax.bf16 %v581, %v981
      %v1214 = vmax.bf16 %v582, %v986
      %v1215 = vmax.bf16 %v583, %v991
      %v1216 = vmax.bf16 %v598, %v996
      %v1217 = vmax.bf16 %v605, %v1001
      %v1218 = vmax.bf16 %v606, %v1006
      %v1219 = vmax.bf16 %v607, %v1011
      %v1220 = vmax.bf16 %v622, %v1016
      %v1221 = vmax.bf16 %v629, %v1021
      %v1222 = vmax.bf16 %v630, %v1026
      %v1223 = vmax.bf16 %v631, %v1031
      %v1224 = vmax.bf16 %v646, %v1036
      %v1225 = vmax.bf16 %v653, %v1041
      %v1226 = vmax.bf16 %v654, %v1046
      %v1227 = vmax.bf16 %v655, %v1051
      %v1228 = vmax.bf16 %v670, %v1056
      %v1229 = vmax.bf16 %v677, %v1061
      %v1230 = vmax.bf16 %v678, %v1066
      %v1231 = vmax.bf16 %v679, %v1071
      %v1232 = vmax.bf16 %v694, %v1076
      %v1233 = vmax.bf16 %v701, %v1081
      %v1234 = vmax.bf16 %v702, %v1086
      %v1235 = vmax.bf16 %v703, %v1091
      %v1236 = vmax.bf16 %v718, %v1096
      %v1237 = vmax.bf16 %v725, %v1101
      %v1238 = vmax.bf16 %v726, %v1106
      %v1239 = vmax.bf16 %v727, %v1111
      %vm1240 = vcmask 27648
      %1241 = vst.msk [vmem:[#allocation2] sm:$0xf] %vm1240, 0
      %vm1242 = vcmask 24576
      %1243 = vst.msk [vmem:[#allocation2 + $0x4] sm:$0x1] %vm1242, 0
      %1244 = vst.msk [vmem:[#allocation2 + $0x8] sm:$0xf] %vm1240, 0
      %1245 = vst.msk [vmem:[#allocation2 + $0xc] sm:$0x1] %vm1242, 0
      %1246 = vst.msk [vmem:[#allocation2 + $0x10] sm:$0xf] %vm1240, 0
      %1247 = vst.msk [vmem:[#allocation2 + $0x14] sm:$0x1] %vm1242, 0
      %1248 = vst.msk [vmem:[#allocation2 + $0x18] sm:$0xf] %vm1240, 0
      %1249 = vst.msk [vmem:[#allocation2 + $0x1c] sm:$0x1] %vm1242, 0
      %1250 = vst.msk [vmem:[#allocation2 + $0x20] sm:$0xf] %vm1240, 0
      %1251 = vst.msk [vmem:[#allocation2 + $0x24] sm:$0x1] %vm1242, 0
      %1252 = vst.msk [vmem:[#allocation2 + $0x28] sm:$0xf] %vm1240, 0
      %1253 = vst.msk [vmem:[#allocation2 + $0x2c] sm:$0x1] %vm1242, 0
      %1254 = vst.msk [vmem:[#allocation2 + $0x30] sm:$0xf] %vm1240, 0
      %1255 = vst.msk [vmem:[#allocation2 + $0x34] sm:$0x1] %vm1242, 0
      %1256 = vst.msk [vmem:[#allocation2 + $0x38] sm:$0xf] %vm1240, 0
      %1257 = vst.msk [vmem:[#allocation2 + $0x3c] sm:$0x1] %vm1242, 0
      %1258 = vst.msk [vmem:[#allocation2 + $0x40] sm:$0xf] %vm1240, 0
      %1259 = vst.msk [vmem:[#allocation2 + $0x44] sm:$0x1] %vm1242, 0
      %1260 = vst.msk [vmem:[#allocation2 + $0x48] sm:$0xf] %vm1240, 0
      %1261 = vst.msk [vmem:[#allocation2 + $0x4c] sm:$0x1] %vm1242, 0
      %v1327 = vunpack.c.l.s4 1935823168
      %v1328 = vunpack.c.0.s8 %v1327
      %v1329 = vlaneseq
      %v1330 = vshrl.u32 %v1329, 7
      %v1331 = vsub.s32 %v1328, %v1330
      %v1332 = vrot.slane %v1176, %v1331
      %v1334 = vunpack.c.l.s4 1935823168
      %v1335 = vunpack.c.0.s8 %v1334
      %v1336 = vlaneseq
      %v1337 = vshrl.u32 %v1336, 7
      %v1338 = vsub.s32 %v1335, %v1337
      %v1339 = vrot.slane %v1332, %v1338
      %v1341 = vunpack.c.l.s4 1935823168
      %v1342 = vunpack.c.0.s8 %v1341
      %v1343 = vlaneseq
      %v1344 = vshrl.u32 %v1343, 7
      %v1345 = vsub.s32 %v1342, %v1344
      %v1346 = vrot.slane %v1177, %v1345
      %v1348 = vunpack.c.l.s4 1935823168
      %v1349 = vunpack.c.0.s8 %v1348
      %v1350 = vlaneseq
      %v1351 = vshrl.u32 %v1350, 7
      %v1352 = vsub.s32 %v1349, %v1351
      %v1353 = vrot.slane %v1346, %v1352
      %v1355 = vunpack.c.l.s4 1935823168
      %v1356 = vunpack.c.0.s8 %v1355
      %v1357 = vlaneseq
      %v1358 = vshrl.u32 %v1357, 7
      %v1359 = vsub.s32 %v1356, %v1358
      %v1360 = vrot.slane %v1178, %v1359
      %v1362 = vunpack.c.l.s4 1935823168
      %v1363 = vunpack.c.0.s8 %v1362
      %v1364 = vlaneseq
      %v1365 = vshrl.u32 %v1364, 7
      %v1366 = vsub.s32 %v1363, %v1365
      %v1367 = vrot.slane %v1360, %v1366
      %v1369 = vunpack.c.l.s4 1935823168
      %v1370 = vunpack.c.0.s8 %v1369
      %v1371 = vlaneseq
      %v1372 = vshrl.u32 %v1371, 7
      %v1373 = vsub.s32 %v1370, %v1372
      %v1374 = vrot.slane %v1179, %v1373
      %v1376 = vunpack.c.l.s4 1935823168
      %v1377 = vunpack.c.0.s8 %v1376
      %v1378 = vlaneseq
      %v1379 = vshrl.u32 %v1378, 7
      %v1380 = vsub.s32 %v1377, %v1379
      %v1381 = vrot.slane %v1374, %v1380
      %v1383 = vunpack.c.l.s4 1935823168
      %v1384 = vunpack.c.0.s8 %v1383
      %v1385 = vlaneseq
      %v1386 = vshrl.u32 %v1385, 7
      %v1387 = vsub.s32 %v1384, %v1386
      %v1388 = vrot.slane %v1180, %v1387
      %v1390 = vunpack.c.l.s4 1935823168
      %v1391 = vunpack.c.0.s8 %v1390
      %v1392 = vlaneseq
      %v1393 = vshrl.u32 %v1392, 7
      %v1394 = vsub.s32 %v1391, %v1393
      %v1395 = vrot.slane %v1388, %v1394
      %v1397 = vunpack.c.l.s4 1935823168
      %v1398 = vunpack.c.0.s8 %v1397
      %v1399 = vlaneseq
      %v1400 = vshrl.u32 %v1399, 7
      %v1401 = vsub.s32 %v1398, %v1400
      %v1402 = vrot.slane %v1181, %v1401
      %v1404 = vunpack.c.l.s4 1935823168
      %v1405 = vunpack.c.0.s8 %v1404
      %v1406 = vlaneseq
      %v1407 = vshrl.u32 %v1406, 7
      %v1408 = vsub.s32 %v1405, %v1407
      %v1409 = vrot.slane %v1402, %v1408
      %v1411 = vunpack.c.l.s4 1935823168
      %v1412 = vunpack.c.0.s8 %v1411
      %v1413 = vlaneseq
      %v1414 = vshrl.u32 %v1413, 7
      %v1415 = vsub.s32 %v1412, %v1414
      %v1416 = vrot.slane %v1182, %v1415
      %v1418 = vunpack.c.l.s4 1935823168
      %v1419 = vunpack.c.0.s8 %v1418
      %v1420 = vlaneseq
      %v1421 = vshrl.u32 %v1420, 7
      %v1422 = vsub.s32 %v1419, %v1421
      %v1423 = vrot.slane %v1416, %v1422
      %v1425 = vunpack.c.l.s4 1935823168
      %v1426 = vunpack.c.0.s8 %v1425
      %v1427 = vlaneseq
      %v1428 = vshrl.u32 %v1427, 7
      %v1429 = vsub.s32 %v1426, %v1428
      %v1430 = vrot.slane %v1183, %v1429
      %v1432 = vunpack.c.l.s4 1935823168
      %v1433 = vunpack.c.0.s8 %v1432
      %v1434 = vlaneseq
      %v1435 = vshrl.u32 %v1434, 7
      %v1436 = vsub.s32 %v1433, %v1435
      %v1437 = vrot.slane %v1430, %v1436
      %v1439 = vunpack.c.l.s4 1935823168
      %v1440 = vunpack.c.0.s8 %v1439
      %v1441 = vlaneseq
      %v1442 = vshrl.u32 %v1441, 7
      %v1443 = vsub.s32 %v1440, %v1442
      %v1444 = vrot.slane %v1184, %v1443
      %v1446 = vunpack.c.l.s4 1935823168
      %v1447 = vunpack.c.0.s8 %v1446
      %v1448 = vlaneseq
      %v1449 = vshrl.u32 %v1448, 7
      %v1450 = vsub.s32 %v1447, %v1449
      %v1451 = vrot.slane %v1444, %v1450
      %v1453 = vunpack.c.l.s4 1935823168
      %v1454 = vunpack.c.0.s8 %v1453
      %v1455 = vlaneseq
      %v1456 = vshrl.u32 %v1455, 7
      %v1457 = vsub.s32 %v1454, %v1456
      %v1458 = vrot.slane %v1185, %v1457
      %v1460 = vunpack.c.l.s4 1935823168
      %v1461 = vunpack.c.0.s8 %v1460
      %v1462 = vlaneseq
      %v1463 = vshrl.u32 %v1462, 7
      %v1464 = vsub.s32 %v1461, %v1463
      %v1465 = vrot.slane %v1458, %v1464
      %v1467 = vunpack.c.l.s4 1935823168
      %v1468 = vunpack.c.0.s8 %v1467
      %v1469 = vlaneseq
      %v1470 = vshrl.u32 %v1469, 7
      %v1471 = vsub.s32 %v1468, %v1470
      %v1472 = vrot.slane %v1186, %v1471
      %v1474 = vunpack.c.l.s4 1935823168
      %v1475 = vunpack.c.0.s8 %v1474
      %v1476 = vlaneseq
      %v1477 = vshrl.u32 %v1476, 7
      %v1478 = vsub.s32 %v1475, %v1477
      %v1479 = vrot.slane %v1472, %v1478
      %v1481 = vunpack.c.l.s4 1935823168
      %v1482 = vunpack.c.0.s8 %v1481
      %v1483 = vlaneseq
      %v1484 = vshrl.u32 %v1483, 7
      %v1485 = vsub.s32 %v1482, %v1484
      %v1486 = vrot.slane %v1187, %v1485
      %v1488 = vunpack.c.l.s4 1935823168
      %v1489 = vunpack.c.0.s8 %v1488
      %v1490 = vlaneseq
      %v1491 = vshrl.u32 %v1490, 7
      %v1492 = vsub.s32 %v1489, %v1491
      %v1493 = vrot.slane %v1486, %v1492
      %v1495 = vunpack.c.l.s4 1935823168
      %v1496 = vunpack.c.0.s8 %v1495
      %v1497 = vlaneseq
      %v1498 = vshrl.u32 %v1497, 7
      %v1499 = vsub.s32 %v1496, %v1498
      %v1500 = vrot.slane %v1188, %v1499
      %v1502 = vunpack.c.l.s4 1935823168
      %v1503 = vunpack.c.0.s8 %v1502
      %v1504 = vlaneseq
      %v1505 = vshrl.u32 %v1504, 7
      %v1506 = vsub.s32 %v1503, %v1505
      %v1507 = vrot.slane %v1500, %v1506
      %v1509 = vunpack.c.l.s4 1935823168
      %v1510 = vunpack.c.0.s8 %v1509
      %v1511 = vlaneseq
      %v1512 = vshrl.u32 %v1511, 7
      %v1513 = vsub.s32 %v1510, %v1512
      %v1514 = vrot.slane %v1189, %v1513
      %v1516 = vunpack.c.l.s4 1935823168
      %v1517 = vunpack.c.0.s8 %v1516
      %v1518 = vlaneseq
      %v1519 = vshrl.u32 %v1518, 7
      %v1520 = vsub.s32 %v1517, %v1519
      %v1521 = vrot.slane %v1514, %v1520
      %v1523 = vunpack.c.l.s4 1935823168
      %v1524 = vunpack.c.0.s8 %v1523
      %v1525 = vlaneseq
      %v1526 = vshrl.u32 %v1525, 7
      %v1527 = vsub.s32 %v1524, %v1526
      %v1528 = vrot.slane %v1190, %v1527
      %v1530 = vunpack.c.l.s4 1935823168
      %v1531 = vunpack.c.0.s8 %v1530
      %v1532 = vlaneseq
      %v1533 = vshrl.u32 %v1532, 7
      %v1534 = vsub.s32 %v1531, %v1533
      %v1535 = vrot.slane %v1528, %v1534
      %v1537 = vunpack.c.l.s4 1935823168
      %v1538 = vunpack.c.0.s8 %v1537
      %v1539 = vlaneseq
      %v1540 = vshrl.u32 %v1539, 7
      %v1541 = vsub.s32 %v1538, %v1540
      %v1542 = vrot.slane %v1191, %v1541
      %v1544 = vunpack.c.l.s4 1935823168
      %v1545 = vunpack.c.0.s8 %v1544
      %v1546 = vlaneseq
      %v1547 = vshrl.u32 %v1546, 7
      %v1548 = vsub.s32 %v1545, %v1547
      %v1549 = vrot.slane %v1542, %v1548
      %v1551 = vunpack.c.l.s4 1935823168
      %v1552 = vunpack.c.0.s8 %v1551
      %v1553 = vlaneseq
      %v1554 = vshrl.u32 %v1553, 7
      %v1555 = vsub.s32 %v1552, %v1554
      %v1556 = vrot.slane %v1192, %v1555
      %v1558 = vunpack.c.l.s4 1935823168
      %v1559 = vunpack.c.0.s8 %v1558
      %v1560 = vlaneseq
      %v1561 = vshrl.u32 %v1560, 7
      %v1562 = vsub.s32 %v1559, %v1561
      %v1563 = vrot.slane %v1556, %v1562
      %v1565 = vunpack.c.l.s4 1935823168
      %v1566 = vunpack.c.0.s8 %v1565
      %v1567 = vlaneseq
      %v1568 = vshrl.u32 %v1567, 7
      %v1569 = vsub.s32 %v1566, %v1568
      %v1570 = vrot.slane %v1193, %v1569
      %v1572 = vunpack.c.l.s4 1935823168
      %v1573 = vunpack.c.0.s8 %v1572
      %v1574 = vlaneseq
      %v1575 = vshrl.u32 %v1574, 7
      %v1576 = vsub.s32 %v1573, %v1575
      %v1577 = vrot.slane %v1570, %v1576
      %v1579 = vunpack.c.l.s4 1935823168
      %v1580 = vunpack.c.0.s8 %v1579
      %v1581 = vlaneseq
      %v1582 = vshrl.u32 %v1581, 7
      %v1583 = vsub.s32 %v1580, %v1582
      %v1584 = vrot.slane %v1194, %v1583
      %v1586 = vunpack.c.l.s4 1935823168
      %v1587 = vunpack.c.0.s8 %v1586
      %v1588 = vlaneseq
      %v1589 = vshrl.u32 %v1588, 7
      %v1590 = vsub.s32 %v1587, %v1589
      %v1591 = vrot.slane %v1584, %v1590
      %v1593 = vunpack.c.l.s4 1935823168
      %v1594 = vunpack.c.0.s8 %v1593
      %v1595 = vlaneseq
      %v1596 = vshrl.u32 %v1595, 7
      %v1597 = vsub.s32 %v1594, %v1596
      %v1598 = vrot.slane %v1195, %v1597
      %v1600 = vunpack.c.l.s4 1935823168
      %v1601 = vunpack.c.0.s8 %v1600
      %v1602 = vlaneseq
      %v1603 = vshrl.u32 %v1602, 7
      %v1604 = vsub.s32 %v1601, %v1603
      %v1605 = vrot.slane %v1598, %v1604
      %v1607 = vunpack.c.l.s4 1935823168
      %v1608 = vunpack.c.0.s8 %v1607
      %v1609 = vlaneseq
      %v1610 = vshrl.u32 %v1609, 7
      %v1611 = vsub.s32 %v1608, %v1610
      %v1612 = vrot.slane %v1196, %v1611
      %v1614 = vunpack.c.l.s4 1935823168
      %v1615 = vunpack.c.0.s8 %v1614
      %v1616 = vlaneseq
      %v1617 = vshrl.u32 %v1616, 7
      %v1618 = vsub.s32 %v1615, %v1617
      %v1619 = vrot.slane %v1612, %v1618
      %v1621 = vunpack.c.l.s4 1935823168
      %v1622 = vunpack.c.0.s8 %v1621
      %v1623 = vlaneseq
      %v1624 = vshrl.u32 %v1623, 7
      %v1625 = vsub.s32 %v1622, %v1624
      %v1626 = vrot.slane %v1197, %v1625
      %v1628 = vunpack.c.l.s4 1935823168
      %v1629 = vunpack.c.0.s8 %v1628
      %v1630 = vlaneseq
      %v1631 = vshrl.u32 %v1630, 7
      %v1632 = vsub.s32 %v1629, %v1631
      %v1633 = vrot.slane %v1626, %v1632
      %v1635 = vunpack.c.l.s4 1935823168
      %v1636 = vunpack.c.0.s8 %v1635
      %v1637 = vlaneseq
      %v1638 = vshrl.u32 %v1637, 7
      %v1639 = vsub.s32 %v1636, %v1638
      %v1640 = vrot.slane %v1198, %v1639
      %v1642 = vunpack.c.l.s4 1935823168
      %v1643 = vunpack.c.0.s8 %v1642
      %v1644 = vlaneseq
      %v1645 = vshrl.u32 %v1644, 7
      %v1646 = vsub.s32 %v1643, %v1645
      %v1647 = vrot.slane %v1640, %v1646
      %v1649 = vunpack.c.l.s4 1935823168
      %v1650 = vunpack.c.0.s8 %v1649
      %v1651 = vlaneseq
      %v1652 = vshrl.u32 %v1651, 7
      %v1653 = vsub.s32 %v1650, %v1652
      %v1654 = vrot.slane %v1199, %v1653
      %v1656 = vunpack.c.l.s4 1935823168
      %v1657 = vunpack.c.0.s8 %v1656
      %v1658 = vlaneseq
      %v1659 = vshrl.u32 %v1658, 7
      %v1660 = vsub.s32 %v1657, %v1659
      %v1661 = vrot.slane %v1654, %v1660
      %v1663 = vunpack.c.l.s4 1935823168
      %v1664 = vunpack.c.0.s8 %v1663
      %v1665 = vlaneseq
      %v1666 = vshrl.u32 %v1665, 7
      %v1667 = vsub.s32 %v1664, %v1666
      %v1668 = vrot.slane %v1200, %v1667
      %v1670 = vunpack.c.l.s4 1935823168
      %v1671 = vunpack.c.0.s8 %v1670
      %v1672 = vlaneseq
      %v1673 = vshrl.u32 %v1672, 7
      %v1674 = vsub.s32 %v1671, %v1673
      %v1675 = vrot.slane %v1668, %v1674
      %v1677 = vunpack.c.l.s4 1935823168
      %v1678 = vunpack.c.0.s8 %v1677
      %v1679 = vlaneseq
      %v1680 = vshrl.u32 %v1679, 7
      %v1681 = vsub.s32 %v1678, %v1680
      %v1682 = vrot.slane %v1201, %v1681
      %v1684 = vunpack.c.l.s4 1935823168
      %v1685 = vunpack.c.0.s8 %v1684
      %v1686 = vlaneseq
      %v1687 = vshrl.u32 %v1686, 7
      %v1688 = vsub.s32 %v1685, %v1687
      %v1689 = vrot.slane %v1682, %v1688
      %v1691 = vunpack.c.l.s4 1935823168
      %v1692 = vunpack.c.0.s8 %v1691
      %v1693 = vlaneseq
      %v1694 = vshrl.u32 %v1693, 7
      %v1695 = vsub.s32 %v1692, %v1694
      %v1696 = vrot.slane %v1202, %v1695
      %v1698 = vunpack.c.l.s4 1935823168
      %v1699 = vunpack.c.0.s8 %v1698
      %v1700 = vlaneseq
      %v1701 = vshrl.u32 %v1700, 7
      %v1702 = vsub.s32 %v1699, %v1701
      %v1703 = vrot.slane %v1696, %v1702
      %v1705 = vunpack.c.l.s4 1935823168
      %v1706 = vunpack.c.0.s8 %v1705
      %v1707 = vlaneseq
      %v1708 = vshrl.u32 %v1707, 7
      %v1709 = vsub.s32 %v1706, %v1708
      %v1710 = vrot.slane %v1203, %v1709
      %v1712 = vunpack.c.l.s4 1935823168
      %v1713 = vunpack.c.0.s8 %v1712
      %v1714 = vlaneseq
      %v1715 = vshrl.u32 %v1714, 7
      %v1716 = vsub.s32 %v1713, %v1715
      %v1717 = vrot.slane %v1710, %v1716
      %v1719 = vunpack.c.l.s4 1935823168
      %v1720 = vunpack.c.0.s8 %v1719
      %v1721 = vlaneseq
      %v1722 = vshrl.u32 %v1721, 7
      %v1723 = vsub.s32 %v1720, %v1722
      %v1724 = vrot.slane %v1204, %v1723
      %v1726 = vunpack.c.l.s4 1935823168
      %v1727 = vunpack.c.0.s8 %v1726
      %v1728 = vlaneseq
      %v1729 = vshrl.u32 %v1728, 7
      %v1730 = vsub.s32 %v1727, %v1729
      %v1731 = vrot.slane %v1724, %v1730
      %v1733 = vunpack.c.l.s4 1935823168
      %v1734 = vunpack.c.0.s8 %v1733
      %v1735 = vlaneseq
      %v1736 = vshrl.u32 %v1735, 7
      %v1737 = vsub.s32 %v1734, %v1736
      %v1738 = vrot.slane %v1205, %v1737
      %v1740 = vunpack.c.l.s4 1935823168
      %v1741 = vunpack.c.0.s8 %v1740
      %v1742 = vlaneseq
      %v1743 = vshrl.u32 %v1742, 7
      %v1744 = vsub.s32 %v1741, %v1743
      %v1745 = vrot.slane %v1738, %v1744
      %v1747 = vunpack.c.l.s4 1935823168
      %v1748 = vunpack.c.0.s8 %v1747
      %v1749 = vlaneseq
      %v1750 = vshrl.u32 %v1749, 7
      %v1751 = vsub.s32 %v1748, %v1750
      %v1752 = vrot.slane %v1206, %v1751
      %v1754 = vunpack.c.l.s4 1935823168
      %v1755 = vunpack.c.0.s8 %v1754
      %v1756 = vlaneseq
      %v1757 = vshrl.u32 %v1756, 7
      %v1758 = vsub.s32 %v1755, %v1757
      %v1759 = vrot.slane %v1752, %v1758
      %v1761 = vunpack.c.l.s4 1935823168
      %v1762 = vunpack.c.0.s8 %v1761
      %v1763 = vlaneseq
      %v1764 = vshrl.u32 %v1763, 7
      %v1765 = vsub.s32 %v1762, %v1764
      %v1766 = vrot.slane %v1207, %v1765
      %v1768 = vunpack.c.l.s4 1935823168
      %v1769 = vunpack.c.0.s8 %v1768
      %v1770 = vlaneseq
      %v1771 = vshrl.u32 %v1770, 7
      %v1772 = vsub.s32 %v1769, %v1771
      %v1773 = vrot.slane %v1766, %v1772
      %v1775 = vunpack.c.l.s4 1935823168
      %v1776 = vunpack.c.0.s8 %v1775
      %v1777 = vlaneseq
      %v1778 = vshrl.u32 %v1777, 7
      %v1779 = vsub.s32 %v1776, %v1778
      %v1780 = vrot.slane %v1208, %v1779
      %v1782 = vunpack.c.l.s4 1935823168
      %v1783 = vunpack.c.0.s8 %v1782
      %v1784 = vlaneseq
      %v1785 = vshrl.u32 %v1784, 7
      %v1786 = vsub.s32 %v1783, %v1785
      %v1787 = vrot.slane %v1780, %v1786
      %v1789 = vunpack.c.l.s4 1935823168
      %v1790 = vunpack.c.0.s8 %v1789
      %v1791 = vlaneseq
      %v1792 = vshrl.u32 %v1791, 7
      %v1793 = vsub.s32 %v1790, %v1792
      %v1794 = vrot.slane %v1209, %v1793
      %v1796 = vunpack.c.l.s4 1935823168
      %v1797 = vunpack.c.0.s8 %v1796
      %v1798 = vlaneseq
      %v1799 = vshrl.u32 %v1798, 7
      %v1800 = vsub.s32 %v1797, %v1799
      %v1801 = vrot.slane %v1794, %v1800
      %v1803 = vunpack.c.l.s4 1935823168
      %v1804 = vunpack.c.0.s8 %v1803
      %v1805 = vlaneseq
      %v1806 = vshrl.u32 %v1805, 7
      %v1807 = vsub.s32 %v1804, %v1806
      %v1808 = vrot.slane %v1210, %v1807
      %v1810 = vunpack.c.l.s4 1935823168
      %v1811 = vunpack.c.0.s8 %v1810
      %v1812 = vlaneseq
      %v1813 = vshrl.u32 %v1812, 7
      %v1814 = vsub.s32 %v1811, %v1813
      %v1815 = vrot.slane %v1808, %v1814
      %v1817 = vunpack.c.l.s4 1935823168
      %v1818 = vunpack.c.0.s8 %v1817
      %v1819 = vlaneseq
      %v1820 = vshrl.u32 %v1819, 7
      %v1821 = vsub.s32 %v1818, %v1820
      %v1822 = vrot.slane %v1211, %v1821
      %v1824 = vunpack.c.l.s4 1935823168
      %v1825 = vunpack.c.0.s8 %v1824
      %v1826 = vlaneseq
      %v1827 = vshrl.u32 %v1826, 7
      %v1828 = vsub.s32 %v1825, %v1827
      %v1829 = vrot.slane %v1822, %v1828
      %v1831 = vunpack.c.l.s4 1935823168
      %v1832 = vunpack.c.0.s8 %v1831
      %v1833 = vlaneseq
      %v1834 = vshrl.u32 %v1833, 7
      %v1835 = vsub.s32 %v1832, %v1834
      %v1836 = vrot.slane %v1212, %v1835
      %v1838 = vunpack.c.l.s4 1935823168
      %v1839 = vunpack.c.0.s8 %v1838
      %v1840 = vlaneseq
      %v1841 = vshrl.u32 %v1840, 7
      %v1842 = vsub.s32 %v1839, %v1841
      %v1843 = vrot.slane %v1836, %v1842
      %v1845 = vunpack.c.l.s4 1935823168
      %v1846 = vunpack.c.0.s8 %v1845
      %v1847 = vlaneseq
      %v1848 = vshrl.u32 %v1847, 7
      %v1849 = vsub.s32 %v1846, %v1848
      %v1850 = vrot.slane %v1213, %v1849
      %v1852 = vunpack.c.l.s4 1935823168
      %v1853 = vunpack.c.0.s8 %v1852
      %v1854 = vlaneseq
      %v1855 = vshrl.u32 %v1854, 7
      %v1856 = vsub.s32 %v1853, %v1855
      %v1857 = vrot.slane %v1850, %v1856
      %v1859 = vunpack.c.l.s4 1935823168
      %v1860 = vunpack.c.0.s8 %v1859
      %v1861 = vlaneseq
      %v1862 = vshrl.u32 %v1861, 7
      %v1863 = vsub.s32 %v1860, %v1862
      %v1864 = vrot.slane %v1214, %v1863
      %v1866 = vunpack.c.l.s4 1935823168
      %v1867 = vunpack.c.0.s8 %v1866
      %v1868 = vlaneseq
      %v1869 = vshrl.u32 %v1868, 7
      %v1870 = vsub.s32 %v1867, %v1869
      %v1871 = vrot.slane %v1864, %v1870
      %v1873 = vunpack.c.l.s4 1935823168
      %v1874 = vunpack.c.0.s8 %v1873
      %v1875 = vlaneseq
      %v1876 = vshrl.u32 %v1875, 7
      %v1877 = vsub.s32 %v1874, %v1876
      %v1878 = vrot.slane %v1215, %v1877
      %v1880 = vunpack.c.l.s4 1935823168
      %v1881 = vunpack.c.0.s8 %v1880
      %v1882 = vlaneseq
      %v1883 = vshrl.u32 %v1882, 7
      %v1884 = vsub.s32 %v1881, %v1883
      %v1885 = vrot.slane %v1878, %v1884
      %v1887 = vunpack.c.l.s4 1935823168
      %v1888 = vunpack.c.0.s8 %v1887
      %v1889 = vlaneseq
      %v1890 = vshrl.u32 %v1889, 7
      %v1891 = vsub.s32 %v1888, %v1890
      %v1892 = vrot.slane %v1216, %v1891
      %v1894 = vunpack.c.l.s4 1935823168
      %v1895 = vunpack.c.0.s8 %v1894
      %v1896 = vlaneseq
      %v1897 = vshrl.u32 %v1896, 7
      %v1898 = vsub.s32 %v1895, %v1897
      %v1899 = vrot.slane %v1892, %v1898
      %v1901 = vunpack.c.l.s4 1935823168
      %v1902 = vunpack.c.0.s8 %v1901
      %v1903 = vlaneseq
      %v1904 = vshrl.u32 %v1903, 7
      %v1905 = vsub.s32 %v1902, %v1904
      %v1906 = vrot.slane %v1217, %v1905
      %v1908 = vunpack.c.l.s4 1935823168
      %v1909 = vunpack.c.0.s8 %v1908
      %v1910 = vlaneseq
      %v1911 = vshrl.u32 %v1910, 7
      %v1912 = vsub.s32 %v1909, %v1911
      %v1913 = vrot.slane %v1906, %v1912
      %v1915 = vunpack.c.l.s4 1935823168
      %v1916 = vunpack.c.0.s8 %v1915
      %v1917 = vlaneseq
      %v1918 = vshrl.u32 %v1917, 7
      %v1919 = vsub.s32 %v1916, %v1918
      %v1920 = vrot.slane %v1218, %v1919
      %v1922 = vunpack.c.l.s4 1935823168
      %v1923 = vunpack.c.0.s8 %v1922
      %v1924 = vlaneseq
      %v1925 = vshrl.u32 %v1924, 7
      %v1926 = vsub.s32 %v1923, %v1925
      %v1927 = vrot.slane %v1920, %v1926
      %v1929 = vunpack.c.l.s4 1935823168
      %v1930 = vunpack.c.0.s8 %v1929
      %v1931 = vlaneseq
      %v1932 = vshrl.u32 %v1931, 7
      %v1933 = vsub.s32 %v1930, %v1932
      %v1934 = vrot.slane %v1219, %v1933
      %v1936 = vunpack.c.l.s4 1935823168
      %v1937 = vunpack.c.0.s8 %v1936
      %v1938 = vlaneseq
      %v1939 = vshrl.u32 %v1938, 7
      %v1940 = vsub.s32 %v1937, %v1939
      %v1941 = vrot.slane %v1934, %v1940
      %v1943 = vunpack.c.l.s4 1935823168
      %v1944 = vunpack.c.0.s8 %v1943
      %v1945 = vlaneseq
      %v1946 = vshrl.u32 %v1945, 7
      %v1947 = vsub.s32 %v1944, %v1946
      %v1948 = vrot.slane %v1220, %v1947
      %v1950 = vunpack.c.l.s4 1935823168
      %v1951 = vunpack.c.0.s8 %v1950
      %v1952 = vlaneseq
      %v1953 = vshrl.u32 %v1952, 7
      %v1954 = vsub.s32 %v1951, %v1953
      %v1955 = vrot.slane %v1948, %v1954
      %v1957 = vunpack.c.l.s4 1935823168
      %v1958 = vunpack.c.0.s8 %v1957
      %v1959 = vlaneseq
      %v1960 = vshrl.u32 %v1959, 7
      %v1961 = vsub.s32 %v1958, %v1960
      %v1962 = vrot.slane %v1221, %v1961
      %v1964 = vunpack.c.l.s4 1935823168
      %v1965 = vunpack.c.0.s8 %v1964
      %v1966 = vlaneseq
      %v1967 = vshrl.u32 %v1966, 7
      %v1968 = vsub.s32 %v1965, %v1967
      %v1969 = vrot.slane %v1962, %v1968
      %v1971 = vunpack.c.l.s4 1935823168
      %v1972 = vunpack.c.0.s8 %v1971
      %v1973 = vlaneseq
      %v1974 = vshrl.u32 %v1973, 7
      %v1975 = vsub.s32 %v1972, %v1974
      %v1976 = vrot.slane %v1222, %v1975
      %v1978 = vunpack.c.l.s4 1935823168
      %v1979 = vunpack.c.0.s8 %v1978
      %v1980 = vlaneseq
      %v1981 = vshrl.u32 %v1980, 7
      %v1982 = vsub.s32 %v1979, %v1981
      %v1983 = vrot.slane %v1976, %v1982
      %v1985 = vunpack.c.l.s4 1935823168
      %v1986 = vunpack.c.0.s8 %v1985
      %v1987 = vlaneseq
      %v1988 = vshrl.u32 %v1987, 7
      %v1989 = vsub.s32 %v1986, %v1988
      %v1990 = vrot.slane %v1223, %v1989
      %v1992 = vunpack.c.l.s4 1935823168
      %v1993 = vunpack.c.0.s8 %v1992
      %v1994 = vlaneseq
      %v1995 = vshrl.u32 %v1994, 7
      %v1996 = vsub.s32 %v1993, %v1995
      %v1997 = vrot.slane %v1990, %v1996
      %v1999 = vunpack.c.l.s4 1935823168
      %v2000 = vunpack.c.0.s8 %v1999
      %v2001 = vlaneseq
      %v2002 = vshrl.u32 %v2001, 7
      %v2003 = vsub.s32 %v2000, %v2002
      %v2004 = vrot.slane %v1224, %v2003
      %v2006 = vunpack.c.l.s4 1935823168
      %v2007 = vunpack.c.0.s8 %v2006
      %v2008 = vlaneseq
      %v2009 = vshrl.u32 %v2008, 7
      %v2010 = vsub.s32 %v2007, %v2009
      %v2011 = vrot.slane %v2004, %v2010
      %v2013 = vunpack.c.l.s4 1935823168
      %v2014 = vunpack.c.0.s8 %v2013
      %v2015 = vlaneseq
      %v2016 = vshrl.u32 %v2015, 7
      %v2017 = vsub.s32 %v2014, %v2016
      %v2018 = vrot.slane %v1225, %v2017
      %v2020 = vunpack.c.l.s4 1935823168
      %v2021 = vunpack.c.0.s8 %v2020
      %v2022 = vlaneseq
      %v2023 = vshrl.u32 %v2022, 7
      %v2024 = vsub.s32 %v2021, %v2023
      %v2025 = vrot.slane %v2018, %v2024
      %v2027 = vunpack.c.l.s4 1935823168
      %v2028 = vunpack.c.0.s8 %v2027
      %v2029 = vlaneseq
      %v2030 = vshrl.u32 %v2029, 7
      %v2031 = vsub.s32 %v2028, %v2030
      %v2032 = vrot.slane %v1226, %v2031
      %v2034 = vunpack.c.l.s4 1935823168
      %v2035 = vunpack.c.0.s8 %v2034
      %v2036 = vlaneseq
      %v2037 = vshrl.u32 %v2036, 7
      %v2038 = vsub.s32 %v2035, %v2037
      %v2039 = vrot.slane %v2032, %v2038
      %v2041 = vunpack.c.l.s4 1935823168
      %v2042 = vunpack.c.0.s8 %v2041
      %v2043 = vlaneseq
      %v2044 = vshrl.u32 %v2043, 7
      %v2045 = vsub.s32 %v2042, %v2044
      %v2046 = vrot.slane %v1227, %v2045
      %v2048 = vunpack.c.l.s4 1935823168
      %v2049 = vunpack.c.0.s8 %v2048
      %v2050 = vlaneseq
      %v2051 = vshrl.u32 %v2050, 7
      %v2052 = vsub.s32 %v2049, %v2051
      %v2053 = vrot.slane %v2046, %v2052
      %v2055 = vunpack.c.l.s4 1935823168
      %v2056 = vunpack.c.0.s8 %v2055
      %v2057 = vlaneseq
      %v2058 = vshrl.u32 %v2057, 7
      %v2059 = vsub.s32 %v2056, %v2058
      %v2060 = vrot.slane %v1228, %v2059
      %v2062 = vunpack.c.l.s4 1935823168
      %v2063 = vunpack.c.0.s8 %v2062
      %v2064 = vlaneseq
      %v2065 = vshrl.u32 %v2064, 7
      %v2066 = vsub.s32 %v2063, %v2065
      %v2067 = vrot.slane %v2060, %v2066
      %v2069 = vunpack.c.l.s4 1935823168
      %v2070 = vunpack.c.0.s8 %v2069
      %v2071 = vlaneseq
      %v2072 = vshrl.u32 %v2071, 7
      %v2073 = vsub.s32 %v2070, %v2072
      %v2074 = vrot.slane %v1229, %v2073
      %v2076 = vunpack.c.l.s4 1935823168
      %v2077 = vunpack.c.0.s8 %v2076
      %v2078 = vlaneseq
      %v2079 = vshrl.u32 %v2078, 7
      %v2080 = vsub.s32 %v2077, %v2079
      %v2081 = vrot.slane %v2074, %v2080
      %v2083 = vunpack.c.l.s4 1935823168
      %v2084 = vunpack.c.0.s8 %v2083
      %v2085 = vlaneseq
      %v2086 = vshrl.u32 %v2085, 7
      %v2087 = vsub.s32 %v2084, %v2086
      %v2088 = vrot.slane %v1230, %v2087
      %v2090 = vunpack.c.l.s4 1935823168
      %v2091 = vunpack.c.0.s8 %v2090
      %v2092 = vlaneseq
      %v2093 = vshrl.u32 %v2092, 7
      %v2094 = vsub.s32 %v2091, %v2093
      %v2095 = vrot.slane %v2088, %v2094
      %v2097 = vunpack.c.l.s4 1935823168
      %v2098 = vunpack.c.0.s8 %v2097
      %v2099 = vlaneseq
      %v2100 = vshrl.u32 %v2099, 7
      %v2101 = vsub.s32 %v2098, %v2100
      %v2102 = vrot.slane %v1231, %v2101
      %v2104 = vunpack.c.l.s4 1935823168
      %v2105 = vunpack.c.0.s8 %v2104
      %v2106 = vlaneseq
      %v2107 = vshrl.u32 %v2106, 7
      %v2108 = vsub.s32 %v2105, %v2107
      %v2109 = vrot.slane %v2102, %v2108
      %v2111 = vunpack.c.l.s4 1935823168
      %v2112 = vunpack.c.0.s8 %v2111
      %v2113 = vlaneseq
      %v2114 = vshrl.u32 %v2113, 7
      %v2115 = vsub.s32 %v2112, %v2114
      %v2116 = vrot.slane %v1232, %v2115
      %v2118 = vunpack.c.l.s4 1935823168
      %v2119 = vunpack.c.0.s8 %v2118
      %v2120 = vlaneseq
      %v2121 = vshrl.u32 %v2120, 7
      %v2122 = vsub.s32 %v2119, %v2121
      %v2123 = vrot.slane %v2116, %v2122
      %v2125 = vunpack.c.l.s4 1935823168
      %v2126 = vunpack.c.0.s8 %v2125
      %v2127 = vlaneseq
      %v2128 = vshrl.u32 %v2127, 7
      %v2129 = vsub.s32 %v2126, %v2128
      %v2130 = vrot.slane %v1233, %v2129
      %v2132 = vunpack.c.l.s4 1935823168
      %v2133 = vunpack.c.0.s8 %v2132
      %v2134 = vlaneseq
      %v2135 = vshrl.u32 %v2134, 7
      %v2136 = vsub.s32 %v2133, %v2135
      %v2137 = vrot.slane %v2130, %v2136
      %v2139 = vunpack.c.l.s4 1935823168
      %v2140 = vunpack.c.0.s8 %v2139
      %v2141 = vlaneseq
      %v2142 = vshrl.u32 %v2141, 7
      %v2143 = vsub.s32 %v2140, %v2142
      %v2144 = vrot.slane %v1234, %v2143
      %v2146 = vunpack.c.l.s4 1935823168
      %v2147 = vunpack.c.0.s8 %v2146
      %v2148 = vlaneseq
      %v2149 = vshrl.u32 %v2148, 7
      %v2150 = vsub.s32 %v2147, %v2149
      %v2151 = vrot.slane %v2144, %v2150
      %v2153 = vunpack.c.l.s4 1935823168
      %v2154 = vunpack.c.0.s8 %v2153
      %v2155 = vlaneseq
      %v2156 = vshrl.u32 %v2155, 7
      %v2157 = vsub.s32 %v2154, %v2156
      %v2158 = vrot.slane %v1235, %v2157
      %v2160 = vunpack.c.l.s4 1935823168
      %v2161 = vunpack.c.0.s8 %v2160
      %v2162 = vlaneseq
      %v2163 = vshrl.u32 %v2162, 7
      %v2164 = vsub.s32 %v2161, %v2163
      %v2165 = vrot.slane %v2158, %v2164
      %v2167 = vunpack.c.l.s4 1935823168
      %v2168 = vunpack.c.0.s8 %v2167
      %v2169 = vlaneseq
      %v2170 = vshrl.u32 %v2169, 7
      %v2171 = vsub.s32 %v2168, %v2170
      %v2172 = vrot.slane %v1236, %v2171
      %v2174 = vunpack.c.l.s4 1935823168
      %v2175 = vunpack.c.0.s8 %v2174
      %v2176 = vlaneseq
      %v2177 = vshrl.u32 %v2176, 7
      %v2178 = vsub.s32 %v2175, %v2177
      %v2179 = vrot.slane %v2172, %v2178
      %v2181 = vunpack.c.l.s4 1935823168
      %v2182 = vunpack.c.0.s8 %v2181
      %v2183 = vlaneseq
      %v2184 = vshrl.u32 %v2183, 7
      %v2185 = vsub.s32 %v2182, %v2184
      %v2186 = vrot.slane %v1237, %v2185
      %v2188 = vunpack.c.l.s4 1935823168
      %v2189 = vunpack.c.0.s8 %v2188
      %v2190 = vlaneseq
      %v2191 = vshrl.u32 %v2190, 7
      %v2192 = vsub.s32 %v2189, %v2191
      %v2193 = vrot.slane %v2186, %v2192
      %v2195 = vunpack.c.l.s4 1935823168
      %v2196 = vunpack.c.0.s8 %v2195
      %v2197 = vlaneseq
      %v2198 = vshrl.u32 %v2197, 7
      %v2199 = vsub.s32 %v2196, %v2198
      %v2200 = vrot.slane %v1238, %v2199
      %v2202 = vunpack.c.l.s4 1935823168
      %v2203 = vunpack.c.0.s8 %v2202
      %v2204 = vlaneseq
      %v2205 = vshrl.u32 %v2204, 7
      %v2206 = vsub.s32 %v2203, %v2205
      %v2207 = vrot.slane %v2200, %v2206
      %v2209 = vunpack.c.l.s4 1935823168
      %v2210 = vunpack.c.0.s8 %v2209
      %v2211 = vlaneseq
      %v2212 = vshrl.u32 %v2211, 7
      %v2213 = vsub.s32 %v2210, %v2212
      %v2214 = vrot.slane %v1239, %v2213
      %v2216 = vunpack.c.l.s4 1935823168
      %v2217 = vunpack.c.0.s8 %v2216
      %v2218 = vlaneseq
      %v2219 = vshrl.u32 %v2218, 7
      %v2220 = vsub.s32 %v2217, %v2219
      %v2221 = vrot.slane %v2214, %v2220
      %v2222 = vunpack.c.l.b16 %v1339
      %v2223 = vunpack.c.l.b16 %v1353
      %v2224 = vunpack.c.l.b16 %v1367
      %v2225 = vunpack.c.l.b16 %v1381
      %v2226 = vunpack.c.l.b16 %v1395
      %v2227 = vunpack.c.l.b16 %v1409
      %v2228 = vunpack.c.l.b16 %v1423
      %v2229 = vunpack.c.l.b16 %v1437
      %v2230 = vunpack.c.l.b16 %v1451
      %v2231 = vunpack.c.l.b16 %v1465
      %v2232 = vunpack.c.l.b16 %v1479
      %v2233 = vunpack.c.l.b16 %v1493
      %v2234 = vunpack.c.l.b16 %v1507
      %v2235 = vunpack.c.l.b16 %v1521
      %v2236 = vunpack.c.l.b16 %v1535
      %v2237 = vunpack.c.l.b16 %v1549
      %v2238 = vunpack.c.l.b16 %v1563
      %v2239 = vunpack.c.l.b16 %v1577
      %v2240 = vunpack.c.l.b16 %v1591
      %v2241 = vunpack.c.l.b16 %v1605
      %v2242 = vunpack.c.l.b16 %v1619
      %v2243 = vunpack.c.l.b16 %v1633
      %v2244 = vunpack.c.l.b16 %v1647
      %v2245 = vunpack.c.l.b16 %v1661
      %v2246 = vunpack.c.l.b16 %v1675
      %v2247 = vunpack.c.l.b16 %v1689
      %v2248 = vunpack.c.l.b16 %v1703
      %v2249 = vunpack.c.l.b16 %v1717
      %v2250 = vunpack.c.l.b16 %v1731
      %v2251 = vunpack.c.l.b16 %v1745
      %v2252 = vunpack.c.l.b16 %v1759
      %v2253 = vunpack.c.l.b16 %v1773
      %v2254 = vunpack.c.l.b16 %v1787
      %v2255 = vunpack.c.l.b16 %v1801
      %v2256 = vunpack.c.l.b16 %v1815
      %v2257 = vunpack.c.l.b16 %v1829
      %v2258 = vunpack.c.l.b16 %v1843
      %v2259 = vunpack.c.l.b16 %v1857
      %v2260 = vunpack.c.l.b16 %v1871
      %v2261 = vunpack.c.l.b16 %v1885
      %v2262 = vunpack.c.l.b16 %v1899
      %v2263 = vunpack.c.l.b16 %v1913
      %v2264 = vunpack.c.l.b16 %v1927
      %v2265 = vunpack.c.l.b16 %v1941
      %v2266 = vunpack.c.l.b16 %v1955
      %v2267 = vunpack.c.l.b16 %v1969
      %v2268 = vunpack.c.l.b16 %v1983
      %v2269 = vunpack.c.l.b16 %v1997
      %v2270 = vunpack.c.l.b16 %v2011
      %v2271 = vunpack.c.l.b16 %v2025
      %v2272 = vunpack.c.l.b16 %v2039
      %v2273 = vunpack.c.l.b16 %v2053
      %v2274 = vunpack.c.l.b16 %v2067
      %v2275 = vunpack.c.l.b16 %v2081
      %v2276 = vunpack.c.l.b16 %v2095
      %v2277 = vunpack.c.l.b16 %v2109
      %v2278 = vunpack.c.l.b16 %v2123
      %v2279 = vunpack.c.l.b16 %v2137
      %v2280 = vunpack.c.l.b16 %v2151
      %v2281 = vunpack.c.l.b16 %v2165
      %v2282 = vunpack.c.l.b16 %v2179
      %v2283 = vunpack.c.l.b16 %v2193
      %v2284 = vunpack.c.l.b16 %v2207
      %v2285 = vunpack.c.l.b16 %v2221
      %v2286 = vrot.slane %v2222, 7
      %v2287 = vrot.slane %v2223, 6
      %vm2288 = vcmask 1042434
      %v2289 = vsel %vm2288, %v2287, %v2286
      %v2290 = vrot.slane %v2224, 5
      %vm2291 = vcmask 1043459
      %v2292 = vsel %vm2291, %v2290, %v2289
      %v2293 = vrot.slane %v2225, 4
      %vm2294 = vcmask 1044484
      %v2295 = vsel %vm2294, %v2293, %v2292
      %v2296 = vrot.slane %v2226, 3
      %vm2297 = vcmask 1045509
      %v2298 = vsel %vm2297, %v2296, %v2295
      %v2299 = vrot.slane %v2227, 2
      %vm2300 = vcmask 1046534
      %v2301 = vsel %vm2300, %v2299, %v2298
      %v2302 = vrot.slane %v2228, 1
      %vm2303 = vcmask 1047559
      %v2304 = vsel %vm2303, %v2302, %v2301
      %v2305 = vrot.slane %v2230, 7
      %v2306 = vrot.slane %v2231, 6
      %v2307 = vsel %vm2288, %v2306, %v2305
      %v2308 = vrot.slane %v2232, 5
      %v2309 = vsel %vm2291, %v2308, %v2307
      %v2310 = vrot.slane %v2233, 4
      %v2311 = vsel %vm2294, %v2310, %v2309
      %v2312 = vrot.slane %v2234, 3
      %v2313 = vsel %vm2297, %v2312, %v2311
      %v2314 = vrot.slane %v2235, 2
      %v2315 = vsel %vm2300, %v2314, %v2313
      %v2316 = vrot.slane %v2236, 1
      %v2317 = vsel %vm2303, %v2316, %v2315
      %v2318 = vrot.slane %v2238, 7
      %v2319 = vrot.slane %v2239, 6
      %v2320 = vsel %vm2288, %v2319, %v2318
      %v2321 = vrot.slane %v2240, 5
      %v2322 = vsel %vm2291, %v2321, %v2320
      %v2323 = vrot.slane %v2241, 4
      %v2324 = vsel %vm2294, %v2323, %v2322
      %v2325 = vrot.slane %v2242, 3
      %v2326 = vsel %vm2297, %v2325, %v2324
      %v2327 = vrot.slane %v2243, 2
      %v2328 = vsel %vm2300, %v2327, %v2326
      %v2329 = vrot.slane %v2244, 1
      %v2330 = vsel %vm2303, %v2329, %v2328
      %v2331 = vrot.slane %v2246, 7
      %v2332 = vrot.slane %v2247, 6
      %v2333 = vsel %vm2288, %v2332, %v2331
      %v2334 = vrot.slane %v2248, 5
      %v2335 = vsel %vm2291, %v2334, %v2333
      %v2336 = vrot.slane %v2249, 4
      %v2337 = vsel %vm2294, %v2336, %v2335
      %v2338 = vrot.slane %v2250, 3
      %v2339 = vsel %vm2297, %v2338, %v2337
      %v2340 = vrot.slane %v2251, 2
      %v2341 = vsel %vm2300, %v2340, %v2339
      %v2342 = vrot.slane %v2252, 1
      %v2343 = vsel %vm2303, %v2342, %v2341
      %v2344 = vrot.slane %v2254, 7
      %v2345 = vrot.slane %v2255, 6
      %v2346 = vsel %vm2288, %v2345, %v2344
      %v2347 = vrot.slane %v2256, 5
      %v2348 = vsel %vm2291, %v2347, %v2346
      %v2349 = vrot.slane %v2257, 4
      %v2350 = vsel %vm2294, %v2349, %v2348
      %v2351 = vrot.slane %v2258, 3
      %v2352 = vsel %vm2297, %v2351, %v2350
      %v2353 = vrot.slane %v2259, 2
      %v2354 = vsel %vm2300, %v2353, %v2352
      %v2355 = vrot.slane %v2260, 1
      %v2356 = vsel %vm2303, %v2355, %v2354
      %v2357 = vrot.slane %v2262, 7
      %v2358 = vrot.slane %v2263, 6
      %v2359 = vsel %vm2288, %v2358, %v2357
      %v2360 = vrot.slane %v2264, 5
      %v2361 = vsel %vm2291, %v2360, %v2359
      %v2362 = vrot.slane %v2265, 4
      %v2363 = vsel %vm2294, %v2362, %v2361
      %v2364 = vrot.slane %v2266, 3
      %v2365 = vsel %vm2297, %v2364, %v2363
      %v2366 = vrot.slane %v2267, 2
      %v2367 = vsel %vm2300, %v2366, %v2365
      %v2368 = vrot.slane %v2268, 1
      %v2369 = vsel %vm2303, %v2368, %v2367
      %v2370 = vrot.slane %v2270, 7
      %v2371 = vrot.slane %v2271, 6
      %v2372 = vsel %vm2288, %v2371, %v2370
      %v2373 = vrot.slane %v2272, 5
      %v2374 = vsel %vm2291, %v2373, %v2372
      %v2375 = vrot.slane %v2273, 4
      %v2376 = vsel %vm2294, %v2375, %v2374
      %v2377 = vrot.slane %v2274, 3
      %v2378 = vsel %vm2297, %v2377, %v2376
      %v2379 = vrot.slane %v2275, 2
      %v2380 = vsel %vm2300, %v2379, %v2378
      %v2381 = vrot.slane %v2276, 1
      %v2382 = vsel %vm2303, %v2381, %v2380
      %v2383 = vrot.slane %v2278, 7
      %v2384 = vrot.slane %v2279, 6
      %v2385 = vsel %vm2288, %v2384, %v2383
      %v2386 = vrot.slane %v2280, 5
      %v2387 = vsel %vm2291, %v2386, %v2385
      %v2388 = vrot.slane %v2281, 4
      %v2389 = vsel %vm2294, %v2388, %v2387
      %v2390 = vrot.slane %v2282, 3
      %v2391 = vsel %vm2297, %v2390, %v2389
      %v2392 = vrot.slane %v2283, 2
      %v2393 = vsel %vm2300, %v2392, %v2391
      %v2394 = vrot.slane %v2284, 1
      %v2395 = vsel %vm2303, %v2394, %v2393
      %v2396 = vpack.c.b16 %v2304, %v2304
      %v2397 = vpack.c.b16 %v2229, %v2229
      %v2398 = vpack.c.b16 %v2317, %v2317
      %v2399 = vpack.c.b16 %v2237, %v2237
      %v2400 = vpack.c.b16 %v2330, %v2330
      %v2401 = vpack.c.b16 %v2245, %v2245
      %v2402 = vpack.c.b16 %v2343, %v2343
      %v2403 = vpack.c.b16 %v2253, %v2253
      %v2404 = vpack.c.b16 %v2356, %v2356
      %v2405 = vpack.c.b16 %v2261, %v2261
      %v2406 = vpack.c.b16 %v2369, %v2369
      %v2407 = vpack.c.b16 %v2269, %v2269
      %v2408 = vpack.c.b16 %v2382, %v2382
      %v2409 = vpack.c.b16 %v2277, %v2277
      %v2410 = vpack.c.b16 %v2395, %v2395
      %v2411 = vpack.c.b16 %v2285, %v2285
      %s2428 = scalar_lea.vmem [#allocation2], 8
      %vm2429 = vcmask 27648
      %vm2430 = vsmask.f32 7938
      %vm2431 = vmand %vm2429, %vm2430
      %v2432 = vld [vmem:[%s2428] sm:$0xf]
      %v2433 = vsel %vm2431, %v2396, %v2432
      %2434 = vst [vmem:[%s2428] sm:$0xf] %v2433
      %vm2435 = vcmask 24576
      %vm2436 = vsmask.f32 256
      %vm2437 = vmand %vm2435, %vm2436
      %v2438 = vld [vmem:[%s2428 + $0x4] sm:$0x1]
      %v2439 = vsel %vm2437, %v2397, %v2438
      %2440 = vst [vmem:[%s2428 + $0x4] sm:$0x1] %v2439
      %v2441 = vld [vmem:[%s2428 + $0x8] sm:$0xf]
      %v2442 = vsel %vm2431, %v2398, %v2441
      %2443 = vst [vmem:[%s2428 + $0x8] sm:$0xf] %v2442
      %v2444 = vld [vmem:[%s2428 + $0xc] sm:$0x1]
      %v2445 = vsel %vm2437, %v2399, %v2444
      %2446 = vst [vmem:[%s2428 + $0xc] sm:$0x1] %v2445
      %v2447 = vld [vmem:[%s2428 + $0x10] sm:$0xf]
      %v2448 = vsel %vm2431, %v2400, %v2447
      %2449 = vst [vmem:[%s2428 + $0x10] sm:$0xf] %v2448
      %v2450 = vld [vmem:[%s2428 + $0x14] sm:$0x1]
      %v2451 = vsel %vm2437, %v2401, %v2450
      %2452 = vst [vmem:[%s2428 + $0x14] sm:$0x1] %v2451
      %v2453 = vld [vmem:[%s2428 + $0x18] sm:$0xf]
      %v2454 = vsel %vm2431, %v2402, %v2453
      %2455 = vst [vmem:[%s2428 + $0x18] sm:$0xf] %v2454
      %v2456 = vld [vmem:[%s2428 + $0x1c] sm:$0x1]
      %v2457 = vsel %vm2437, %v2403, %v2456
      %2458 = vst [vmem:[%s2428 + $0x1c] sm:$0x1] %v2457
      %v2459 = vld [vmem:[%s2428 + $0x20] sm:$0xf]
      %v2460 = vsel %vm2431, %v2404, %v2459
      %2461 = vst [vmem:[%s2428 + $0x20] sm:$0xf] %v2460
      %v2462 = vld [vmem:[%s2428 + $0x24] sm:$0x1]
      %v2463 = vsel %vm2437, %v2405, %v2462
      %2464 = vst [vmem:[%s2428 + $0x24] sm:$0x1] %v2463
      %v2465 = vld [vmem:[%s2428 + $0x28] sm:$0xf]
      %v2466 = vsel %vm2431, %v2406, %v2465
      %2467 = vst [vmem:[%s2428 + $0x28] sm:$0xf] %v2466
      %v2468 = vld [vmem:[%s2428 + $0x2c] sm:$0x1]
      %v2469 = vsel %vm2437, %v2407, %v2468
      %2470 = vst [vmem:[%s2428 + $0x2c] sm:$0x1] %v2469
      %v2471 = vld [vmem:[%s2428 + $0x30] sm:$0xf]
      %v2472 = vsel %vm2431, %v2408, %v2471
      %2473 = vst [vmem:[%s2428 + $0x30] sm:$0xf] %v2472
      %v2474 = vld [vmem:[%s2428 + $0x34] sm:$0x1]
      %v2475 = vsel %vm2437, %v2409, %v2474
      %2476 = vst [vmem:[%s2428 + $0x34] sm:$0x1] %v2475
      %v2477 = vld [vmem:[%s2428 + $0x38] sm:$0xf]
      %v2478 = vsel %vm2431, %v2410, %v2477
      %2479 = vst [vmem:[%s2428 + $0x38] sm:$0xf] %v2478
      %v2480 = vld [vmem:[%s2428 + $0x3c] sm:$0x1]
      %v2481 = vsel %vm2437, %v2411, %v2480
      %2482 = vst [vmem:[%s2428 + $0x3c] sm:$0x1] %v2481
      %v2483 = vld [vmem:[#allocation2] sm:$0xf]
      %v2484 = vld [vmem:[#allocation2 + $0x4] sm:$0x1]
      %v2485 = vld [vmem:[#allocation2 + $0x8] sm:$0xf]
      %v2486 = vld [vmem:[#allocation2 + $0xc] sm:$0x1]
      %v2487 = vld [vmem:[#allocation2 + $0x10] sm:$0xf]
      %v2488 = vld [vmem:[#allocation2 + $0x14] sm:$0x1]
      %v2489 = vld [vmem:[#allocation2 + $0x18] sm:$0xf]
      %v2490 = vld [vmem:[#allocation2 + $0x1c] sm:$0x1]
      %v2491 = vld [vmem:[#allocation2 + $0x20] sm:$0xf]
      %v2492 = vld [vmem:[#allocation2 + $0x24] sm:$0x1]
      %v2493 = vld [vmem:[#allocation2 + $0x28] sm:$0xf]
      %v2494 = vld [vmem:[#allocation2 + $0x2c] sm:$0x1]
      %v2495 = vld [vmem:[#allocation2 + $0x30] sm:$0xf]
      %v2496 = vld [vmem:[#allocation2 + $0x34] sm:$0x1]
      %v2497 = vld [vmem:[#allocation2 + $0x38] sm:$0xf]
      %v2498 = vld [vmem:[#allocation2 + $0x3c] sm:$0x1]
      %v2499 = vld [vmem:[#allocation2 + $0x40] sm:$0xf]
      %v2500 = vld [vmem:[#allocation2 + $0x44] sm:$0x1]
      %v2501 = vld [vmem:[#allocation2 + $0x48] sm:$0xf]
      %v2502 = vld [vmem:[#allocation2 + $0x4c] sm:$0x1]
      %vm2503 = vsmask.f32 3328
      %vm2504 = vsmask.f32 7440
      %vm2505 = vmor %vm2503, %vm2504
      %v2507 = vshrl.u32 %v2483, 16
      %v2509 = vrot.slane %v2507, 4
      %v2510 = vshll.u32 %v2483, 16
      %v2512 = vrot.slane %v2510, 5
      %v2513 = vor.u32 %v2509, %v2512
      %v2514 = vrot.slane %v2513, 4
      %v2516 = vshll.u32 %v2484, 16
      %v2518 = vrot.slane %v2516, 5
      %v2519 = vsel %vm2505, %v2514, %v2518
      %v2521 = vshrl.u32 %v2485, 16
      %v2523 = vrot.slane %v2521, 4
      %v2524 = vshll.u32 %v2485, 16
      %v2526 = vrot.slane %v2524, 5
      %v2527 = vor.u32 %v2523, %v2526
      %v2528 = vrot.slane %v2527, 4
      %v2530 = vshll.u32 %v2486, 16
      %v2532 = vrot.slane %v2530, 5
      %v2533 = vsel %vm2505, %v2528, %v2532
      %v2535 = vshrl.u32 %v2487, 16
      %v2537 = vrot.slane %v2535, 4
      %v2538 = vshll.u32 %v2487, 16
      %v2540 = vrot.slane %v2538, 5
      %v2541 = vor.u32 %v2537, %v2540
      %v2542 = vrot.slane %v2541, 4
      %v2544 = vshll.u32 %v2488, 16
      %v2546 = vrot.slane %v2544, 5
      %v2547 = vsel %vm2505, %v2542, %v2546
      %v2549 = vshrl.u32 %v2489, 16
      %v2551 = vrot.slane %v2549, 4
      %v2552 = vshll.u32 %v2489, 16
      %v2554 = vrot.slane %v2552, 5
      %v2555 = vor.u32 %v2551, %v2554
      %v2556 = vrot.slane %v2555, 4
      %v2558 = vshll.u32 %v2490, 16
      %v2560 = vrot.slane %v2558, 5
      %v2561 = vsel %vm2505, %v2556, %v2560
      %v2563 = vshrl.u32 %v2491, 16
      %v2565 = vrot.slane %v2563, 4
      %v2566 = vshll.u32 %v2491, 16
      %v2568 = vrot.slane %v2566, 5
      %v2569 = vor.u32 %v2565, %v2568
      %v2570 = vrot.slane %v2569, 4
      %v2572 = vshll.u32 %v2492, 16
      %v2574 = vrot.slane %v2572, 5
      %v2575 = vsel %vm2505, %v2570, %v2574
      %v2577 = vshrl.u32 %v2493, 16
      %v2579 = vrot.slane %v2577, 4
      %v2580 = vshll.u32 %v2493, 16
      %v2582 = vrot.slane %v2580, 5
      %v2583 = vor.u32 %v2579, %v2582
      %v2584 = vrot.slane %v2583, 4
      %v2586 = vshll.u32 %v2494, 16
      %v2588 = vrot.slane %v2586, 5
      %v2589 = vsel %vm2505, %v2584, %v2588
      %v2591 = vshrl.u32 %v2495, 16
      %v2593 = vrot.slane %v2591, 4
      %v2594 = vshll.u32 %v2495, 16
      %v2596 = vrot.slane %v2594, 5
      %v2597 = vor.u32 %v2593, %v2596
      %v2598 = vrot.slane %v2597, 4
      %v2600 = vshll.u32 %v2496, 16
      %v2602 = vrot.slane %v2600, 5
      %v2603 = vsel %vm2505, %v2598, %v2602
      %v2605 = vshrl.u32 %v2497, 16
      %v2607 = vrot.slane %v2605, 4
      %v2608 = vshll.u32 %v2497, 16
      %v2610 = vrot.slane %v2608, 5
      %v2611 = vor.u32 %v2607, %v2610
      %v2612 = vrot.slane %v2611, 4
      %v2614 = vshll.u32 %v2498, 16
      %v2616 = vrot.slane %v2614, 5
      %v2617 = vsel %vm2505, %v2612, %v2616
      %vm2634 = vcmask 1042432
      %vm2635 = vcmask 1046532
      %vm2636 = vmor %vm2634, %vm2635
      %v2637 = vrot.slane %v2483, 5
      %v2638 = vrot.slane %v2637, 4
      %v2639 = vrot.slane %v2484, 5
      %v2640 = vsel %vm2636, %v2638, %v2639
      %v2641 = vrot.slane %v2485, 5
      %v2642 = vrot.slane %v2641, 4
      %v2643 = vrot.slane %v2486, 5
      %v2644 = vsel %vm2636, %v2642, %v2643
      %v2645 = vrot.slane %v2487, 5
      %v2646 = vrot.slane %v2645, 4
      %v2647 = vrot.slane %v2488, 5
      %v2648 = vsel %vm2636, %v2646, %v2647
      %v2649 = vrot.slane %v2489, 5
      %v2650 = vrot.slane %v2649, 4
      %v2651 = vrot.slane %v2490, 5
      %v2652 = vsel %vm2636, %v2650, %v2651
      %v2653 = vrot.slane %v2491, 5
      %v2654 = vrot.slane %v2653, 4
      %v2655 = vrot.slane %v2492, 5
      %v2656 = vsel %vm2636, %v2654, %v2655
      %v2657 = vrot.slane %v2493, 5
      %v2658 = vrot.slane %v2657, 4
      %v2659 = vrot.slane %v2494, 5
      %v2660 = vsel %vm2636, %v2658, %v2659
      %v2661 = vrot.slane %v2495, 5
      %v2662 = vrot.slane %v2661, 4
      %v2663 = vrot.slane %v2496, 5
      %v2664 = vsel %vm2636, %v2662, %v2663
      %v2665 = vrot.slane %v2497, 5
      %v2666 = vrot.slane %v2665, 4
      %v2667 = vrot.slane %v2498, 5
      %v2668 = vsel %vm2636, %v2666, %v2667
      %v2670 = vshrl.u32 %v2499, 16
      %v2672 = vrot.slane %v2670, 4
      %v2673 = vshll.u32 %v2499, 16
      %v2675 = vrot.slane %v2673, 5
      %v2676 = vor.u32 %v2672, %v2675
      %v2677 = vrot.slane %v2676, 4
      %v2679 = vshll.u32 %v2500, 16
      %v2681 = vrot.slane %v2679, 5
      %v2682 = vsel %vm2505, %v2677, %v2681
      %v2685 = vrot.slane %v2499, 5
      %v2686 = vrot.slane %v2685, 4
      %v2687 = vrot.slane %v2500, 5
      %v2688 = vsel %vm2636, %v2686, %v2687
      %v2690 = vshrl.u32 %v2501, 16
      %v2692 = vrot.slane %v2690, 4
      %v2693 = vshll.u32 %v2501, 16
      %v2695 = vrot.slane %v2693, 5
      %v2696 = vor.u32 %v2692, %v2695
      %v2697 = vrot.slane %v2696, 4
      %v2699 = vshll.u32 %v2502, 16
      %v2701 = vrot.slane %v2699, 5
      %v2702 = vsel %vm2505, %v2697, %v2701
      %v2705 = vrot.slane %v2501, 5
      %v2706 = vrot.slane %v2705, 4
      %v2707 = vrot.slane %v2502, 5
      %v2708 = vsel %vm2636, %v2706, %v2707
      %v2709 = vunpack.c.l.b16 %v2483
      %v2710 = vunpack.c.l.b16 %v2485
      %v2711 = vunpack.c.l.b16 %v2487
      %v2712 = vunpack.c.l.b16 %v2489
      %v2713 = vunpack.c.l.b16 %v2491
      %v2714 = vunpack.c.l.b16 %v2493
      %v2715 = vunpack.c.l.b16 %v2495
      %v2716 = vunpack.c.l.b16 %v2497
      %v2717 = vpack.c.b16 %v2710, %v2709
      %v2718 = vpack.c.b16 %v2712, %v2711
      %v2719 = vpack.c.b16 %v2714, %v2713
      %v2720 = vpack.c.b16 %v2716, %v2715
      %v2721 = vunpack.c.l.b16 %v2519
      %v2722 = vunpack.c.l.b16 %v2533
      %v2723 = vunpack.c.l.b16 %v2547
      %v2724 = vunpack.c.l.b16 %v2561
      %v2725 = vunpack.c.l.b16 %v2575
      %v2726 = vunpack.c.l.b16 %v2589
      %v2727 = vunpack.c.l.b16 %v2603
      %v2728 = vunpack.c.l.b16 %v2617
      %v2729 = vpack.c.b16 %v2722, %v2721
      %v2730 = vpack.c.b16 %v2724, %v2723
      %v2731 = vpack.c.b16 %v2726, %v2725
      %v2732 = vpack.c.b16 %v2728, %v2727
      %2733 = vrot.lane.b32.xlu0 %v2729, 4
      %v2734 = vpop.permute.xlu0 %2733
      %2735 = vrot.lane.b32.xlu0 %v2730, 4
      %v2736 = vpop.permute.xlu0 %2735
      %2737 = vrot.lane.b32.xlu0 %v2731, 4
      %v2738 = vpop.permute.xlu0 %2737
      %2739 = vrot.lane.b32.xlu0 %v2732, 4
      %v2740 = vpop.permute.xlu0 %2739
      %v2741 = vunpack.c.l.b16 %v2640
      %v2742 = vunpack.c.l.b16 %v2644
      %v2743 = vunpack.c.l.b16 %v2648
      %v2744 = vunpack.c.l.b16 %v2652
      %v2745 = vunpack.c.l.b16 %v2656
      %v2746 = vunpack.c.l.b16 %v2660
      %v2747 = vunpack.c.l.b16 %v2664
      %v2748 = vunpack.c.l.b16 %v2668
      %v2749 = vpack.c.b16 %v2742, %v2741
      %v2750 = vpack.c.b16 %v2744, %v2743
      %v2751 = vpack.c.b16 %v2746, %v2745
      %v2752 = vpack.c.b16 %v2748, %v2747
      %2753 = vrot.lane.b32.xlu0 %v2749, 8
      %v2754 = vpop.permute.xlu0 %2753
      %2755 = vrot.lane.b32.xlu0 %v2750, 8
      %v2756 = vpop.permute.xlu0 %2755
      %2757 = vrot.lane.b32.xlu0 %v2751, 8
      %v2758 = vpop.permute.xlu0 %2757
      %2759 = vrot.lane.b32.xlu0 %v2752, 8
      %v2760 = vpop.permute.xlu0 %2759
      %v2761 = vunpack.c.l.b16 %v2499
      %v2762 = vpack.c.b16 %v2711, %v2710
      %v2763 = vpack.c.b16 %v2713, %v2712
      %v2764 = vpack.c.b16 %v2715, %v2714
      %v2765 = vpack.c.b16 %v2761, %v2716
      %2766 = vrot.lane.b32.xlu0 %v2762, 12
      %v2767 = vpop.permute.xlu0 %2766
      %2768 = vrot.lane.b32.xlu0 %v2763, 12
      %v2769 = vpop.permute.xlu0 %2768
      %2770 = vrot.lane.b32.xlu0 %v2764, 12
      %v2771 = vpop.permute.xlu0 %2770
      %2772 = vrot.lane.b32.xlu0 %v2765, 12
      %v2773 = vpop.permute.xlu0 %2772
      %v2774 = vunpack.c.l.b16 %v2682
      %v2775 = vpack.c.b16 %v2723, %v2722
      %v2776 = vpack.c.b16 %v2725, %v2724
      %v2777 = vpack.c.b16 %v2727, %v2726
      %v2778 = vpack.c.b16 %v2774, %v2728
      %2779 = vrot.lane.b32.xlu0 %v2775, 16
      %v2780 = vpop.permute.xlu0 %2779
      %2781 = vrot.lane.b32.xlu0 %v2776, 16
      %v2782 = vpop.permute.xlu0 %2781
      %2783 = vrot.lane.b32.xlu0 %v2777, 16
      %v2784 = vpop.permute.xlu0 %2783
      %2785 = vrot.lane.b32.xlu0 %v2778, 16
      %v2786 = vpop.permute.xlu0 %2785
      %v2787 = vunpack.c.l.b16 %v2688
      %v2788 = vpack.c.b16 %v2743, %v2742
      %v2789 = vpack.c.b16 %v2745, %v2744
      %v2790 = vpack.c.b16 %v2747, %v2746
      %v2791 = vpack.c.b16 %v2787, %v2748
      %2792 = vrot.lane.b32.xlu0 %v2788, 20
      %v2793 = vpop.permute.xlu0 %2792
      %2794 = vrot.lane.b32.xlu0 %v2789, 20
      %v2795 = vpop.permute.xlu0 %2794
      %2796 = vrot.lane.b32.xlu0 %v2790, 20
      %v2797 = vpop.permute.xlu0 %2796
      %2798 = vrot.lane.b32.xlu0 %v2791, 20
      %v2799 = vpop.permute.xlu0 %2798
      %v2800 = vunpack.c.l.b16 %v2501
      %v2801 = vpack.c.b16 %v2800, %v2761
      %2802 = vrot.lane.b32.xlu0 %v2718, 24
      %v2803 = vpop.permute.xlu0 %2802
      %2804 = vrot.lane.b32.xlu0 %v2719, 24
      %v2805 = vpop.permute.xlu0 %2804
      %2806 = vrot.lane.b32.xlu0 %v2720, 24
      %v2807 = vpop.permute.xlu0 %2806
      %2808 = vrot.lane.b32.xlu0 %v2801, 24
      %v2809 = vpop.permute.xlu0 %2808
      %v2810 = vunpack.c.l.b16 %v2702
      %v2811 = vpack.c.b16 %v2810, %v2774
      %2812 = vrot.lane.b32.xlu0 %v2730, 28
      %v2813 = vpop.permute.xlu0 %2812
      %2814 = vrot.lane.b32.xlu0 %v2731, 28
      %v2815 = vpop.permute.xlu0 %2814
      %2816 = vrot.lane.b32.xlu0 %v2732, 28
      %v2817 = vpop.permute.xlu0 %2816
      %2818 = vrot.lane.b32.xlu0 %v2811, 28
      %v2819 = vpop.permute.xlu0 %2818
      %v2820 = vunpack.c.l.b16 %v2708
      %v2821 = vpack.c.b16 %v2820, %v2787
      %2822 = vrot.lane.b32.xlu0 %v2750, 32
      %v2823 = vpop.permute.xlu0 %2822
      %2824 = vrot.lane.b32.xlu0 %v2751, 32
      %v2825 = vpop.permute.xlu0 %2824
      %2826 = vrot.lane.b32.xlu0 %v2752, 32
      %v2827 = vpop.permute.xlu0 %2826
      %2828 = vrot.lane.b32.xlu0 %v2821, 32
      %v2829 = vpop.permute.xlu0 %2828
      %vm2830 = vcmask 31744
      %v2833 = vsel %vm2830, %v2717, %v2734
      %v2836 = vsel %vm2830, %v2718, %v2736
      %v2839 = vsel %vm2830, %v2719, %v2738
      %v2842 = vsel %vm2830, %v2720, %v2740
      %vm2843 = vcmask 64512
      %v2845 = vsel %vm2843, %v2833, %v2754
      %v2847 = vsel %vm2843, %v2836, %v2756
      %v2849 = vsel %vm2843, %v2839, %v2758
      %v2851 = vsel %vm2843, %v2842, %v2760
      %vm2852 = vcmask 97280
      %v2854 = vsel %vm2852, %v2845, %v2767
      %v2856 = vsel %vm2852, %v2847, %v2769
      %v2858 = vsel %vm2852, %v2849, %v2771
      %v2860 = vsel %vm2852, %v2851, %v2773
      %vm2861 = vcmask 130048
      %v2863 = vsel %vm2861, %v2854, %v2780
      %v2865 = vsel %vm2861, %v2856, %v2782
      %v2867 = vsel %vm2861, %v2858, %v2784
      %v2869 = vsel %vm2861, %v2860, %v2786
      %vm2870 = vcmask 162816
      %v2872 = vsel %vm2870, %v2863, %v2793
      %v2874 = vsel %vm2870, %v2865, %v2795
      %v2876 = vsel %vm2870, %v2867, %v2797
      %v2878 = vsel %vm2870, %v2869, %v2799
      %vm2879 = vcmask 195584
      %v2881 = vsel %vm2879, %v2872, %v2803
      %v2883 = vsel %vm2879, %v2874, %v2805
      %v2885 = vsel %vm2879, %v2876, %v2807
      %v2887 = vsel %vm2879, %v2878, %v2809
      %vm2888 = vcmask 228352
      %v2890 = vsel %vm2888, %v2881, %v2813
      %v2892 = vsel %vm2888, %v2883, %v2815
      %v2894 = vsel %vm2888, %v2885, %v2817
      %v2896 = vsel %vm2888, %v2887, %v2819
      %vm2897 = vcmask 261120
      %v2899 = vsel %vm2897, %v2890, %v2823
      %v2901 = vsel %vm2897, %v2892, %v2825
      %v2903 = vsel %vm2897, %v2894, %v2827
      %v2905 = vsel %vm2897, %v2896, %v2829
      %v2906 = vld [vmem:[%s1] sm:$0xf]
      %v2907 = vld [vmem:[%s1 + $0x4] sm:$0xf]
      %v2908 = vld [vmem:[%s1 + $0x8] sm:$0xf]
      %v2909 = vld [vmem:[%s1 + $0xc] sm:$0xf]
      %v2910 = vld [vmem:[%s1 + $0x10] sm:$0x3]
      %v2916 = vunpack.c.l.b16 %v2906
      %v2917 = vunpack.c.l.b16 %v2907
      %v2918 = vunpack.c.l.b16 %v2908
      %v2919 = vunpack.c.l.b16 %v2909
      %v2920 = vunpack.c.l.b16 %v2910
      %v2921 = vpack.c.b16 %v2917, %v2916
      %v2922 = vpack.c.b16 %v2919, %v2918
      %v2923 = vpack.c.b16 %v2920, %v2920
      %vm2926 = vcmask 293888
      %v2927 = vsel %vm2926, %v2899, 0
      %v2929 = vsel %vm2926, %v2901, 0
      %v2931 = vsel %vm2926, %v2903, 0
      %v2933 = vsel %vm2926, %v2905, 0
      %vm2935 = vcmask 1041408
      %v2937 = vsel %vm2935, %v2923, 0
      %2939 = vmatprep.subr.bf16.mxu0 0
      %2940 = vmatpush1.bf16.msra.mxu0 %v2921
      %2941 = vmatprep.subr.bf16.mxu0 0
      %2942 = vmatpush1.bf16.msra.mxu0 %v2922
      %2943 = vmatprep.subr.bf16.mxu0 0
      %2944 = vmatpush1.bf16.msra.mxu0 %v2937
      %2945 = vmatprep.subr.bf16.mxu0 0
      %2946 = vmatpush1.bf16.msra.mxu0 0
      %2947 = vmatprep.subr.bf16.mxu0 0
      %2948 = vmatpush1.bf16.msra.mxu0 0
      %2949 = vmatprep.subr.bf16.mxu0 0
      %2950 = vmatpush1.bf16.msra.mxu0 0
      %2951 = vmatprep.subr.bf16.mxu0 0
      %2952 = vmatpush1.bf16.msra.mxu0 0
      %2953 = vmatprep.subr.bf16.mxu0 0
      %2954 = vmatpush1.bf16.msra.mxu0 0
      %2955 = vmatprep.subr.bf16.mxu0 0
      %2956 = vmatpush1.bf16.msra.mxu0 0
      %2957 = vmatprep.subr.bf16.mxu0 0
      %2958 = vmatpush1.bf16.msra.mxu0 0
      %2959 = vmatprep.subr.bf16.mxu0 0
      %2960 = vmatpush1.bf16.msra.mxu0 0
      %2961 = vmatprep.subr.bf16.mxu0 0
      %2962 = vmatpush1.bf16.msra.mxu0 0
      %2963 = vmatprep.subr.bf16.mxu0 0
      %2964 = vmatpush1.bf16.msra.mxu0 0
      %2965 = vmatprep.subr.bf16.mxu0 0
      %2966 = vmatpush1.bf16.msra.mxu0 0
      %2967 = vmatprep.subr.bf16.mxu0 0
      %2968 = vmatpush1.bf16.msra.mxu0 0
      %2969 = vmatprep.subr.bf16.mxu0 0
      %2970 = vmatpush1.bf16.msra.mxu0 0
      %2971 = vmatprep.mubr.bf16.mxu0 0
      %2972 = vmatmul.mubr.bf16.gmra.mrb[0].mxu0 %v2927
      %v2973 = vpop.f32.mrb[0].mxu0
      %v2974 = vadd.f32 0.0, %v2973
      %v2975 = vpop.f32.mrb[0].mxu0
      %v2976 = vpop.f32.mrb[0].mxu0
      %v2977 = vadd.f32 0.0, %v2976
      %v2978 = vpop.f32.mrb[0].mxu0
      %2979 = vmatprep.mubr.bf16.mxu0 0
      %2980 = vmatmul.mubr.bf16.gmra.mrb[0].mxu0 %v2929
      %v2981 = vpop.f32.mrb[0].mxu0
      %v2982 = vadd.f32 0.0, %v2981
      %v2983 = vpop.f32.mrb[0].mxu0
      %v2984 = vpop.f32.mrb[0].mxu0
      %v2985 = vadd.f32 0.0, %v2984
      %v2986 = vpop.f32.mrb[0].mxu0
      %2987 = vmatprep.mubr.bf16.mxu0 0
      %2988 = vmatmul.mubr.bf16.gmra.mrb[0].mxu0 %v2931
      %v2989 = vpop.f32.mrb[0].mxu0
      %v2990 = vadd.f32 0.0, %v2989
      %v2991 = vpop.f32.mrb[0].mxu0
      %v2992 = vpop.f32.mrb[0].mxu0
      %v2993 = vadd.f32 0.0, %v2992
      %v2994 = vpop.f32.mrb[0].mxu0
      %2995 = vmatprep.mubr.bf16.mxu0 0
      %2996 = vmatmul.mubr.bf16.gmra.mrb[0].mxu0 %v2933
      %v2997 = vpop.f32.mrb[0].mxu0
      %v2998 = vadd.f32 0.0, %v2997
      %v2999 = vpop.f32.mrb[0].mxu0
      %v3000 = vpop.f32.mrb[0].mxu0
      %v3001 = vadd.f32 0.0, %v3000
      %v3002 = vpop.f32.mrb[0].mxu0
      %3003 = vdwg.mxu0
      %v3004 = vld [vmem:[%s2] sm:$0x1]
      %v3006 = vlaneseq
      %v3007 = vshrl.u32 %v3006, 7
      %v3008 = vsub.s32 0, %v3007
      %v3009 = vrot.slane %v3004, %v3008
      %v3011 = vmul.f32 %v2974, %v3009
      %v3012 = vmul.f32 %v2977, %v3009
      %v3013 = vmul.f32 %v2982, %v3009
      %v3014 = vmul.f32 %v2985, %v3009
      %v3015 = vmul.f32 %v2990, %v3009
      %v3016 = vmul.f32 %v2993, %v3009
      %v3017 = vmul.f32 %v2998, %v3009
      %v3018 = vmul.f32 %v3001, %v3009
      %v3019 = vld [vmem:[%s3] sm:$0x1]
      %v3021 = vlaneseq
      %v3022 = vshrl.u32 %v3021, 7
      %v3023 = vsub.s32 0, %v3022
      %v3024 = vrot.slane %v3019, %v3023
      %v3026 = vadd.f32 %v3011, %v3024
      %v3027 = vadd.f32 %v3012, %v3024
      %v3028 = vadd.f32 %v3013, %v3024
      %v3029 = vadd.f32 %v3014, %v3024
      %v3030 = vadd.f32 %v3015, %v3024
      %v3031 = vadd.f32 %v3016, %v3024
      %v3032 = vadd.f32 %v3017, %v3024
      %v3033 = vadd.f32 %v3018, %v3024
      %v3034 = vmax.f32 %v3026, 0.0
      %v3035 = vmax.f32 %v3027, 0.0
      %v3036 = vmax.f32 %v3028, 0.0
      %v3037 = vmax.f32 %v3029, 0.0
      %v3038 = vmax.f32 %v3030, 0.0
      %v3039 = vmax.f32 %v3031, 0.0
      %v3040 = vmax.f32 %v3032, 0.0
      %v3041 = vmax.f32 %v3033, 0.0
      %v3042 = vpack.c.bf16 %v3035, %v3034
      %v3043 = vpack.c.bf16 %v3037, %v3036
      %v3044 = vpack.c.bf16 %v3039, %v3038
      %v3045 = vpack.c.bf16 %v3041, %v3040
      %v3050 = vunpack.c.l.b16 %v3042
      %v3051 = vunpack.c.h.b16 %v3042
      %v3052 = vunpack.c.l.b16 %v3043
      %v3053 = vunpack.c.h.b16 %v3043
      %v3054 = vunpack.c.l.b16 %v3044
      %v3055 = vunpack.c.h.b16 %v3044
      %v3056 = vunpack.c.l.b16 %v3045
      %v3057 = vunpack.c.h.b16 %v3045
      %v3058 = vpack.c.b16 %v3050, %v3050
      %v3059 = vpack.c.b16 %v3051, %v3051
      %v3060 = vpack.c.b16 %v3052, %v3052
      %v3061 = vpack.c.b16 %v3053, %v3053
      %v3062 = vpack.c.b16 %v3054, %v3054
      %v3063 = vpack.c.b16 %v3055, %v3055
      %v3064 = vpack.c.b16 %v3056, %v3056
      %v3065 = vpack.c.b16 %v3057, %v3057
      %vm3066 = vcmask 60416
      %3067 = vst.msk [vmem:[#allocation3] sm:$0xf] %vm3066, 0
      %vm3068 = vcmask 57344
      %3069 = vst.msk [vmem:[#allocation3 + $0x4] sm:$0x1] %vm3068, 0
      %3070 = vst.msk [vmem:[#allocation3 + $0x8] sm:$0xf] %vm3066, 0
      %3071 = vst.msk [vmem:[#allocation3 + $0xc] sm:$0x1] %vm3068, 0
      %3072 = vst.msk [vmem:[#allocation3 + $0x10] sm:$0xf] %vm3066, 0
      %3073 = vst.msk [vmem:[#allocation3 + $0x14] sm:$0x1] %vm3068, 0
      %3074 = vst.msk [vmem:[#allocation3 + $0x18] sm:$0xf] %vm3066, 0
      %3075 = vst.msk [vmem:[#allocation3 + $0x1c] sm:$0x1] %vm3068, 0
      %3076 = vst.msk [vmem:[#allocation3 + $0x20] sm:$0xf] %vm3066, 0
      %3077 = vst.msk [vmem:[#allocation3 + $0x24] sm:$0x1] %vm3068, 0
      %3078 = vst.msk [vmem:[#allocation3 + $0x28] sm:$0xf] %vm3066, 0
      %3079 = vst.msk [vmem:[#allocation3 + $0x2c] sm:$0x1] %vm3068, 0
      %3080 = vst.msk [vmem:[#allocation3 + $0x30] sm:$0xf] %vm3066, 0
      %3081 = vst.msk [vmem:[#allocation3 + $0x34] sm:$0x1] %vm3068, 0
      %3082 = vst.msk [vmem:[#allocation3 + $0x38] sm:$0xf] %vm3066, 0
      %3083 = vst.msk [vmem:[#allocation3 + $0x3c] sm:$0x1] %vm3068, 0
      %3084 = vst.msk [vmem:[#allocation3 + $0x40] sm:$0xf] %vm3066, 0
      %3085 = vst.msk [vmem:[#allocation3 + $0x44] sm:$0x1] %vm3068, 0
      %3086 = vst.msk [vmem:[#allocation3 + $0x48] sm:$0xf] %vm3066, 0
      %3087 = vst.msk [vmem:[#allocation3 + $0x4c] sm:$0x1] %vm3068, 0
      %v3089 = vshrl.u32 %v3058, 16
      %v3091 = vrot.slane %v3089, 7
      %v3092 = vshll.u32 %v3058, 16
      %v3094 = vor.u32 %v3091, %v3092
      %v3095 = vrot.slane %v3091, 4
      %v3097 = vshrl.u32 %v3059, 16
      %v3099 = vrot.slane %v3097, 7
      %v3100 = vshll.u32 %v3059, 16
      %v3102 = vor.u32 %v3099, %v3100
      %v3103 = vrot.slane %v3099, 4
      %v3105 = vshrl.u32 %v3060, 16
      %v3107 = vrot.slane %v3105, 7
      %v3108 = vshll.u32 %v3060, 16
      %v3110 = vor.u32 %v3107, %v3108
      %v3111 = vrot.slane %v3107, 4
      %v3113 = vshrl.u32 %v3061, 16
      %v3115 = vrot.slane %v3113, 7
      %v3116 = vshll.u32 %v3061, 16
      %v3118 = vor.u32 %v3115, %v3116
      %v3119 = vrot.slane %v3115, 4
      %v3121 = vshrl.u32 %v3062, 16
      %v3123 = vrot.slane %v3121, 7
      %v3124 = vshll.u32 %v3062, 16
      %v3126 = vor.u32 %v3123, %v3124
      %v3127 = vrot.slane %v3123, 4
      %v3129 = vshrl.u32 %v3063, 16
      %v3131 = vrot.slane %v3129, 7
      %v3132 = vshll.u32 %v3063, 16
      %v3134 = vor.u32 %v3131, %v3132
      %v3135 = vrot.slane %v3131, 4
      %v3137 = vshrl.u32 %v3064, 16
      %v3139 = vrot.slane %v3137, 7
      %v3140 = vshll.u32 %v3064, 16
      %v3142 = vor.u32 %v3139, %v3140
      %v3143 = vrot.slane %v3139, 4
      %v3145 = vshrl.u32 %v3065, 16
      %v3147 = vrot.slane %v3145, 7
      %v3148 = vshll.u32 %v3065, 16
      %v3150 = vor.u32 %v3147, %v3148
      %v3151 = vrot.slane %v3147, 4
      %s3168 = scalar_lea.vmem [#allocation3], 8
      %vm3169 = vcmask 60416
      %vm3170 = vmand %vm3169, %vm2430
      %v3171 = vld [vmem:[%s3168] sm:$0xf]
      %v3172 = vsel %vm3170, %v3094, %v3171
      %3173 = vst [vmem:[%s3168] sm:$0xf] %v3172
      %vm3174 = vcmask 57344
      %vm3175 = vmand %vm3174, %vm2436
      %v3176 = vld [vmem:[%s3168 + $0x4] sm:$0x1]
      %v3177 = vsel %vm3175, %v3095, %v3176
      %3178 = vst [vmem:[%s3168 + $0x4] sm:$0x1] %v3177
      %v3179 = vld [vmem:[%s3168 + $0x8] sm:$0xf]
      %v3180 = vsel %vm3170, %v3102, %v3179
      %3181 = vst [vmem:[%s3168 + $0x8] sm:$0xf] %v3180
      %v3182 = vld [vmem:[%s3168 + $0xc] sm:$0x1]
      %v3183 = vsel %vm3175, %v3103, %v3182
      %3184 = vst [vmem:[%s3168 + $0xc] sm:$0x1] %v3183
      %v3185 = vld [vmem:[%s3168 + $0x10] sm:$0xf]
      %v3186 = vsel %vm3170, %v3110, %v3185
      %3187 = vst [vmem:[%s3168 + $0x10] sm:$0xf] %v3186
      %v3188 = vld [vmem:[%s3168 + $0x14] sm:$0x1]
      %v3189 = vsel %vm3175, %v3111, %v3188
      %3190 = vst [vmem:[%s3168 + $0x14] sm:$0x1] %v3189
      %v3191 = vld [vmem:[%s3168 + $0x18] sm:$0xf]
      %v3192 = vsel %vm3170, %v3118, %v3191
      %3193 = vst [vmem:[%s3168 + $0x18] sm:$0xf] %v3192
      %v3194 = vld [vmem:[%s3168 + $0x1c] sm:$0x1]
      %v3195 = vsel %vm3175, %v3119, %v3194
      %3196 = vst [vmem:[%s3168 + $0x1c] sm:$0x1] %v3195
      %v3197 = vld [vmem:[%s3168 + $0x20] sm:$0xf]
      %v3198 = vsel %vm3170, %v3126, %v3197
      %3199 = vst [vmem:[%s3168 + $0x20] sm:$0xf] %v3198
      %v3200 = vld [vmem:[%s3168 + $0x24] sm:$0x1]
      %v3201 = vsel %vm3175, %v3127, %v3200
      %3202 = vst [vmem:[%s3168 + $0x24] sm:$0x1] %v3201
      %v3203 = vld [vmem:[%s3168 + $0x28] sm:$0xf]
      %v3204 = vsel %vm3170, %v3134, %v3203
      %3205 = vst [vmem:[%s3168 + $0x28] sm:$0xf] %v3204
      %v3206 = vld [vmem:[%s3168 + $0x2c] sm:$0x1]
      %v3207 = vsel %vm3175, %v3135, %v3206
      %3208 = vst [vmem:[%s3168 + $0x2c] sm:$0x1] %v3207
      %v3209 = vld [vmem:[%s3168 + $0x30] sm:$0xf]
      %v3210 = vsel %vm3170, %v3142, %v3209
      %3211 = vst [vmem:[%s3168 + $0x30] sm:$0xf] %v3210
      %v3212 = vld [vmem:[%s3168 + $0x34] sm:$0x1]
      %v3213 = vsel %vm3175, %v3143, %v3212
      %3214 = vst [vmem:[%s3168 + $0x34] sm:$0x1] %v3213
      %v3215 = vld [vmem:[%s3168 + $0x38] sm:$0xf]
      %v3216 = vsel %vm3170, %v3150, %v3215
      %3217 = vst [vmem:[%s3168 + $0x38] sm:$0xf] %v3216
      %v3218 = vld [vmem:[%s3168 + $0x3c] sm:$0x1]
      %v3219 = vsel %vm3175, %v3151, %v3218
      %3220 = vst [vmem:[%s3168 + $0x3c] sm:$0x1] %v3219
      %v3221 = vld [vmem:[#allocation3] sm:$0xf]
      %v3222 = vld [vmem:[#allocation3 + $0x4] sm:$0x1]
      %v3223 = vld [vmem:[#allocation3 + $0x8] sm:$0xf]
      %v3224 = vld [vmem:[#allocation3 + $0xc] sm:$0x1]
      %v3225 = vld [vmem:[#allocation3 + $0x10] sm:$0xf]
      %v3226 = vld [vmem:[#allocation3 + $0x14] sm:$0x1]
      %v3227 = vld [vmem:[#allocation3 + $0x18] sm:$0xf]
      %v3228 = vld [vmem:[#allocation3 + $0x1c] sm:$0x1]
      %v3229 = vld [vmem:[#allocation3 + $0x20] sm:$0xf]
      %v3230 = vld [vmem:[#allocation3 + $0x24] sm:$0x1]
      %v3231 = vld [vmem:[#allocation3 + $0x28] sm:$0xf]
      %v3232 = vld [vmem:[#allocation3 + $0x2c] sm:$0x1]
      %v3233 = vld [vmem:[#allocation3 + $0x30] sm:$0xf]
      %v3234 = vld [vmem:[#allocation3 + $0x34] sm:$0x1]
      %v3235 = vld [vmem:[#allocation3 + $0x38] sm:$0xf]
      %v3236 = vld [vmem:[#allocation3 + $0x3c] sm:$0x1]
      %v3237 = vld [vmem:[#allocation3 + $0x40] sm:$0xf]
      %v3238 = vld [vmem:[#allocation3 + $0x44] sm:$0x1]
      %v3239 = vld [vmem:[#allocation3 + $0x48] sm:$0xf]
      %v3240 = vld [vmem:[#allocation3 + $0x4c] sm:$0x1]
      %v3242 = vshrl.u32 %v3221, 16
      %v3244 = vrot.slane %v3242, 4
      %v3245 = vshll.u32 %v3221, 16
      %v3247 = vrot.slane %v3245, 5
      %v3248 = vor.u32 %v3244, %v3247
      %v3249 = vrot.slane %v3248, 4
      %v3251 = vshll.u32 %v3222, 16
      %v3253 = vrot.slane %v3251, 5
      %v3254 = vsel %vm2505, %v3249, %v3253
      %v3256 = vshrl.u32 %v3223, 16
      %v3258 = vrot.slane %v3256, 4
      %v3259 = vshll.u32 %v3223, 16
      %v3261 = vrot.slane %v3259, 5
      %v3262 = vor.u32 %v3258, %v3261
      %v3263 = vrot.slane %v3262, 4
      %v3265 = vshll.u32 %v3224, 16
      %v3267 = vrot.slane %v3265, 5
      %v3268 = vsel %vm2505, %v3263, %v3267
      %v3270 = vshrl.u32 %v3225, 16
      %v3272 = vrot.slane %v3270, 4
      %v3273 = vshll.u32 %v3225, 16
      %v3275 = vrot.slane %v3273, 5
      %v3276 = vor.u32 %v3272, %v3275
      %v3277 = vrot.slane %v3276, 4
      %v3279 = vshll.u32 %v3226, 16
      %v3281 = vrot.slane %v3279, 5
      %v3282 = vsel %vm2505, %v3277, %v3281
      %v3284 = vshrl.u32 %v3227, 16
      %v3286 = vrot.slane %v3284, 4
      %v3287 = vshll.u32 %v3227, 16
      %v3289 = vrot.slane %v3287, 5
      %v3290 = vor.u32 %v3286, %v3289
      %v3291 = vrot.slane %v3290, 4
      %v3293 = vshll.u32 %v3228, 16
      %v3295 = vrot.slane %v3293, 5
      %v3296 = vsel %vm2505, %v3291, %v3295
      %v3298 = vshrl.u32 %v3229, 16
      %v3300 = vrot.slane %v3298, 4
      %v3301 = vshll.u32 %v3229, 16
      %v3303 = vrot.slane %v3301, 5
      %v3304 = vor.u32 %v3300, %v3303
      %v3305 = vrot.slane %v3304, 4
      %v3307 = vshll.u32 %v3230, 16
      %v3309 = vrot.slane %v3307, 5
      %v3310 = vsel %vm2505, %v3305, %v3309
      %v3312 = vshrl.u32 %v3231, 16
      %v3314 = vrot.slane %v3312, 4
      %v3315 = vshll.u32 %v3231, 16
      %v3317 = vrot.slane %v3315, 5
      %v3318 = vor.u32 %v3314, %v3317
      %v3319 = vrot.slane %v3318, 4
      %v3321 = vshll.u32 %v3232, 16
      %v3323 = vrot.slane %v3321, 5
      %v3324 = vsel %vm2505, %v3319, %v3323
      %v3326 = vshrl.u32 %v3233, 16
      %v3328 = vrot.slane %v3326, 4
      %v3329 = vshll.u32 %v3233, 16
      %v3331 = vrot.slane %v3329, 5
      %v3332 = vor.u32 %v3328, %v3331
      %v3333 = vrot.slane %v3332, 4
      %v3335 = vshll.u32 %v3234, 16
      %v3337 = vrot.slane %v3335, 5
      %v3338 = vsel %vm2505, %v3333, %v3337
      %v3340 = vshrl.u32 %v3235, 16
      %v3342 = vrot.slane %v3340, 4
      %v3343 = vshll.u32 %v3235, 16
      %v3345 = vrot.slane %v3343, 5
      %v3346 = vor.u32 %v3342, %v3345
      %v3347 = vrot.slane %v3346, 4
      %v3349 = vshll.u32 %v3236, 16
      %v3351 = vrot.slane %v3349, 5
      %v3352 = vsel %vm2505, %v3347, %v3351
      %v3369 = vrot.slane %v3221, 5
      %v3370 = vrot.slane %v3369, 4
      %v3371 = vrot.slane %v3222, 5
      %v3372 = vsel %vm2636, %v3370, %v3371
      %v3373 = vrot.slane %v3223, 5
      %v3374 = vrot.slane %v3373, 4
      %v3375 = vrot.slane %v3224, 5
      %v3376 = vsel %vm2636, %v3374, %v3375
      %v3377 = vrot.slane %v3225, 5
      %v3378 = vrot.slane %v3377, 4
      %v3379 = vrot.slane %v3226, 5
      %v3380 = vsel %vm2636, %v3378, %v3379
      %v3381 = vrot.slane %v3227, 5
      %v3382 = vrot.slane %v3381, 4
      %v3383 = vrot.slane %v3228, 5
      %v3384 = vsel %vm2636, %v3382, %v3383
      %v3385 = vrot.slane %v3229, 5
      %v3386 = vrot.slane %v3385, 4
      %v3387 = vrot.slane %v3230, 5
      %v3388 = vsel %vm2636, %v3386, %v3387
      %v3389 = vrot.slane %v3231, 5
      %v3390 = vrot.slane %v3389, 4
      %v3391 = vrot.slane %v3232, 5
      %v3392 = vsel %vm2636, %v3390, %v3391
      %v3393 = vrot.slane %v3233, 5
      %v3394 = vrot.slane %v3393, 4
      %v3395 = vrot.slane %v3234, 5
      %v3396 = vsel %vm2636, %v3394, %v3395
      %v3397 = vrot.slane %v3235, 5
      %v3398 = vrot.slane %v3397, 4
      %v3399 = vrot.slane %v3236, 5
      %v3400 = vsel %vm2636, %v3398, %v3399
      %v3402 = vshrl.u32 %v3237, 16
      %v3404 = vrot.slane %v3402, 4
      %v3405 = vshll.u32 %v3237, 16
      %v3407 = vrot.slane %v3405, 5
      %v3408 = vor.u32 %v3404, %v3407
      %v3409 = vrot.slane %v3408, 4
      %v3411 = vshll.u32 %v3238, 16
      %v3413 = vrot.slane %v3411, 5
      %v3414 = vsel %vm2505, %v3409, %v3413
      %v3417 = vrot.slane %v3237, 5
      %v3418 = vrot.slane %v3417, 4
      %v3419 = vrot.slane %v3238, 5
      %v3420 = vsel %vm2636, %v3418, %v3419
      %v3422 = vshrl.u32 %v3239, 16
      %v3424 = vrot.slane %v3422, 4
      %v3425 = vshll.u32 %v3239, 16
      %v3427 = vrot.slane %v3425, 5
      %v3428 = vor.u32 %v3424, %v3427
      %v3429 = vrot.slane %v3428, 4
      %v3431 = vshll.u32 %v3240, 16
      %v3433 = vrot.slane %v3431, 5
      %v3434 = vsel %vm2505, %v3429, %v3433
      %v3437 = vrot.slane %v3239, 5
      %v3438 = vrot.slane %v3437, 4
      %v3439 = vrot.slane %v3240, 5
      %v3440 = vsel %vm2636, %v3438, %v3439
      %v3441 = vunpack.c.l.b16 %v3221
      %v3442 = vunpack.c.l.b16 %v3223
      %v3443 = vunpack.c.l.b16 %v3225
      %v3444 = vunpack.c.l.b16 %v3227
      %v3445 = vunpack.c.l.b16 %v3229
      %v3446 = vunpack.c.l.b16 %v3231
      %v3447 = vunpack.c.l.b16 %v3233
      %v3448 = vunpack.c.l.b16 %v3235
      %v3449 = vpack.c.b16 %v3442, %v3441
      %v3450 = vpack.c.b16 %v3444, %v3443
      %v3451 = vpack.c.b16 %v3446, %v3445
      %v3452 = vpack.c.b16 %v3448, %v3447
      %v3453 = vunpack.c.l.b16 %v3254
      %v3454 = vunpack.c.l.b16 %v3268
      %v3455 = vunpack.c.l.b16 %v3282
      %v3456 = vunpack.c.l.b16 %v3296
      %v3457 = vunpack.c.l.b16 %v3310
      %v3458 = vunpack.c.l.b16 %v3324
      %v3459 = vunpack.c.l.b16 %v3338
      %v3460 = vunpack.c.l.b16 %v3352
      %v3461 = vpack.c.b16 %v3454, %v3453
      %v3462 = vpack.c.b16 %v3456, %v3455
      %v3463 = vpack.c.b16 %v3458, %v3457
      %v3464 = vpack.c.b16 %v3460, %v3459
      %3465 = vrot.lane.b32.xlu0 %v3461, 8
      %v3466 = vpop.permute.xlu0 %3465
      %3467 = vrot.lane.b32.xlu0 %v3462, 8
      %v3468 = vpop.permute.xlu0 %3467
      %3469 = vrot.lane.b32.xlu0 %v3463, 8
      %v3470 = vpop.permute.xlu0 %3469
      %3471 = vrot.lane.b32.xlu0 %v3464, 8
      %v3472 = vpop.permute.xlu0 %3471
      %v3473 = vunpack.c.l.b16 %v3372
      %v3474 = vunpack.c.l.b16 %v3376
      %v3475 = vunpack.c.l.b16 %v3380
      %v3476 = vunpack.c.l.b16 %v3384
      %v3477 = vunpack.c.l.b16 %v3388
      %v3478 = vunpack.c.l.b16 %v3392
      %v3479 = vunpack.c.l.b16 %v3396
      %v3480 = vunpack.c.l.b16 %v3400
      %v3481 = vpack.c.b16 %v3474, %v3473
      %v3482 = vpack.c.b16 %v3476, %v3475
      %v3483 = vpack.c.b16 %v3478, %v3477
      %v3484 = vpack.c.b16 %v3480, %v3479
      %3485 = vrot.lane.b32.xlu0 %v3481, 16
      %v3486 = vpop.permute.xlu0 %3485
      %3487 = vrot.lane.b32.xlu0 %v3482, 16
      %v3488 = vpop.permute.xlu0 %3487
      %3489 = vrot.lane.b32.xlu0 %v3483, 16
      %v3490 = vpop.permute.xlu0 %3489
      %3491 = vrot.lane.b32.xlu0 %v3484, 16
      %v3492 = vpop.permute.xlu0 %3491
      %v3493 = vunpack.c.l.b16 %v3237
      %v3494 = vpack.c.b16 %v3443, %v3442
      %v3495 = vpack.c.b16 %v3445, %v3444
      %v3496 = vpack.c.b16 %v3447, %v3446
      %v3497 = vpack.c.b16 %v3493, %v3448
      %3498 = vrot.lane.b32.xlu0 %v3494, 24
      %v3499 = vpop.permute.xlu0 %3498
      %3500 = vrot.lane.b32.xlu0 %v3495, 24
      %v3501 = vpop.permute.xlu0 %3500
      %3502 = vrot.lane.b32.xlu0 %v3496, 24
      %v3503 = vpop.permute.xlu0 %3502
      %3504 = vrot.lane.b32.xlu0 %v3497, 24
      %v3505 = vpop.permute.xlu0 %3504
      %v3506 = vunpack.c.l.b16 %v3414
      %v3507 = vpack.c.b16 %v3455, %v3454
      %v3508 = vpack.c.b16 %v3457, %v3456
      %v3509 = vpack.c.b16 %v3459, %v3458
      %v3510 = vpack.c.b16 %v3506, %v3460
      %3511 = vrot.lane.b32.xlu0 %v3507, 32
      %v3512 = vpop.permute.xlu0 %3511
      %3513 = vrot.lane.b32.xlu0 %v3508, 32
      %v3514 = vpop.permute.xlu0 %3513
      %3515 = vrot.lane.b32.xlu0 %v3509, 32
      %v3516 = vpop.permute.xlu0 %3515
      %3517 = vrot.lane.b32.xlu0 %v3510, 32
      %v3518 = vpop.permute.xlu0 %3517
      %v3519 = vunpack.c.l.b16 %v3420
      %v3520 = vpack.c.b16 %v3475, %v3474
      %v3521 = vpack.c.b16 %v3477, %v3476
      %v3522 = vpack.c.b16 %v3479, %v3478
      %v3523 = vpack.c.b16 %v3519, %v3480
      %3524 = vrot.lane.b32.xlu0 %v3520, 40
      %v3525 = vpop.permute.xlu0 %3524
      %3526 = vrot.lane.b32.xlu0 %v3521, 40
      %v3527 = vpop.permute.xlu0 %3526
      %3528 = vrot.lane.b32.xlu0 %v3522, 40
      %v3529 = vpop.permute.xlu0 %3528
      %3530 = vrot.lane.b32.xlu0 %v3523, 40
      %v3531 = vpop.permute.xlu0 %3530
      %v3532 = vunpack.c.l.b16 %v3239
      %v3533 = vpack.c.b16 %v3532, %v3493
      %3534 = vrot.lane.b32.xlu0 %v3450, 48
      %v3535 = vpop.permute.xlu0 %3534
      %3536 = vrot.lane.b32.xlu0 %v3451, 48
      %v3537 = vpop.permute.xlu0 %3536
      %3538 = vrot.lane.b32.xlu0 %v3452, 48
      %v3539 = vpop.permute.xlu0 %3538
      %3540 = vrot.lane.b32.xlu0 %v3533, 48
      %v3541 = vpop.permute.xlu0 %3540
      %v3542 = vunpack.c.l.b16 %v3434
      %v3543 = vpack.c.b16 %v3542, %v3506
      %3544 = vrot.lane.b32.xlu0 %v3462, 56
      %v3545 = vpop.permute.xlu0 %3544
      %3546 = vrot.lane.b32.xlu0 %v3463, 56
      %v3547 = vpop.permute.xlu0 %3546
      %3548 = vrot.lane.b32.xlu0 %v3464, 56
      %v3549 = vpop.permute.xlu0 %3548
      %3550 = vrot.lane.b32.xlu0 %v3543, 56
      %v3551 = vpop.permute.xlu0 %3550
      %v3552 = vunpack.c.l.b16 %v3440
      %v3553 = vpack.c.b16 %v3552, %v3519
      %3554 = vrot.lane.b32.xlu0 %v3482, 64
      %v3555 = vpop.permute.xlu0 %3554
      %3556 = vrot.lane.b32.xlu0 %v3483, 64
      %v3557 = vpop.permute.xlu0 %3556
      %3558 = vrot.lane.b32.xlu0 %v3484, 64
      %v3559 = vpop.permute.xlu0 %3558
      %3560 = vrot.lane.b32.xlu0 %v3553, 64
      %v3561 = vpop.permute.xlu0 %3560
      %v3564 = vsel %vm2843, %v3449, %v3466
      %v3567 = vsel %vm2843, %v3450, %v3468
      %v3570 = vsel %vm2843, %v3451, %v3470
      %v3573 = vsel %vm2843, %v3452, %v3472
      %v3575 = vsel %vm2861, %v3564, %v3486
      %v3577 = vsel %vm2861, %v3567, %v3488
      %v3579 = vsel %vm2861, %v3570, %v3490
      %v3581 = vsel %vm2861, %v3573, %v3492
      %v3583 = vsel %vm2879, %v3575, %v3499
      %v3585 = vsel %vm2879, %v3577, %v3501
      %v3587 = vsel %vm2879, %v3579, %v3503
      %v3589 = vsel %vm2879, %v3581, %v3505
      %v3591 = vsel %vm2897, %v3583, %v3512
      %v3593 = vsel %vm2897, %v3585, %v3514
      %v3595 = vsel %vm2897, %v3587, %v3516
      %v3597 = vsel %vm2897, %v3589, %v3518
      %vm3598 = vcmask 326656
      %v3600 = vsel %vm3598, %v3591, %v3525
      %v3602 = vsel %vm3598, %v3593, %v3527
      %v3604 = vsel %vm3598, %v3595, %v3529
      %v3606 = vsel %vm3598, %v3597, %v3531
      %vm3607 = vcmask 392192
      %v3609 = vsel %vm3607, %v3600, %v3535
      %v3611 = vsel %vm3607, %v3602, %v3537
      %v3613 = vsel %vm3607, %v3604, %v3539
      %v3615 = vsel %vm3607, %v3606, %v3541
      %vm3616 = vcmask 457728
      %v3618 = vsel %vm3616, %v3609, %v3545
      %v3620 = vsel %vm3616, %v3611, %v3547
      %v3622 = vsel %vm3616, %v3613, %v3549
      %v3624 = vsel %vm3616, %v3615, %v3551
      %vm3625 = vcmask 523264
      %v3627 = vsel %vm3625, %v3618, %v3555
      %v3629 = vsel %vm3625, %v3620, %v3557
      %v3631 = vsel %vm3625, %v3622, %v3559
      %v3633 = vsel %vm3625, %v3624, %v3561
      %v3634 = vld [vmem:[%s4] sm:$0xf]
      %v3635 = vld [vmem:[%s4 + $0x4] sm:$0xf]
      %v3636 = vld [vmem:[%s4 + $0x8] sm:$0xf]
      %v3637 = vld [vmem:[%s4 + $0xc] sm:$0xf]
      %v3638 = vld [vmem:[%s4 + $0x10] sm:$0xf]
      %v3639 = vld [vmem:[%s4 + $0x14] sm:$0xf]
      %v3640 = vld [vmem:[%s4 + $0x18] sm:$0xf]
      %v3641 = vld [vmem:[%s4 + $0x1c] sm:$0xf]
      %v3642 = vld [vmem:[%s4 + $0x20] sm:$0xf]
      %v3652 = vunpack.c.l.b16 %v3634
      %v3653 = vunpack.c.l.b16 %v3635
      %v3654 = vunpack.c.l.b16 %v3636
      %v3655 = vunpack.c.l.b16 %v3637
      %v3656 = vunpack.c.l.b16 %v3638
      %v3657 = vunpack.c.l.b16 %v3639
      %v3658 = vunpack.c.l.b16 %v3640
      %v3659 = vunpack.c.l.b16 %v3641
      %v3660 = vunpack.c.l.b16 %v3642
      %v3661 = vpack.c.b16 %v3653, %v3652
      %v3662 = vpack.c.b16 %v3655, %v3654
      %v3663 = vpack.c.b16 %v3657, %v3656
      %v3664 = vpack.c.b16 %v3659, %v3658
      %v3665 = vpack.c.b16 %v3660, %v3660
      %vm3670 = vcmask 588800
      %v3671 = vsel %vm3670, %v3627, 0
      %v3673 = vsel %vm3670, %v3629, 0
      %v3675 = vsel %vm3670, %v3631, 0
      %v3677 = vsel %vm3670, %v3633, 0
      %vm3679 = vcmask 1043456
      %v3681 = vsel %vm3679, %v3665, 0
      %3683 = vmatprep.subr.bf16.mxu0 0
      %3684 = vmatpush1.bf16.msra.mxu0 %v3661
      %3685 = vmatprep.subr.bf16.mxu0 0
      %3686 = vmatpush1.bf16.msra.mxu0 %v3662
      %3687 = vmatprep.subr.bf16.mxu0 0
      %3688 = vmatpush1.bf16.msra.mxu0 %v3663
      %3689 = vmatprep.subr.bf16.mxu0 0
      %3690 = vmatpush1.bf16.msra.mxu0 %v3664
      %3691 = vmatprep.subr.bf16.mxu0 0
      %3692 = vmatpush1.bf16.msra.mxu0 %v3681
      %3693 = vmatprep.subr.bf16.mxu0 0
      %3694 = vmatpush1.bf16.msra.mxu0 0
      %3695 = vmatprep.subr.bf16.mxu0 0
      %3696 = vmatpush1.bf16.msra.mxu0 0
      %3697 = vmatprep.subr.bf16.mxu0 0
      %3698 = vmatpush1.bf16.msra.mxu0 0
      %3699 = vmatprep.subr.bf16.mxu0 0
      %3700 = vmatpush1.bf16.msra.mxu0 0
      %3701 = vmatprep.subr.bf16.mxu0 0
      %3702 = vmatpush1.bf16.msra.mxu0 0
      %3703 = vmatprep.subr.bf16.mxu0 0
      %3704 = vmatpush1.bf16.msra.mxu0 0
      %3705 = vmatprep.subr.bf16.mxu0 0
      %3706 = vmatpush1.bf16.msra.mxu0 0
      %3707 = vmatprep.subr.bf16.mxu0 0
      %3708 = vmatpush1.bf16.msra.mxu0 0
      %3709 = vmatprep.subr.bf16.mxu0 0
      %3710 = vmatpush1.bf16.msra.mxu0 0
      %3711 = vmatprep.subr.bf16.mxu0 0
      %3712 = vmatpush1.bf16.msra.mxu0 0
      %3713 = vmatprep.subr.bf16.mxu0 0
      %3714 = vmatpush1.bf16.msra.mxu0 0
      %3715 = vmatprep.mubr.bf16.mxu0 0
      %3716 = vmatmul.mubr.bf16.gmra.mrb[0].mxu0 %v3671
      %v3717 = vpop.f32.mrb[0].mxu0
      %v3718 = vadd.f32 0.0, %v3717
      %v3719 = vpop.f32.mrb[0].mxu0
      %v3720 = vpop.f32.mrb[0].mxu0
      %v3721 = vadd.f32 0.0, %v3720
      %v3722 = vpop.f32.mrb[0].mxu0
      %3723 = vmatprep.mubr.bf16.mxu0 0
      %3724 = vmatmul.mubr.bf16.gmra.mrb[0].mxu0 %v3673
      %v3725 = vpop.f32.mrb[0].mxu0
      %v3726 = vadd.f32 0.0, %v3725
      %v3727 = vpop.f32.mrb[0].mxu0
      %v3728 = vpop.f32.mrb[0].mxu0
      %v3729 = vadd.f32 0.0, %v3728
      %v3730 = vpop.f32.mrb[0].mxu0
      %3731 = vmatprep.mubr.bf16.mxu0 0
      %3732 = vmatmul.mubr.bf16.gmra.mrb[0].mxu0 %v3675
      %v3733 = vpop.f32.mrb[0].mxu0
      %v3734 = vadd.f32 0.0, %v3733
      %v3735 = vpop.f32.mrb[0].mxu0
      %v3736 = vpop.f32.mrb[0].mxu0
      %v3737 = vadd.f32 0.0, %v3736
      %v3738 = vpop.f32.mrb[0].mxu0
      %3739 = vmatprep.mubr.bf16.mxu0 0
      %3740 = vmatmul.mubr.bf16.gmra.mrb[0].mxu0 %v3677
      %v3741 = vpop.f32.mrb[0].mxu0
      %v3742 = vadd.f32 0.0, %v3741
      %v3743 = vpop.f32.mrb[0].mxu0
      %v3744 = vpop.f32.mrb[0].mxu0
      %v3745 = vadd.f32 0.0, %v3744
      %v3746 = vpop.f32.mrb[0].mxu0
      %3747 = vdwg.mxu0
      %v3748 = vld [vmem:[%s5] sm:$0x1]
      %v3750 = vlaneseq
      %v3751 = vshrl.u32 %v3750, 7
      %v3752 = vsub.s32 0, %v3751
      %v3753 = vrot.slane %v3748, %v3752
      %v3755 = vmul.f32 %v3718, %v3753
      %v3756 = vmul.f32 %v3721, %v3753
      %v3757 = vmul.f32 %v3726, %v3753
      %v3758 = vmul.f32 %v3729, %v3753
      %v3759 = vmul.f32 %v3734, %v3753
      %v3760 = vmul.f32 %v3737, %v3753
      %v3761 = vmul.f32 %v3742, %v3753
      %v3762 = vmul.f32 %v3745, %v3753
      %v3763 = vld [vmem:[%s6] sm:$0x1]
      %v3765 = vlaneseq
      %v3766 = vshrl.u32 %v3765, 7
      %v3767 = vsub.s32 0, %v3766
      %v3768 = vrot.slane %v3763, %v3767
      %v3770 = vadd.f32 %v3755, %v3768
      %v3771 = vadd.f32 %v3756, %v3768
      %v3772 = vadd.f32 %v3757, %v3768
      %v3773 = vadd.f32 %v3758, %v3768
      %v3774 = vadd.f32 %v3759, %v3768
      %v3775 = vadd.f32 %v3760, %v3768
      %v3776 = vadd.f32 %v3761, %v3768
      %v3777 = vadd.f32 %v3762, %v3768
      %v3778 = vmax.f32 %v3770, 0.0
      %v3779 = vmax.f32 %v3771, 0.0
      %v3780 = vmax.f32 %v3772, 0.0
      %v3781 = vmax.f32 %v3773, 0.0
      %v3782 = vmax.f32 %v3774, 0.0
      %v3783 = vmax.f32 %v3775, 0.0
      %v3784 = vmax.f32 %v3776, 0.0
      %v3785 = vmax.f32 %v3777, 0.0
      %3786 = vst.msk [vmem:[%s278] sm:$0xff] %vm2843, %v3778
      %3787 = vst.msk [vmem:[%s278 + $0x8] sm:$0xff] %vm2843, %v3779
      %3788 = vst.msk [vmem:[%s278 + $0x10] sm:$0xff] %vm2843, %v3780
      %3789 = vst.msk [vmem:[%s278 + $0x18] sm:$0xff] %vm2843, %v3781
      %3790 = vst.msk [vmem:[%s278 + $0x20] sm:$0xff] %vm2843, %v3782
      %3791 = vst.msk [vmem:[%s278 + $0x28] sm:$0xff] %vm2843, %v3783
      %3792 = vst.msk [vmem:[%s278 + $0x30] sm:$0xff] %vm2843, %v3784
      %3793 = vst.msk [vmem:[%s278 + $0x38] sm:$0xff] %vm2843, %v3785
      %p3794 = scmp.lt.s32.totalorder %s18, 1
      %s3795 = scalar_select %p3794, %s18, 1
      %s3796 = smul.addr %s3795, 8
      %s3797 = smul.addr %s3796, 8
      %s3798 = scalar_lea.vmem %s7, %s3797
      // Predicated region
      $region49: #{tpu_custom_call.1} parent=47 // pred_check
        %p3799 = pneg %p188
      $region50: #{tpu_custom_call.1} parent=47 // pred_check_branch
        %3801 = sbr.rel (%p3799) target = $region52
      $region51: #{tpu_custom_call.1} parent=47 // pred_region
        _
      $region52: #{tpu_custom_call.1} parent=47 // pred_fallthru
        _
    $region48: #{tpu_custom_call.1} parent=5 // pred_fallthru
      _
    %p3802 = scmp.le.s32.totalorder 2, %s13
    // Predicated region
    $region53: #{tpu_custom_call.1} parent=5 // pred_check
      %p3803 = pneg %p3802
    $region54: #{tpu_custom_call.1} parent=5 // pred_check_branch
      %3805 = sbr.rel (%p3803) target = $region56
    $region55: #{tpu_custom_call.1} parent=5 // pred_region
      %s3806 = ssub.s32 %s13, 2
      // Predicated region
      $region57: #{tpu_custom_call.1} parent=55 // pred_check
        %p3807 = pneg %p194
      $region58: #{tpu_custom_call.1} parent=55 // pred_check_branch
        %3809 = sbr.rel (%p3807) target = $region60
      $region59: #{tpu_custom_call.1} parent=55 // pred_region
        %p3810 = scmp.lt.s32.totalorder %s19, 1
        %s3811 = scalar_select %p3810, %s19, 1
        %s3812 = smul.addr %s3811, 8
        %s3813 = smul.addr %s3812, 8
        %s3814 = scalar_lea.vmem %s7, %s3813
      $region60: #{tpu_custom_call.1} parent=55 // pred_fallthru
        _
    $region56: #{tpu_custom_call.1} parent=5 // pred_fallthru
      _
  $region6: #{tpu_custom_call.1} parent=0 // loop_footer
    %s17 = sadd.s32 1, %s13
  $region7: #{tpu_custom_call.1} parent=0 // loop_footer_branch
    %12 = sbr.rel target = $region3
  $region8: #{tpu_custom_call.1} parent=0 // loop_exit
    _

</llo_original>
